<compile_context>
chip_gen: v5e
topology: v5e:2x2
jax: 0.10.0
libtpu: 0.0.40
codegen_flags: <defaults>
</compile_context>

<pallas_src>
import functools

import jax
import jax.numpy as jnp
from jax.experimental import pallas as pl
from jax.experimental.pallas import tpu as pltpu

LN_EPS = 1e-5


# --------------------------------------------------------------------------
# Fused kernel: one grid step == one transformer layer (+ embed at step 0).
# --------------------------------------------------------------------------
def fused_encoder_kernel(patches_ref, wp_ref, add_ref,
                         wqkv_ref, bqkv_ref, wo_ref, bo_ref,
                         g1_ref, bn1_ref, w1_ref, bf1_ref,
                         w2_ref, bf2_ref, g2_ref, bn2_ref,
                         o_ref, x_ref, *, num_heads, batch, seq):
    l = pl.program_id(0)
    N, S, H = batch, seq, num_heads
    NS, E = x_ref.shape
    dh = E // H

    # ---- step 0 only: patch embedding + (conv bias + positional enc) ------
    @pl.when(l == 0)
    def _():
        emb = jnp.dot(patches_ref[...].astype(jnp.bfloat16), wp_ref[...],
                      preferred_element_type=jnp.float32)
        x_ref[...] = emb + add_ref[...]

    x = x_ref[...]                                            # (NS, E) f32

    def layer_norm(v, g, b):
        mu = jnp.mean(v, axis=-1, keepdims=True)
        var = jnp.mean((v - mu) ** 2, axis=-1, keepdims=True)
        return (v - mu) * jax.lax.rsqrt(var + LN_EPS) * g + b

    wqkv = wqkv_ref[0]                                        # (E, 3E) bf16, Q pre-scaled
    bqkv = bqkv_ref[0]                                        # (1, 3E) f32
    wo, bo = wo_ref[0], bo_ref[0]
    g1, bn1 = g1_ref[0], bn1_ref[0]
    w1, bf1 = w1_ref[0], bf1_ref[0]
    w2, bf2 = w2_ref[0], bf2_ref[0]
    g2, bn2 = g2_ref[0], bn2_ref[0]

    # ---- self attention (batch folded into M, heads folded into batch) ----
    qkv = jnp.dot(x.astype(jnp.bfloat16), wqkv,
                  preferred_element_type=jnp.float32) + bqkv  # (NS, 3E) f32

    def heads(base):
        # (H*N, S, dh) with b = h*N + n — leading-dim concat only (no relayout)
        return jnp.concatenate(
            [qkv[:, base + h * dh: base + (h + 1) * dh].reshape(N, S, dh)
             for h in range(H)], axis=0)

    q3, k3, v3 = heads(0), heads(E), heads(2 * E)
    s = jnp.einsum("bqd,bkd->bqk", q3, k3,
                   preferred_element_type=jnp.float32)        # (H*N, S, S)
    s = s - jnp.max(s, axis=-1, keepdims=True)
    p = jnp.exp(s)
    p = p / jnp.sum(p, axis=-1, keepdims=True)
    ctx = jnp.einsum("bqk,bkd->bqd", p, v3,
                     preferred_element_type=jnp.float32)      # (H*N, S, dh)

    # lane-concat heads back to (NS, E) and do a single K=128 out-projection
    ctx_cat = jnp.concatenate(
        [ctx[h * N:(h + 1) * N].reshape(NS, dh) for h in range(H)], axis=1)
    attn = jnp.dot(ctx_cat.astype(jnp.bfloat16), wo,
                   preferred_element_type=jnp.float32)

    # ---- residual + LayerNorm 1 (dropout identity in eval) ----------------
    y = layer_norm(x + attn + bo, g1, bn1)

    # ---- feed forward (ReLU) + residual + LayerNorm 2 ----------------------
    hdn = jnp.maximum(
        jnp.dot(y.astype(jnp.bfloat16), w1, preferred_element_type=jnp.float32) + bf1,
        0.0)
    ff = jnp.dot(hdn.astype(jnp.bfloat16), w2,
                 preferred_element_type=jnp.float32) + bf2
    x_new = layer_norm(y + ff, g2, bn2)

    x_ref[...] = x_new                                        # carry to next layer

    # ---- last layer: store as (S, N*E) == contiguous (S, N, E) ------------
    @pl.when(l == pl.num_programs(0) - 1)
    def _():
        for n in range(N):                                    # aligned 128-lane slabs
            o_ref[:, n * E:(n + 1) * E] = x_new[n * S:(n + 1) * S, :]


# --------------------------------------------------------------------------
# Host-side one-time weight preparation + wrapper
# --------------------------------------------------------------------------
def prepare_params(params, seq_len, batch):
    """Fold 1/sqrt(dh) into the Q projection, cast MXU weights to bf16, bake
    conv bias + positional encodings (incl. the batch tile) into one additive
    term, and stack per-layer weights into (L, ...) arrays for the layer grid."""
    E = params["embedding_dim"]
    H = params["num_heads"]
    dh = E // H
    scale = 1.0 / (dh ** 0.5)

    cpp = params["conv_w"].size // E
    w_patch = params["conv_w"].reshape(E, cpp).T                   # (CPP, E)

    qscale = jnp.concatenate([jnp.full((E,), scale, jnp.float32),
                              jnp.ones((2 * E,), jnp.float32)])
    stack = lambda k: jnp.stack([L[k] for L in params["layers"]])

    add_se = params["conv_b"][None, :] + params["pos"][:seq_len, :]  # (S, E)

    return {
        "patch_size": params["patch_size"],
        "embedding_dim": E,
        "num_heads": H,
        "num_layers": len(params["layers"]),
        "w_patch": w_patch.astype(jnp.bfloat16),
        "add": jnp.tile(add_se, (batch, 1)),                       # (N*S, E) f32, baked
        "wqkv": (stack("wqkv") * qscale[None, None, :]).astype(jnp.bfloat16),
        "bqkv": stack("bqkv") * qscale[None, None, :],             # f32
        "wo": stack("wo").astype(jnp.bfloat16), "bo": stack("bo"),
        "g1": stack("g1"), "bn1": stack("bn1"),
        "w1": stack("w1").astype(jnp.bfloat16), "bf1": stack("bf1"),
        "w2": stack("w2").astype(jnp.bfloat16), "bf2": stack("bf2"),
        "g2": stack("g2"), "bn2": stack("bn2"),
    }


def extract_patches(x, patch_size):
    # x: NCHW.  Non-overlapping patches in row-major (h_out, w_out) order,
    # each flattened as (c, ph, pw) — matches Conv2d weight flattening.
    N, C, H, W = x.shape
    P = patch_size
    Hp, Wp = H // P, W // P
    p = x.reshape(N, C, Hp, P, Wp, P)
    p = p.transpose(0, 2, 4, 1, 3, 5)            # (N, Hp, Wp, C, P, P)
    return p.reshape(N, Hp * Wp, C * P * P)


def patch_transformer_encoder(x, prep):
    """Fused Pallas forward. Input NCHW, output (S, N, E) like the PyTorch module."""
    P = prep["patch_size"]
    E = prep["embedding_dim"]
    L = prep["num_layers"]
    patches = extract_patches(x, P)                            # (N, S, CPP)
    N, S, cpp = patches.shape
    patches = patches.reshape(N * S, cpp)                      # (NS, CPP)

    kern = functools.partial(fused_encoder_kernel,
                             num_heads=prep["num_heads"], batch=N, seq=S)

    resident = lambda shape: pl.BlockSpec(shape, lambda l: (0, 0))
    per_layer = lambda arr: pl.BlockSpec((1,) + tuple(arr.shape[1:]),
                                         lambda l: (l, 0, 0))

    # NOTE: if the surrounding model processes multiple images, batch them into
    # one call (raise N toward NS~256) before further micro-optimization.
    out = pl.pallas_call(
        kern,
        grid=(L,),
        out_shape=jax.ShapeDtypeStruct((S, N * E), jnp.float32),
        in_specs=[
            resident((N * S, cpp)),                 # patches (fetched once)
            resident(tuple(prep["w_patch"].shape)), # patch-embed weight (bf16)
            resident((N * S, E)),                   # conv bias + pos enc (f32)
            per_layer(prep["wqkv"]), per_layer(prep["bqkv"]),
            per_layer(prep["wo"]),   per_layer(prep["bo"]),
            per_layer(prep["g1"]),   per_layer(prep["bn1"]),
            per_layer(prep["w1"]),   per_layer(prep["bf1"]),
            per_layer(prep["w2"]),   per_layer(prep["bf2"]),
            per_layer(prep["g2"]),   per_layer(prep["bn2"]),
        ],
        out_specs=pl.BlockSpec((S, N * E), lambda l: (0, 0)),
        scratch_shapes=[pltpu.VMEM((N * S, E), jnp.float32)],   # carried activation
        compiler_params=pltpu.CompilerParams(
            dimension_semantics=("arbitrary",)),
    )(patches, prep["w_patch"], prep["add"],
      prep["wqkv"], prep["bqkv"], prep["wo"], prep["bo"],
      prep["g1"], prep["bn1"], prep["w1"], prep["bf1"],
      prep["w2"], prep["bf2"], prep["g2"], prep["bn2"])

    return out.reshape(S, N, E)                                # free (contiguous) reshape


# --------------------------------------------------------------------------
# Pure-JAX f32 reference (for correctness checking)
# --------------------------------------------------------------------------
def _ln(x, g, b):
    mu = jnp.mean(x, axis=-1, keepdims=True)
    var = jnp.mean((x - mu) ** 2, axis=-1, keepdims=True)
    return (x - mu) * jax.lax.rsqrt(var + LN_EPS) * g + b


def ref_forward(x, params):
    P = params["patch_size"]
    E = params["embedding_dim"]
    H = params["num_heads"]
    patches = extract_patches(x, P)
    N, S, _ = patches.shape
    w_mat = params["conv_w"].reshape(E, -1).T
    h = patches @ w_mat + params["conv_b"][None, None, :] + params["pos"][None, :S, :]
    dh = E // H
    for L in params["layers"]:
        qkv = h @ L["wqkv"] + L["bqkv"][None]
        q, k, v = jnp.split(qkv, 3, axis=-1)
        q = q.reshape(N, S, H, dh) * (1.0 / (dh ** 0.5))
        k = k.reshape(N, S, H, dh)
        v = v.reshape(N, S, H, dh)
        s = jnp.einsum("nqhd,nkhd->nhqk", q, k)
        p = jax.nn.softmax(s, axis=-1)
        a = jnp.einsum("nhqk,nkhd->nqhd", p, v).reshape(N, S, E)
        a = a @ L["wo"] + L["bo"][None]
        y = _ln(h + a, L["g1"][None], L["bn1"][None])
        ff = jnp.maximum(y @ L["w1"] + L["bf1"][None], 0.0) @ L["w2"] + L["bf2"][None]
        h = _ln(y + ff, L["g2"][None], L["bn2"][None])
    return h.transpose(1, 0, 2)


# --------------------------------------------------------------------------
# Deterministic parameter init (synthetic, not a checkpoint)
# --------------------------------------------------------------------------
def init_params(key, in_channels, patch_size, embedding_dim, num_heads,
                dim_feedforward, num_layers, max_pos=500):
    E, FF = embedding_dim, dim_feedforward
    keys = jax.random.split(key, 3 + num_layers)
    params = {
        "patch_size": patch_size,
        "embedding_dim": E,
        "num_heads": num_heads,
        "conv_w": 0.05 * jax.random.normal(
            keys[0], (E, in_channels, patch_size, patch_size), jnp.float32),
        "conv_b": 0.05 * jax.random.normal(keys[1], (E,), jnp.float32),
        "pos": jax.random.uniform(keys[2], (max_pos, E), jnp.float32),
        "layers": [],
    }
    for i in range(num_layers):
        lk = jax.random.split(keys[3 + i], 8)
        params["layers"].append({
            "wqkv": 0.05 * jax.random.normal(lk[0], (E, 3 * E), jnp.float32),
            "bqkv": 0.05 * jax.random.normal(lk[1], (1, 3 * E), jnp.float32),
            "wo":   0.05 * jax.random.normal(lk[2], (E, E), jnp.float32),
            "bo":   0.05 * jax.random.normal(lk[3], (1, E), jnp.float32),
            "g1": jnp.ones((1, E), jnp.float32),
            "bn1": jnp.zeros((1, E), jnp.float32),
            "w1":   0.05 * jax.random.normal(lk[4], (E, FF), jnp.float32),
            "bf1":  0.05 * jax.random.normal(lk[5], (1, FF), jnp.float32),
            "w2":   0.05 * jax.random.normal(lk[6], (FF, E), jnp.float32),
            "bf2":  0.05 * jax.random.normal(lk[7], (1, E), jnp.float32),
            "g2": jnp.ones((1, E), jnp.float32),
            "bn2": jnp.zeros((1, E), jnp.float32),
        })
    return params


# --------------------------------------------------------------------------
if __name__ == "__main__":
    key = jax.random.PRNGKey(0)
    kx, kp = jax.random.split(key)

    N, C, Hin, Win = 2, 4, 16, 16
    patch_size = 4                      # -> S = (16/4)^2 = 16 patch tokens
    embedding_dim = 128
    num_heads = 8                       # 128 % 12 != 0 in the original module
    dim_feedforward = 1024
    num_layers = 4

    x = jax.random.normal(kx, (N, C, Hin, Win), jnp.float32)
    params = init_params(kp, C, patch_size, embedding_dim, num_heads,
                         dim_feedforward, num_layers)

    S = (Hin // patch_size) * (Win // patch_size)
    prep = prepare_params(params, S, N)

    out = patch_transformer_encoder(x, prep)
    out = jax.block_until_ready(out)

    assert out.shape == (S, N, embedding_dim), out.shape

    ref = ref_forward(x, params)
    err = float(jnp.max(jnp.abs(out - ref)))
    # bf16 weight storage + bf16 matmul operands vs. a pure-f32 reference:
    # expected quantization error, not a kernel bug (f32 version matched @1e-3).
    if err > 5e-2:
        raise AssertionError(f"Pallas output mismatch vs reference: {err}")

    print("KERNEL_OK")
</pallas_src>

<mosaic_0001>
module attributes {stable_mosaic.version = 11 : i64} {
  func.func @fused_encoder_kernel(%arg0: i32, %arg1: memref<32x64xf32, #tpu.memory_space<vmem>>, %arg2: memref<64x128xbf16, #tpu.memory_space<vmem>>, %arg3: memref<32x128xf32, #tpu.memory_space<vmem>>, %arg4: memref<1x128x384xbf16, #tpu.memory_space<vmem>>, %arg5: memref<1x1x384xf32, #tpu.memory_space<vmem>>, %arg6: memref<1x128x128xbf16, #tpu.memory_space<vmem>>, %arg7: memref<1x1x128xf32, #tpu.memory_space<vmem>>, %arg8: memref<1x1x128xf32, #tpu.memory_space<vmem>>, %arg9: memref<1x1x128xf32, #tpu.memory_space<vmem>>, %arg10: memref<1x128x1024xbf16, #tpu.memory_space<vmem>>, %arg11: memref<1x1x1024xf32, #tpu.memory_space<vmem>>, %arg12: memref<1x1024x128xbf16, #tpu.memory_space<vmem>>, %arg13: memref<1x1x128xf32, #tpu.memory_space<vmem>>, %arg14: memref<1x1x128xf32, #tpu.memory_space<vmem>>, %arg15: memref<1x1x128xf32, #tpu.memory_space<vmem>>, %arg16: memref<16x256xf32, #tpu.memory_space<vmem>>, %arg17: memref<32x128xf32, #tpu.memory_space<vmem>>) attributes {dimension_semantics = [#tpu.dimension_semantics<arbitrary>], iteration_bounds = array<i64: 4>, scalar_prefetch = 0 : i64, scratch_operands = 1 : i64, tpu.core_type = #tpu.core_type<tc>, window_params = [{pipeline_mode = #tpu.pipeline_mode<synchronous>, transform_indices = @transform_0, window_bounds = array<i64: 32, 64>}, {pipeline_mode = #tpu.pipeline_mode<synchronous>, transform_indices = @transform_1, window_bounds = array<i64: 64, 128>}, {pipeline_mode = #tpu.pipeline_mode<synchronous>, transform_indices = @transform_2, window_bounds = array<i64: 32, 128>}, {transform_indices = @transform_3, window_bounds = array<i64: 1, 128, 384>}, {transform_indices = @transform_4, window_bounds = array<i64: 1, 1, 384>}, {transform_indices = @transform_5, window_bounds = array<i64: 1, 128, 128>}, {transform_indices = @transform_6, window_bounds = array<i64: 1, 1, 128>}, {transform_indices = @transform_7, window_bounds = array<i64: 1, 1, 128>}, {transform_indices = @transform_8, window_bounds = array<i64: 1, 1, 128>}, {transform_indices = @transform_9, window_bounds = array<i64: 1, 128, 1024>}, {transform_indices = @transform_10, window_bounds = array<i64: 1, 1, 1024>}, {transform_indices = @transform_11, window_bounds = array<i64: 1, 1024, 128>}, {transform_indices = @transform_12, window_bounds = array<i64: 1, 1, 128>}, {transform_indices = @transform_13, window_bounds = array<i64: 1, 1, 128>}, {transform_indices = @transform_14, window_bounds = array<i64: 1, 1, 128>}, {pipeline_mode = #tpu.pipeline_mode<synchronous>, transform_indices = @transform_15, window_bounds = array<i64: 16, 256>}]} {
    %c0_i32 = arith.constant 0 : i32
    %0 = arith.cmpi eq, %arg0, %c0_i32 : i32
    %1 = arith.extui %0 : i1 to i32
    %c0_i32_0 = arith.constant 0 : i32
    %2 = arith.cmpi ne, %1, %c0_i32_0 : i32
    scf.if %2 {
      %c0_59 = arith.constant 0 : index
      %c0_60 = arith.constant 0 : index
      %175 = vector.load %arg1[%c0_59, %c0_60] : memref<32x64xf32, #tpu.memory_space<vmem>>, vector<32x64xf32>
      %176 = arith.truncf %175 : vector<32x64xf32> to vector<32x64xbf16>
      %c0_61 = arith.constant 0 : index
      %c0_62 = arith.constant 0 : index
      %177 = vector.load %arg2[%c0_61, %c0_62] : memref<64x128xbf16, #tpu.memory_space<vmem>>, vector<64x128xbf16>
      %cst_63 = arith.constant dense<0.000000e+00> : vector<32x128xf32>
      %178 = tpu.matmul %176, %177, %cst_63 {dimension_numbers = #tpu.dot_dimension_numbers<[1], [0], [0], [1], [0, 0, 1, 1], [], []>} : vector<32x64xbf16>, vector<64x128xbf16>, vector<32x128xf32> -> vector<32x128xf32>
      %c0_64 = arith.constant 0 : index
      %c0_65 = arith.constant 0 : index
      %179 = vector.load %arg3[%c0_64, %c0_65] : memref<32x128xf32, #tpu.memory_space<vmem>>, vector<32x128xf32>
      %180 = arith.addf %178, %179 : vector<32x128xf32>
      %c0_66 = arith.constant 0 : index
      %c0_67 = arith.constant 0 : index
      %181 = vector.load %arg17[%c0_66, %c0_67] : memref<32x128xf32, #tpu.memory_space<vmem>>, vector<32x128xf32>
      tpu.vector_store %arg17[%c0_66, %c0_67], %180 {strides = array<i32>} : memref<32x128xf32, #tpu.memory_space<vmem>>, vector<32x128xf32>,
    } else {
    }
    %c0 = arith.constant 0 : index
    %c0_1 = arith.constant 0 : index
    %3 = vector.load %arg17[%c0, %c0_1] : memref<32x128xf32, #tpu.memory_space<vmem>>, vector<32x128xf32>
    %c0_2 = arith.constant 0 : index
    %c0_3 = arith.constant 0 : index
    %c0_4 = arith.constant 0 : index
    %4 = vector.load %arg4[%c0_2, %c0_3, %c0_4] : memref<1x128x384xbf16, #tpu.memory_space<vmem>>, vector<1x128x384xbf16>
    %5 = vector.shape_cast %4 : vector<1x128x384xbf16> to vector<128x384xbf16>
    %c0_5 = arith.constant 0 : index
    %c0_6 = arith.constant 0 : index
    %c0_7 = arith.constant 0 : index
    %6 = vector.load %arg5[%c0_5, %c0_6, %c0_7] : memref<1x1x384xf32, #tpu.memory_space<vmem>>, vector<1x1x384xf32>
    %7 = vector.shape_cast %6 : vector<1x1x384xf32> to vector<1x384xf32>
    %c0_8 = arith.constant 0 : index
    %c0_9 = arith.constant 0 : index
    %c0_10 = arith.constant 0 : index
    %8 = vector.load %arg6[%c0_8, %c0_9, %c0_10] : memref<1x128x128xbf16, #tpu.memory_space<vmem>>, vector<1x128x128xbf16>
    %9 = vector.shape_cast %8 : vector<1x128x128xbf16> to vector<128x128xbf16>
    %c0_11 = arith.constant 0 : index
    %c0_12 = arith.constant 0 : index
    %c0_13 = arith.constant 0 : index
    %10 = vector.load %arg7[%c0_11, %c0_12, %c0_13] : memref<1x1x128xf32, #tpu.memory_space<vmem>>, vector<1x1x128xf32>
    %11 = vector.shape_cast %10 : vector<1x1x128xf32> to vector<1x128xf32>
    %c0_14 = arith.constant 0 : index
    %c0_15 = arith.constant 0 : index
    %c0_16 = arith.constant 0 : index
    %12 = vector.load %arg8[%c0_14, %c0_15, %c0_16] : memref<1x1x128xf32, #tpu.memory_space<vmem>>, vector<1x1x128xf32>
    %13 = vector.shape_cast %12 : vector<1x1x128xf32> to vector<1x128xf32>
    %c0_17 = arith.constant 0 : index
    %c0_18 = arith.constant 0 : index
    %c0_19 = arith.constant 0 : index
    %14 = vector.load %arg9[%c0_17, %c0_18, %c0_19] : memref<1x1x128xf32, #tpu.memory_space<vmem>>, vector<1x1x128xf32>
    %15 = vector.shape_cast %14 : vector<1x1x128xf32> to vector<1x128xf32>
    %c0_20 = arith.constant 0 : index
    %c0_21 = arith.constant 0 : index
    %c0_22 = arith.constant 0 : index
    %16 = vector.load %arg10[%c0_20, %c0_21, %c0_22] : memref<1x128x1024xbf16, #tpu.memory_space<vmem>>, vector<1x128x1024xbf16>
    %17 = vector.shape_cast %16 : vector<1x128x1024xbf16> to vector<128x1024xbf16>
    %c0_23 = arith.constant 0 : index
    %c0_24 = arith.constant 0 : index
    %c0_25 = arith.constant 0 : index
    %18 = vector.load %arg11[%c0_23, %c0_24, %c0_25] : memref<1x1x1024xf32, #tpu.memory_space<vmem>>, vector<1x1x1024xf32>
    %19 = vector.shape_cast %18 : vector<1x1x1024xf32> to vector<1x1024xf32>
    %c0_26 = arith.constant 0 : index
    %c0_27 = arith.constant 0 : index
    %c0_28 = arith.constant 0 : index
    %20 = vector.load %arg12[%c0_26, %c0_27, %c0_28] : memref<1x1024x128xbf16, #tpu.memory_space<vmem>>, vector<1x1024x128xbf16>
    %21 = vector.shape_cast %20 : vector<1x1024x128xbf16> to vector<1024x128xbf16>
    %c0_29 = arith.constant 0 : index
    %c0_30 = arith.constant 0 : index
    %c0_31 = arith.constant 0 : index
    %22 = vector.load %arg13[%c0_29, %c0_30, %c0_31] : memref<1x1x128xf32, #tpu.memory_space<vmem>>, vector<1x1x128xf32>
    %23 = vector.shape_cast %22 : vector<1x1x128xf32> to vector<1x128xf32>
    %c0_32 = arith.constant 0 : index
    %c0_33 = arith.constant 0 : index
    %c0_34 = arith.constant 0 : index
    %24 = vector.load %arg14[%c0_32, %c0_33, %c0_34] : memref<1x1x128xf32, #tpu.memory_space<vmem>>, vector<1x1x128xf32>
    %25 = vector.shape_cast %24 : vector<1x1x128xf32> to vector<1x128xf32>
    %c0_35 = arith.constant 0 : index
    %c0_36 = arith.constant 0 : index
    %c0_37 = arith.constant 0 : index
    %26 = vector.load %arg15[%c0_35, %c0_36, %c0_37] : memref<1x1x128xf32, #tpu.memory_space<vmem>>, vector<1x1x128xf32>
    %27 = vector.shape_cast %26 : vector<1x1x128xf32> to vector<1x128xf32>
    %28 = arith.truncf %3 : vector<32x128xf32> to vector<32x128xbf16>
    %cst = arith.constant dense<0.000000e+00> : vector<32x384xf32>
    %29 = tpu.matmul %28, %5, %cst {dimension_numbers = #tpu.dot_dimension_numbers<[1], [0], [0], [1], [0, 0, 1, 1], [], []>} : vector<32x128xbf16>, vector<128x384xbf16>, vector<32x384xf32> -> vector<32x384xf32>
    %30 = vector.broadcast %7 : vector<1x384xf32> to vector<32x384xf32>
    %31 = arith.addf %29, %30 : vector<32x384xf32>
    %32 = vector.extract_strided_slice %31 {offsets = [0, 0], sizes = [32, 16], strides = [1, 1]} : vector<32x384xf32> to vector<32x16xf32>
    %33 = vector.shape_cast %32 : vector<32x16xf32> to vector<2x16x16xf32>
    %34 = vector.extract_strided_slice %31 {offsets = [0, 16], sizes = [32, 16], strides = [1, 1]} : vector<32x384xf32> to vector<32x16xf32>
    %35 = vector.shape_cast %34 : vector<32x16xf32> to vector<2x16x16xf32>
    %36 = vector.extract_strided_slice %31 {offsets = [0, 32], sizes = [32, 16], strides = [1, 1]} : vector<32x384xf32> to vector<32x16xf32>
    %37 = vector.shape_cast %36 : vector<32x16xf32> to vector<2x16x16xf32>
    %38 = vector.extract_strided_slice %31 {offsets = [0, 48], sizes = [32, 16], strides = [1, 1]} : vector<32x384xf32> to vector<32x16xf32>
    %39 = vector.shape_cast %38 : vector<32x16xf32> to vector<2x16x16xf32>
    %40 = vector.extract_strided_slice %31 {offsets = [0, 64], sizes = [32, 16], strides = [1, 1]} : vector<32x384xf32> to vector<32x16xf32>
    %41 = vector.shape_cast %40 : vector<32x16xf32> to vector<2x16x16xf32>
    %42 = vector.extract_strided_slice %31 {offsets = [0, 80], sizes = [32, 16], strides = [1, 1]} : vector<32x384xf32> to vector<32x16xf32>
    %43 = vector.shape_cast %42 : vector<32x16xf32> to vector<2x16x16xf32>
    %44 = vector.extract_strided_slice %31 {offsets = [0, 96], sizes = [32, 16], strides = [1, 1]} : vector<32x384xf32> to vector<32x16xf32>
    %45 = vector.shape_cast %44 : vector<32x16xf32> to vector<2x16x16xf32>
    %46 = vector.extract_strided_slice %31 {offsets = [0, 112], sizes = [32, 16], strides = [1, 1]} : vector<32x384xf32> to vector<32x16xf32>
    %47 = vector.shape_cast %46 : vector<32x16xf32> to vector<2x16x16xf32>
    %48 = tpu.concatenate %33, %35, %37, %39, %41, %43, %45, %47 in 0 : vector<2x16x16xf32>, vector<2x16x16xf32>, vector<2x16x16xf32>, vector<2x16x16xf32>, vector<2x16x16xf32>, vector<2x16x16xf32>, vector<2x16x16xf32>, vector<2x16x16xf32> -> vector<16x16x16xf32>
    %49 = vector.extract_strided_slice %31 {offsets = [0, 128], sizes = [32, 16], strides = [1, 1]} : vector<32x384xf32> to vector<32x16xf32>
    %50 = vector.shape_cast %49 : vector<32x16xf32> to vector<2x16x16xf32>
    %51 = vector.extract_strided_slice %31 {offsets = [0, 144], sizes = [32, 16], strides = [1, 1]} : vector<32x384xf32> to vector<32x16xf32>
    %52 = vector.shape_cast %51 : vector<32x16xf32> to vector<2x16x16xf32>
    %53 = vector.extract_strided_slice %31 {offsets = [0, 160], sizes = [32, 16], strides = [1, 1]} : vector<32x384xf32> to vector<32x16xf32>
    %54 = vector.shape_cast %53 : vector<32x16xf32> to vector<2x16x16xf32>
    %55 = vector.extract_strided_slice %31 {offsets = [0, 176], sizes = [32, 16], strides = [1, 1]} : vector<32x384xf32> to vector<32x16xf32>
    %56 = vector.shape_cast %55 : vector<32x16xf32> to vector<2x16x16xf32>
    %57 = vector.extract_strided_slice %31 {offsets = [0, 192], sizes = [32, 16], strides = [1, 1]} : vector<32x384xf32> to vector<32x16xf32>
    %58 = vector.shape_cast %57 : vector<32x16xf32> to vector<2x16x16xf32>
    %59 = vector.extract_strided_slice %31 {offsets = [0, 208], sizes = [32, 16], strides = [1, 1]} : vector<32x384xf32> to vector<32x16xf32>
    %60 = vector.shape_cast %59 : vector<32x16xf32> to vector<2x16x16xf32>
    %61 = vector.extract_strided_slice %31 {offsets = [0, 224], sizes = [32, 16], strides = [1, 1]} : vector<32x384xf32> to vector<32x16xf32>
    %62 = vector.shape_cast %61 : vector<32x16xf32> to vector<2x16x16xf32>
    %63 = vector.extract_strided_slice %31 {offsets = [0, 240], sizes = [32, 16], strides = [1, 1]} : vector<32x384xf32> to vector<32x16xf32>
    %64 = vector.shape_cast %63 : vector<32x16xf32> to vector<2x16x16xf32>
    %65 = tpu.concatenate %50, %52, %54, %56, %58, %60, %62, %64 in 0 : vector<2x16x16xf32>, vector<2x16x16xf32>, vector<2x16x16xf32>, vector<2x16x16xf32>, vector<2x16x16xf32>, vector<2x16x16xf32>, vector<2x16x16xf32>, vector<2x16x16xf32> -> vector<16x16x16xf32>
    %66 = vector.extract_strided_slice %31 {offsets = [0, 256], sizes = [32, 16], strides = [1, 1]} : vector<32x384xf32> to vector<32x16xf32>
    %67 = vector.shape_cast %66 : vector<32x16xf32> to vector<2x16x16xf32>
    %68 = vector.extract_strided_slice %31 {offsets = [0, 272], sizes = [32, 16], strides = [1, 1]} : vector<32x384xf32> to vector<32x16xf32>
    %69 = vector.shape_cast %68 : vector<32x16xf32> to vector<2x16x16xf32>
    %70 = vector.extract_strided_slice %31 {offsets = [0, 288], sizes = [32, 16], strides = [1, 1]} : vector<32x384xf32> to vector<32x16xf32>
    %71 = vector.shape_cast %70 : vector<32x16xf32> to vector<2x16x16xf32>
    %72 = vector.extract_strided_slice %31 {offsets = [0, 304], sizes = [32, 16], strides = [1, 1]} : vector<32x384xf32> to vector<32x16xf32>
    %73 = vector.shape_cast %72 : vector<32x16xf32> to vector<2x16x16xf32>
    %74 = vector.extract_strided_slice %31 {offsets = [0, 320], sizes = [32, 16], strides = [1, 1]} : vector<32x384xf32> to vector<32x16xf32>
    %75 = vector.shape_cast %74 : vector<32x16xf32> to vector<2x16x16xf32>
    %76 = vector.extract_strided_slice %31 {offsets = [0, 336], sizes = [32, 16], strides = [1, 1]} : vector<32x384xf32> to vector<32x16xf32>
    %77 = vector.shape_cast %76 : vector<32x16xf32> to vector<2x16x16xf32>
    %78 = vector.extract_strided_slice %31 {offsets = [0, 352], sizes = [32, 16], strides = [1, 1]} : vector<32x384xf32> to vector<32x16xf32>
    %79 = vector.shape_cast %78 : vector<32x16xf32> to vector<2x16x16xf32>
    %80 = vector.extract_strided_slice %31 {offsets = [0, 368], sizes = [32, 16], strides = [1, 1]} : vector<32x384xf32> to vector<32x16xf32>
    %81 = vector.shape_cast %80 : vector<32x16xf32> to vector<2x16x16xf32>
    %82 = tpu.concatenate %67, %69, %71, %73, %75, %77, %79, %81 in 0 : vector<2x16x16xf32>, vector<2x16x16xf32>, vector<2x16x16xf32>, vector<2x16x16xf32>, vector<2x16x16xf32>, vector<2x16x16xf32>, vector<2x16x16xf32>, vector<2x16x16xf32> -> vector<16x16x16xf32>
    "tpu.trace_start"() <{level = 10 : i32, message = "bqd,bkd->bqk"}> : () -> ()
    %cst_38 = arith.constant dense<0.000000e+00> : vector<16x16x16xf32>
    %83 = tpu.matmul %48, %65, %cst_38 {dimension_numbers = #tpu.dot_dimension_numbers<[2], [2], [1], [1], [0, 0, 0, 1, 1, 1], [0], [0]>} : vector<16x16x16xf32>, vector<16x16x16xf32>, vector<16x16x16xf32> -> vector<16x16x16xf32>
    "tpu.trace_stop"() : () -> ()
    %cst_39 = arith.constant dense<0xFF800000> : vector<16x16xf32>
    %84 = vector.multi_reduction <maximumf>, %83, %cst_39 [2] : vector<16x16x16xf32> to vector<16x16xf32>
    %85 = vector.shape_cast %84 : vector<16x16xf32> to vector<16x16x1xf32>
    %86 = vector.broadcast %85 : vector<16x16x1xf32> to vector<16x16x16xf32>
    %87 = arith.subf %83, %86 : vector<16x16x16xf32>
    %88 = math.exp %87 : vector<16x16x16xf32>
    %cst_40 = arith.constant dense<0.000000e+00> : vector<16x16xf32>
    %89 = vector.multi_reduction <add>, %88, %cst_40 [2] : vector<16x16x16xf32> to vector<16x16xf32>
    %90 = vector.shape_cast %89 : vector<16x16xf32> to vector<16x16x1xf32>
    %91 = vector.broadcast %90 : vector<16x16x1xf32> to vector<16x16x16xf32>
    %92 = arith.divf %88, %91 : vector<16x16x16xf32>
    "tpu.trace_start"() <{level = 10 : i32, message = "bqk,bkd->bqd"}> : () -> ()
    %cst_41 = arith.constant dense<0.000000e+00> : vector<16x16x16xf32>
    %93 = tpu.matmul %92, %82, %cst_41 {dimension_numbers = #tpu.dot_dimension_numbers<[2], [1], [1], [2], [0, 0, 0, 1, 1, 2], [0], [0]>} : vector<16x16x16xf32>, vector<16x16x16xf32>, vector<16x16x16xf32> -> vector<16x16x16xf32>
    "tpu.trace_stop"() : () -> ()
    %94 = vector.extract_strided_slice %93 {offsets = [0, 0, 0], sizes = [2, 16, 16], strides = [1, 1, 1]} : vector<16x16x16xf32> to vector<2x16x16xf32>
    %95 = vector.shape_cast %94 : vector<2x16x16xf32> to vector<32x16xf32>
    %96 = vector.extract_strided_slice %93 {offsets = [2, 0, 0], sizes = [2, 16, 16], strides = [1, 1, 1]} : vector<16x16x16xf32> to vector<2x16x16xf32>
    %97 = vector.shape_cast %96 : vector<2x16x16xf32> to vector<32x16xf32>
    %98 = vector.extract_strided_slice %93 {offsets = [4, 0, 0], sizes = [2, 16, 16], strides = [1, 1, 1]} : vector<16x16x16xf32> to vector<2x16x16xf32>
    %99 = vector.shape_cast %98 : vector<2x16x16xf32> to vector<32x16xf32>
    %100 = vector.extract_strided_slice %93 {offsets = [6, 0, 0], sizes = [2, 16, 16], strides = [1, 1, 1]} : vector<16x16x16xf32> to vector<2x16x16xf32>
    %101 = vector.shape_cast %100 : vector<2x16x16xf32> to vector<32x16xf32>
    %102 = vector.extract_strided_slice %93 {offsets = [8, 0, 0], sizes = [2, 16, 16], strides = [1, 1, 1]} : vector<16x16x16xf32> to vector<2x16x16xf32>
    %103 = vector.shape_cast %102 : vector<2x16x16xf32> to vector<32x16xf32>
    %104 = vector.extract_strided_slice %93 {offsets = [10, 0, 0], sizes = [2, 16, 16], strides = [1, 1, 1]} : vector<16x16x16xf32> to vector<2x16x16xf32>
    %105 = vector.shape_cast %104 : vector<2x16x16xf32> to vector<32x16xf32>
    %106 = vector.extract_strided_slice %93 {offsets = [12, 0, 0], sizes = [2, 16, 16], strides = [1, 1, 1]} : vector<16x16x16xf32> to vector<2x16x16xf32>
    %107 = vector.shape_cast %106 : vector<2x16x16xf32> to vector<32x16xf32>
    %108 = vector.extract_strided_slice %93 {offsets = [14, 0, 0], sizes = [2, 16, 16], strides = [1, 1, 1]} : vector<16x16x16xf32> to vector<2x16x16xf32>
    %109 = vector.shape_cast %108 : vector<2x16x16xf32> to vector<32x16xf32>
    %110 = tpu.concatenate %95, %97, %99, %101, %103, %105, %107, %109 in 1 : vector<32x16xf32>, vector<32x16xf32>, vector<32x16xf32>, vector<32x16xf32>, vector<32x16xf32>, vector<32x16xf32>, vector<32x16xf32>, vector<32x16xf32> -> vector<32x128xf32>
    %111 = arith.truncf %110 : vector<32x128xf32> to vector<32x128xbf16>
    %cst_42 = arith.constant dense<0.000000e+00> : vector<32x128xf32>
    %112 = tpu.matmul %111, %9, %cst_42 {dimension_numbers = #tpu.dot_dimension_numbers<[1], [0], [0], [1], [0, 0, 1, 1], [], []>} : vector<32x128xbf16>, vector<128x128xbf16>, vector<32x128xf32> -> vector<32x128xf32>
    %113 = arith.addf %3, %112 : vector<32x128xf32>
    %114 = vector.broadcast %11 : vector<1x128xf32> to vector<32x128xf32>
    %115 = arith.addf %113, %114 : vector<32x128xf32>
    %cst_43 = arith.constant dense<0.000000e+00> : vector<32xf32>
    %116 = vector.multi_reduction <add>, %115, %cst_43 [1] : vector<32x128xf32> to vector<32xf32>
    %117 = vector.shape_cast %116 : vector<32xf32> to vector<32x1xf32>
    %cst_44 = arith.constant 1.280000e+02 : f32
    %118 = vector.broadcast %cst_44 : f32 to vector<32x1xf32>
    %119 = arith.divf %117, %118 : vector<32x1xf32>
    %120 = vector.broadcast %119 : vector<32x1xf32> to vector<32x128xf32>
    %121 = arith.subf %115, %120 : vector<32x128xf32>
    %122 = arith.mulf %121, %121 : vector<32x128xf32>
    %cst_45 = arith.constant dense<0.000000e+00> : vector<32xf32>
    %123 = vector.multi_reduction <add>, %122, %cst_45 [1] : vector<32x128xf32> to vector<32xf32>
    %124 = vector.shape_cast %123 : vector<32xf32> to vector<32x1xf32>
    %cst_46 = arith.constant 1.280000e+02 : f32
    %125 = vector.broadcast %cst_46 : f32 to vector<32x1xf32>
    %126 = arith.divf %124, %125 : vector<32x1xf32>
    %127 = vector.broadcast %119 : vector<32x1xf32> to vector<32x128xf32>
    %128 = arith.subf %115, %127 : vector<32x128xf32>
    %cst_47 = arith.constant 9.99999974E-6 : f32
    %129 = vector.broadcast %cst_47 : f32 to vector<32x1xf32>
    %130 = arith.addf %126, %129 : vector<32x1xf32>
    %131 = math.rsqrt %130 : vector<32x1xf32>
    %132 = vector.broadcast %131 : vector<32x1xf32> to vector<32x128xf32>
    %133 = arith.mulf %128, %132 : vector<32x128xf32>
    %134 = vector.broadcast %13 : vector<1x128xf32> to vector<32x128xf32>
    %135 = arith.mulf %133, %134 : vector<32x128xf32>
    %136 = vector.broadcast %15 : vector<1x128xf32> to vector<32x128xf32>
    %137 = arith.addf %135, %136 : vector<32x128xf32>
    %138 = arith.truncf %137 : vector<32x128xf32> to vector<32x128xbf16>
    %cst_48 = arith.constant dense<0.000000e+00> : vector<32x1024xf32>
    %139 = tpu.matmul %138, %17, %cst_48 {dimension_numbers = #tpu.dot_dimension_numbers<[1], [0], [0], [1], [0, 0, 1, 1], [], []>} : vector<32x128xbf16>, vector<128x1024xbf16>, vector<32x1024xf32> -> vector<32x1024xf32>
    %140 = vector.broadcast %19 : vector<1x1024xf32> to vector<32x1024xf32>
    %141 = arith.addf %139, %140 : vector<32x1024xf32>
    %cst_49 = arith.constant 0.000000e+00 : f32
    %142 = vector.broadcast %cst_49 : f32 to vector<32x1024xf32>
    %143 = arith.maximumf %141, %142 : vector<32x1024xf32>
    %144 = arith.truncf %143 : vector<32x1024xf32> to vector<32x1024xbf16>
    %cst_50 = arith.constant dense<0.000000e+00> : vector<32x128xf32>
    %145 = tpu.matmul %144, %21, %cst_50 {dimension_numbers = #tpu.dot_dimension_numbers<[1], [0], [0], [1], [0, 0, 1, 1], [], []>} : vector<32x1024xbf16>, vector<1024x128xbf16>, vector<32x128xf32> -> vector<32x128xf32>
    %146 = vector.broadcast %23 : vector<1x128xf32> to vector<32x128xf32>
    %147 = arith.addf %145, %146 : vector<32x128xf32>
    %148 = arith.addf %137, %147 : vector<32x128xf32>
    %cst_51 = arith.constant dense<0.000000e+00> : vector<32xf32>
    %149 = vector.multi_reduction <add>, %148, %cst_51 [1] : vector<32x128xf32> to vector<32xf32>
    %150 = vector.shape_cast %149 : vector<32xf32> to vector<32x1xf32>
    %cst_52 = arith.constant 1.280000e+02 : f32
    %151 = vector.broadcast %cst_52 : f32 to vector<32x1xf32>
    %152 = arith.divf %150, %151 : vector<32x1xf32>
    %153 = vector.broadcast %152 : vector<32x1xf32> to vector<32x128xf32>
    %154 = arith.subf %148, %153 : vector<32x128xf32>
    %155 = arith.mulf %154, %154 : vector<32x128xf32>
    %cst_53 = arith.constant dense<0.000000e+00> : vector<32xf32>
    %156 = vector.multi_reduction <add>, %155, %cst_53 [1] : vector<32x128xf32> to vector<32xf32>
    %157 = vector.shape_cast %156 : vector<32xf32> to vector<32x1xf32>
    %cst_54 = arith.constant 1.280000e+02 : f32
    %158 = vector.broadcast %cst_54 : f32 to vector<32x1xf32>
    %159 = arith.divf %157, %158 : vector<32x1xf32>
    %160 = vector.broadcast %152 : vector<32x1xf32> to vector<32x128xf32>
    %161 = arith.subf %148, %160 : vector<32x128xf32>
    %cst_55 = arith.constant 9.99999974E-6 : f32
    %162 = vector.broadcast %cst_55 : f32 to vector<32x1xf32>
    %163 = arith.addf %159, %162 : vector<32x1xf32>
    %164 = math.rsqrt %163 : vector<32x1xf32>
    %165 = vector.broadcast %164 : vector<32x1xf32> to vector<32x128xf32>
    %166 = arith.mulf %161, %165 : vector<32x128xf32>
    %167 = vector.broadcast %25 : vector<1x128xf32> to vector<32x128xf32>
    %168 = arith.mulf %166, %167 : vector<32x128xf32>
    %169 = vector.broadcast %27 : vector<1x128xf32> to vector<32x128xf32>
    %170 = arith.addf %168, %169 : vector<32x128xf32>
    %c0_56 = arith.constant 0 : index
    %c0_57 = arith.constant 0 : index
    %171 = vector.load %arg17[%c0_56, %c0_57] : memref<32x128xf32, #tpu.memory_space<vmem>>, vector<32x128xf32>
    tpu.vector_store %arg17[%c0_56, %c0_57], %170 {strides = array<i32>} : memref<32x128xf32, #tpu.memory_space<vmem>>, vector<32x128xf32>,
    %c3_i32 = arith.constant 3 : i32
    %172 = arith.cmpi eq, %arg0, %c3_i32 : i32
    %173 = arith.extui %172 : i1 to i32
    %c0_i32_58 = arith.constant 0 : i32
    %174 = arith.cmpi ne, %173, %c0_i32_58 : i32
    scf.if %174 {
      %175 = vector.extract_strided_slice %170 {offsets = [0, 0], sizes = [16, 128], strides = [1, 1]} : vector<32x128xf32> to vector<16x128xf32>
      %c0_59 = arith.constant 0 : index
      %c0_60 = arith.constant 0 : index
      %176 = vector.load %arg16[%c0_59, %c0_60] : memref<16x256xf32, #tpu.memory_space<vmem>>, vector<16x128xf32>
      tpu.vector_store %arg16[%c0_59, %c0_60], %175 {strides = array<i32>} : memref<16x256xf32, #tpu.memory_space<vmem>>, vector<16x128xf32>,
      %177 = vector.extract_strided_slice %170 {offsets = [16, 0], sizes = [16, 128], strides = [1, 1]} : vector<32x128xf32> to vector<16x128xf32>
      %c0_61 = arith.constant 0 : index
      %c128 = arith.constant 128 : index
      %178 = vector.load %arg16[%c0_61, %c128] : memref<16x256xf32, #tpu.memory_space<vmem>>, vector<16x128xf32>
      tpu.vector_store %arg16[%c0_61, %c128], %177 {strides = array<i32>} : memref<16x256xf32, #tpu.memory_space<vmem>>, vector<16x128xf32>,
    } else {
    }
    return
  }
  func.func @transform_0(%arg0: i32) -> (i32, i32) {
    %c0_i32 = arith.constant 0 : i32
    %c0_i32_0 = arith.constant 0 : i32
    %c0_i32_1 = arith.constant 0 : i32
    return %c0_i32, %c0_i32_0 : i32, i32
  }
  func.func @transform_1(%arg0: i32) -> (i32, i32) {
    %c0_i32 = arith.constant 0 : i32
    %c0_i32_0 = arith.constant 0 : i32
    %c0_i32_1 = arith.constant 0 : i32
    return %c0_i32, %c0_i32_0 : i32, i32
  }
  func.func @transform_2(%arg0: i32) -> (i32, i32) {
    %c0_i32 = arith.constant 0 : i32
    %c0_i32_0 = arith.constant 0 : i32
    %c0_i32_1 = arith.constant 0 : i32
    return %c0_i32, %c0_i32_0 : i32, i32
  }
  func.func @transform_3(%arg0: i32) -> (i32, i32, i32) {
    %c0_i32 = arith.constant 0 : i32
    %c0_i32_0 = arith.constant 0 : i32
    %c0_i32_1 = arith.constant 0 : i32
    return %arg0, %c0_i32, %c0_i32_0 : i32, i32, i32
  }
  func.func @transform_4(%arg0: i32) -> (i32, i32, i32) {
    %c0_i32 = arith.constant 0 : i32
    %c0_i32_0 = arith.constant 0 : i32
    %c0_i32_1 = arith.constant 0 : i32
    return %arg0, %c0_i32, %c0_i32_0 : i32, i32, i32
  }
  func.func @transform_5(%arg0: i32) -> (i32, i32, i32) {
    %c0_i32 = arith.constant 0 : i32
    %c0_i32_0 = arith.constant 0 : i32
    %c0_i32_1 = arith.constant 0 : i32
    return %arg0, %c0_i32, %c0_i32_0 : i32, i32, i32
  }
  func.func @transform_6(%arg0: i32) -> (i32, i32, i32) {
    %c0_i32 = arith.constant 0 : i32
    %c0_i32_0 = arith.constant 0 : i32
    %c0_i32_1 = arith.constant 0 : i32
    return %arg0, %c0_i32, %c0_i32_0 : i32, i32, i32
  }
  func.func @transform_7(%arg0: i32) -> (i32, i32, i32) {
    %c0_i32 = arith.constant 0 : i32
    %c0_i32_0 = arith.constant 0 : i32
    %c0_i32_1 = arith.constant 0 : i32
    return %arg0, %c0_i32, %c0_i32_0 : i32, i32, i32
  }
  func.func @transform_8(%arg0: i32) -> (i32, i32, i32) {
    %c0_i32 = arith.constant 0 : i32
    %c0_i32_0 = arith.constant 0 : i32
    %c0_i32_1 = arith.constant 0 : i32
    return %arg0, %c0_i32, %c0_i32_0 : i32, i32, i32
  }
  func.func @transform_9(%arg0: i32) -> (i32, i32, i32) {
    %c0_i32 = arith.constant 0 : i32
    %c0_i32_0 = arith.constant 0 : i32
    %c0_i32_1 = arith.constant 0 : i32
    return %arg0, %c0_i32, %c0_i32_0 : i32, i32, i32
  }
  func.func @transform_10(%arg0: i32) -> (i32, i32, i32) {
    %c0_i32 = arith.constant 0 : i32
    %c0_i32_0 = arith.constant 0 : i32
    %c0_i32_1 = arith.constant 0 : i32
    return %arg0, %c0_i32, %c0_i32_0 : i32, i32, i32
  }
  func.func @transform_11(%arg0: i32) -> (i32, i32, i32) {
    %c0_i32 = arith.constant 0 : i32
    %c0_i32_0 = arith.constant 0 : i32
    %c0_i32_1 = arith.constant 0 : i32
    return %arg0, %c0_i32, %c0_i32_0 : i32, i32, i32
  }
  func.func @transform_12(%arg0: i32) -> (i32, i32, i32) {
    %c0_i32 = arith.constant 0 : i32
    %c0_i32_0 = arith.constant 0 : i32
    %c0_i32_1 = arith.constant 0 : i32
    return %arg0, %c0_i32, %c0_i32_0 : i32, i32, i32
  }
  func.func @transform_13(%arg0: i32) -> (i32, i32, i32) {
    %c0_i32 = arith.constant 0 : i32
    %c0_i32_0 = arith.constant 0 : i32
    %c0_i32_1 = arith.constant 0 : i32
    return %arg0, %c0_i32, %c0_i32_0 : i32, i32, i32
  }
  func.func @transform_14(%arg0: i32) -> (i32, i32, i32) {
    %c0_i32 = arith.constant 0 : i32
    %c0_i32_0 = arith.constant 0 : i32
    %c0_i32_1 = arith.constant 0 : i32
    return %arg0, %c0_i32, %c0_i32_0 : i32, i32, i32
  }
  func.func @transform_15(%arg0: i32) -> (i32, i32) {
    %c0_i32 = arith.constant 0 : i32
    %c0_i32_0 = arith.constant 0 : i32
    %c0_i32_1 = arith.constant 0 : i32
    return %c0_i32, %c0_i32_0 : i32, i32
  }
}

</mosaic_0001>

<llo_original>
// kernel: tpu_custom_call.1
$region0: #{tpu_custom_call.1}
  #allocation0 [shape = 'u32[]', space=smem, size = 0x4, offset = 0x4, fixed_abs, tag = 'smem constant byte address 0x4 - core index']
  #allocation1 [shape = 'u32[72,128]{1,0:T(1,128)}', space=vmem, size = 0x9000, scoped, tag = 'internal scratch']
  #allocation2 [shape = 'f32[32,128]{1,0:T(8,128)}', space=vmem, size = 0x4000, scoped, tag = 'scratch operand']
  %s0 = inlined_call_operand.hbm [shape: f32[32,64], index: 0, kind: input, shape index: {}]
  %s1 = inlined_call_operand.hbm [shape: bf16[64,128], index: 1, kind: input, shape index: {}]
  %s2 = inlined_call_operand.hbm [shape: f32[32,128], index: 2, kind: input, shape index: {}]
  %s3 = inlined_call_operand.hbm [shape: bf16[4,128,384], index: 3, kind: input, shape index: {}]
  %s4 = inlined_call_operand.hbm [shape: f32[4,1,384], index: 4, kind: input, shape index: {}]
  %s5 = inlined_call_operand.hbm [shape: bf16[4,128,128], index: 5, kind: input, shape index: {}]
  %s6 = inlined_call_operand.vmem [shape: f32[4,1,128], index: 6, kind: input, shape index: {}]
  %s7 = inlined_call_operand.hbm [shape: f32[4,1,128], index: 7, kind: input, shape index: {}]
  %s8 = inlined_call_operand.hbm [shape: f32[4,1,128], index: 8, kind: input, shape index: {}]
  %s9 = inlined_call_operand.hbm [shape: bf16[4,128,1024], index: 9, kind: input, shape index: {}]
  %s10 = inlined_call_operand.hbm [shape: f32[4,1,1024], index: 10, kind: input, shape index: {}]
  %s11 = inlined_call_operand.hbm [shape: bf16[4,1024,128], index: 11, kind: input, shape index: {}]
  %s12 = inlined_call_operand.vmem [shape: f32[4,1,128], index: 12, kind: input, shape index: {}]
  %s13 = inlined_call_operand.vmem [shape: f32[4,1,128], index: 13, kind: input, shape index: {}]
  %s14 = inlined_call_operand.hbm [shape: f32[4,1,128], index: 14, kind: input, shape index: {}]
  %s15 = inlined_call_operand.hbm [shape: f32[16,256], index: 15, kind: output, shape index: {}]
  %s16 = sld [smem:[#allocation0]]
  $region149: #{tpu_custom_call.1} parent=0
    _
  %s18 = ssub.s32 1, %s16
  %s19 = scalar_select 0, %s18, %s16
  $region1: #{tpu_custom_call.1} parent=0
    #allocation3 [shape = 'u8[16384]{0}', space=vmem, size = 0x4000, scoped, tag = 'input window, operand 0, single buffered']
    #allocation4 [shape = 's32[2]{0}', space=sflag, size = 0x8, scoped, tag = 'scoped memory for tpu_custom_call.1']
    #allocation5 [shape = 's32[2]{0}', space=sflag, size = 0x8, scoped, tag = 'scoped memory for tpu_custom_call.1']
    #allocation6 [shape = 'u8[16384]{0}', space=vmem, size = 0x4000, scoped, tag = 'input window, operand 1, single buffered']
    #allocation7 [shape = 's32[1]{0}', space=sflag, size = 0x4, scoped, tag = 'scoped memory for tpu_custom_call.1']
    #allocation8 [shape = 'u8[16384]{0}', space=vmem, size = 0x4000, scoped, tag = 'input window, operand 2, single buffered']
    #allocation9 [shape = 'u8[196608]{0}', space=vmem, size = 0x30000, scoped, tag = 'input window, operand 3']
    #allocation10 [shape = 's32[2]{0}', space=sflag, size = 0x8, scoped, tag = 'scoped memory for tpu_custom_call.1']
    #allocation11 [shape = 'u8[3072]{0}', space=vmem, size = 0xc00, scoped, tag = 'input window, operand 4']
    #allocation12 [shape = 'u8[65536]{0}', space=vmem, size = 0x10000, scoped, tag = 'input window, operand 5']
    #allocation13 [shape = 's32[2]{0}', space=sflag, size = 0x8, scoped, tag = 'scoped memory for tpu_custom_call.1']
    #allocation14 [shape = 'u8[1024]{0}', space=vmem, size = 0x400, scoped, tag = 'input window, operand 7']
    #allocation15 [shape = 'u8[1024]{0}', space=vmem, size = 0x400, scoped, tag = 'input window, operand 8']
    #allocation16 [shape = 's32[2]{0}', space=sflag, size = 0x8, scoped, tag = 'scoped memory for tpu_custom_call.1']
    #allocation17 [shape = 'u8[524288]{0}', space=vmem, size = 0x80000, scoped, tag = 'input window, operand 9']
    #allocation18 [shape = 'u8[8192]{0}', space=vmem, size = 0x2000, scoped, tag = 'input window, operand 10']
    #allocation19 [shape = 's32[2]{0}', space=sflag, size = 0x8, scoped, tag = 'scoped memory for tpu_custom_call.1']
    #allocation20 [shape = 'u8[524288]{0}', space=vmem, size = 0x80000, scoped, tag = 'input window, operand 11']
    #allocation21 [shape = 'u8[1024]{0}', space=vmem, size = 0x400, scoped, tag = 'input window, operand 14']
    #allocation22 [shape = 's32[2]{0}', space=sflag, size = 0x8, scoped, tag = 'scoped memory for tpu_custom_call.1']
    #allocation23 [shape = 'u8[16384]{0}', space=vmem, size = 0x4000, scoped, tag = 'output window, operand 0, single buffered']
    %20 = vsyncpa [#allocation4], 0
    %21 = vsyncpa [#allocation7], 0
    %22 = vsyncpa [#allocation10], 0
    %s23 = scalar_lea.sflag [#allocation10], 1
    %24 = vsyncpa %s23, 0
    %25 = vsyncpa [#allocation13], 0
    %s26 = scalar_lea.sflag [#allocation13], 1
    %27 = vsyncpa %s26, 0
    %28 = vsyncpa [#allocation16], 0
    %s29 = scalar_lea.sflag [#allocation16], 1
    %30 = vsyncpa %s29, 0
    %31 = vsyncpa [#allocation19], 0
    %s32 = scalar_lea.sflag [#allocation19], 1
    %33 = vsyncpa %s32, 0
    %34 = vsyncpa [#allocation22], 0
    %s35 = scalar_lea.sflag [#allocation22], 1
    %36 = vsyncpa %s35, 0
    %37 = vsyncpa [#allocation5], 0
    loop: start=0, step=1, limit=6
    $region2: #{tpu_custom_call.1} parent=1 // loop_pre_header
      _
    $region3: #{tpu_custom_call.1} parent=1 // loop_header
      %s39 = sphi 0, %s43
      %p40 = scmp.ge.s32.totalorder %s39, 6
      %s47 = sphi 0, %s47
      %s49 = sphi 0, %s47
      %s50 = sphi 0, %s49
      %s64 = sphi 0, %s50
      %s68 = sphi 0, %s68
      %s70 = sphi 0, %s68
      %s71 = sphi 0, %s70
      %s85 = sphi 0, %s71
      %s89 = sphi 0, %s89
      %s91 = sphi 0, %s89
      %s92 = sphi 0, %s91
      %s106 = sphi 0, %s92
      %s112 = sphi 0, %s114
      %s115 = sphi 0, %s112
      %s116 = sphi 0, %s115
      %s132 = sphi 0, %s116
      %s138 = sphi 0, %s140
      %s141 = sphi 0, %s138
      %s142 = sphi 0, %s141
      %s158 = sphi 0, %s142
      %s164 = sphi 0, %s166
      %s167 = sphi 0, %s164
      %s168 = sphi 0, %s167
      %s184 = sphi 0, %s168
      %s190 = sphi 0, %s192
      %s193 = sphi 0, %s190
      %s194 = sphi 0, %s193
      %s210 = sphi 0, %s194
      %s216 = sphi 0, %s218
      %s219 = sphi 0, %s216
      %s220 = sphi 0, %s219
      %s236 = sphi 0, %s220
      %s242 = sphi 0, %s244
      %s245 = sphi 0, %s242
      %s246 = sphi 0, %s245
      %s262 = sphi 0, %s246
      %s268 = sphi 0, %s270
      %s271 = sphi 0, %s268
      %s272 = sphi 0, %s271
      %s288 = sphi 0, %s272
      %s294 = sphi 0, %s296
      %s297 = sphi 0, %s294
      %s298 = sphi 0, %s297
      %s314 = sphi 0, %s298
      %s320 = sphi 0, %s322
      %s323 = sphi 0, %s320
      %s324 = sphi 0, %s323
      %s340 = sphi 0, %s324
      %s346 = sphi 0, %s348
      %s349 = sphi 0, %s346
      %s350 = sphi 0, %s349
      %s366 = sphi 0, %s350
      %s372 = sphi 0, %s374
      %s375 = sphi 0, %s372
      %s376 = sphi 0, %s375
      %s392 = sphi 0, %s376
      %s398 = sphi 0, %s400
      %s401 = sphi 0, %s398
      %s402 = sphi 0, %s401
      %s418 = sphi 0, %s402
      %s422 = sphi 0, %s422
      %s424 = sphi 0, %s422
      %s425 = sphi 0, %s424
      %s439 = sphi 0, %s425
    $region4: #{tpu_custom_call.1} parent=1 // loop_header_branch
      %42 = sbr.rel (%p40) target = $region8
    $region5: #{tpu_custom_call.1} parent=1 // loop_body
      %s44 = ssub.s32 %s39, 1
      %s45 = ssub.s32 %s39, 2
      %s46 = sadd.s32 %s39, 1
      %s48 = sadd.s32 %s47, 1
      %p51 = scmp.eq.s32.totalorder %s39, 3
      %p52 = scmp.ne.s32.totalorder %s47, %s49
      %p53 = scmp.eq.s32.totalorder %s39, 0
      %p54 = por %p52, %p53
      %p55 = scmp.ne.s32.totalorder %s47, %s49
      %p56 = scmp.eq.s32.totalorder %s44, 3
      %p57 = por %p55, %p56
      %p58 = scmp.ne.s32.totalorder %s49, %s50
      %p59 = scmp.eq.s32.totalorder %s44, 0
      %p60 = por %p58, %p59
      %p61 = scmp.ne.s32.totalorder %s49, %s50
      %p62 = scmp.eq.s32.totalorder %s45, 3
      %p63 = por %p61, %p62
      %p65 = scmp.ne.s32.totalorder %s50, %s64
      %p66 = scmp.eq.s32.totalorder %s45, 0
      %p67 = por %p65, %p66
      %s69 = sadd.s32 %s68, 1
      %p72 = scmp.eq.s32.totalorder %s39, 3
      %p73 = scmp.ne.s32.totalorder %s68, %s70
      %p74 = scmp.eq.s32.totalorder %s39, 0
      %p75 = por %p73, %p74
      %p76 = scmp.ne.s32.totalorder %s68, %s70
      %p77 = scmp.eq.s32.totalorder %s44, 3
      %p78 = por %p76, %p77
      %p79 = scmp.ne.s32.totalorder %s70, %s71
      %p80 = scmp.eq.s32.totalorder %s44, 0
      %p81 = por %p79, %p80
      %p82 = scmp.ne.s32.totalorder %s70, %s71
      %p83 = scmp.eq.s32.totalorder %s45, 3
      %p84 = por %p82, %p83
      %p86 = scmp.ne.s32.totalorder %s71, %s85
      %p87 = scmp.eq.s32.totalorder %s45, 0
      %p88 = por %p86, %p87
      %s90 = sadd.s32 %s89, 1
      %p93 = scmp.eq.s32.totalorder %s39, 3
      %p94 = scmp.ne.s32.totalorder %s89, %s91
      %p95 = scmp.eq.s32.totalorder %s39, 0
      %p96 = por %p94, %p95
      %p97 = scmp.ne.s32.totalorder %s89, %s91
      %p98 = scmp.eq.s32.totalorder %s44, 3
      %p99 = por %p97, %p98
      %p100 = scmp.ne.s32.totalorder %s91, %s92
      %p101 = scmp.eq.s32.totalorder %s44, 0
      %p102 = por %p100, %p101
      %p103 = scmp.ne.s32.totalorder %s91, %s92
      %p104 = scmp.eq.s32.totalorder %s45, 3
      %p105 = por %p103, %p104
      %p107 = scmp.ne.s32.totalorder %s92, %s106
      %p108 = scmp.eq.s32.totalorder %s45, 0
      %p109 = por %p107, %p108
      %s110 = ssub.s32 %s39, %s46
      %p111 = scmp.eq.s32.totalorder %s110, 0
      %s113 = sadd.s32 %s112, 1
      %s114 = scalar_select %p111, %s112, %s113
      %p117 = pneg %p111
      %p118 = scmp.eq.s32.totalorder %s39, 3
      %p119 = por %p117, %p118
      %p120 = scmp.ne.s32.totalorder %s112, %s115
      %p121 = scmp.eq.s32.totalorder %s39, 0
      %p122 = por %p120, %p121
      %p123 = scmp.ne.s32.totalorder %s112, %s115
      %p124 = scmp.eq.s32.totalorder %s44, 3
      %p125 = por %p123, %p124
      %p126 = scmp.ne.s32.totalorder %s115, %s116
      %p127 = scmp.eq.s32.totalorder %s44, 0
      %p128 = por %p126, %p127
      %p129 = scmp.ne.s32.totalorder %s115, %s116
      %p130 = scmp.eq.s32.totalorder %s45, 3
      %p131 = por %p129, %p130
      %p133 = scmp.ne.s32.totalorder %s116, %s132
      %p134 = scmp.eq.s32.totalorder %s45, 0
      %p135 = por %p133, %p134
      %s136 = ssub.s32 %s39, %s46
      %p137 = scmp.eq.s32.totalorder %s136, 0
      %s139 = sadd.s32 %s138, 1
      %s140 = scalar_select %p137, %s138, %s139
      %p143 = pneg %p137
      %p144 = scmp.eq.s32.totalorder %s39, 3
      %p145 = por %p143, %p144
      %p146 = scmp.ne.s32.totalorder %s138, %s141
      %p147 = scmp.eq.s32.totalorder %s39, 0
      %p148 = por %p146, %p147
      %p149 = scmp.ne.s32.totalorder %s138, %s141
      %p150 = scmp.eq.s32.totalorder %s44, 3
      %p151 = por %p149, %p150
      %p152 = scmp.ne.s32.totalorder %s141, %s142
      %p153 = scmp.eq.s32.totalorder %s44, 0
      %p154 = por %p152, %p153
      %p155 = scmp.ne.s32.totalorder %s141, %s142
      %p156 = scmp.eq.s32.totalorder %s45, 3
      %p157 = por %p155, %p156
      %p159 = scmp.ne.s32.totalorder %s142, %s158
      %p160 = scmp.eq.s32.totalorder %s45, 0
      %p161 = por %p159, %p160
      %s162 = ssub.s32 %s39, %s46
      %p163 = scmp.eq.s32.totalorder %s162, 0
      %s165 = sadd.s32 %s164, 1
      %s166 = scalar_select %p163, %s164, %s165
      %p169 = pneg %p163
      %p170 = scmp.eq.s32.totalorder %s39, 3
      %p171 = por %p169, %p170
      %p172 = scmp.ne.s32.totalorder %s164, %s167
      %p173 = scmp.eq.s32.totalorder %s39, 0
      %p174 = por %p172, %p173
      %p175 = scmp.ne.s32.totalorder %s164, %s167
      %p176 = scmp.eq.s32.totalorder %s44, 3
      %p177 = por %p175, %p176
      %p178 = scmp.ne.s32.totalorder %s167, %s168
      %p179 = scmp.eq.s32.totalorder %s44, 0
      %p180 = por %p178, %p179
      %p181 = scmp.ne.s32.totalorder %s167, %s168
      %p182 = scmp.eq.s32.totalorder %s45, 3
      %p183 = por %p181, %p182
      %p185 = scmp.ne.s32.totalorder %s168, %s184
      %p186 = scmp.eq.s32.totalorder %s45, 0
      %p187 = por %p185, %p186
      %s188 = ssub.s32 %s39, %s46
      %p189 = scmp.eq.s32.totalorder %s188, 0
      %s191 = sadd.s32 %s190, 1
      %s192 = scalar_select %p189, %s190, %s191
      %p195 = pneg %p189
      %p196 = scmp.eq.s32.totalorder %s39, 3
      %p197 = por %p195, %p196
      %p198 = scmp.ne.s32.totalorder %s190, %s193
      %p199 = scmp.eq.s32.totalorder %s39, 0
      %p200 = por %p198, %p199
      %p201 = scmp.ne.s32.totalorder %s190, %s193
      %p202 = scmp.eq.s32.totalorder %s44, 3
      %p203 = por %p201, %p202
      %p204 = scmp.ne.s32.totalorder %s193, %s194
      %p205 = scmp.eq.s32.totalorder %s44, 0
      %p206 = por %p204, %p205
      %p207 = scmp.ne.s32.totalorder %s193, %s194
      %p208 = scmp.eq.s32.totalorder %s45, 3
      %p209 = por %p207, %p208
      %p211 = scmp.ne.s32.totalorder %s194, %s210
      %p212 = scmp.eq.s32.totalorder %s45, 0
      %p213 = por %p211, %p212
      %s214 = ssub.s32 %s39, %s46
      %p215 = scmp.eq.s32.totalorder %s214, 0
      %s217 = sadd.s32 %s216, 1
      %s218 = scalar_select %p215, %s216, %s217
      %p221 = pneg %p215
      %p222 = scmp.eq.s32.totalorder %s39, 3
      %p223 = por %p221, %p222
      %p224 = scmp.ne.s32.totalorder %s216, %s219
      %p225 = scmp.eq.s32.totalorder %s39, 0
      %p226 = por %p224, %p225
      %p227 = scmp.ne.s32.totalorder %s216, %s219
      %p228 = scmp.eq.s32.totalorder %s44, 3
      %p229 = por %p227, %p228
      %p230 = scmp.ne.s32.totalorder %s219, %s220
      %p231 = scmp.eq.s32.totalorder %s44, 0
      %p232 = por %p230, %p231
      %p233 = scmp.ne.s32.totalorder %s219, %s220
      %p234 = scmp.eq.s32.totalorder %s45, 3
      %p235 = por %p233, %p234
      %p237 = scmp.ne.s32.totalorder %s220, %s236
      %p238 = scmp.eq.s32.totalorder %s45, 0
      %p239 = por %p237, %p238
      %s240 = ssub.s32 %s39, %s46
      %p241 = scmp.eq.s32.totalorder %s240, 0
      %s243 = sadd.s32 %s242, 1
      %s244 = scalar_select %p241, %s242, %s243
      %p247 = pneg %p241
      %p248 = scmp.eq.s32.totalorder %s39, 3
      %p249 = por %p247, %p248
      %p250 = scmp.ne.s32.totalorder %s242, %s245
      %p251 = scmp.eq.s32.totalorder %s39, 0
      %p252 = por %p250, %p251
      %p253 = scmp.ne.s32.totalorder %s242, %s245
      %p254 = scmp.eq.s32.totalorder %s44, 3
      %p255 = por %p253, %p254
      %p256 = scmp.ne.s32.totalorder %s245, %s246
      %p257 = scmp.eq.s32.totalorder %s44, 0
      %p258 = por %p256, %p257
      %p259 = scmp.ne.s32.totalorder %s245, %s246
      %p260 = scmp.eq.s32.totalorder %s45, 3
      %p261 = por %p259, %p260
      %p263 = scmp.ne.s32.totalorder %s246, %s262
      %p264 = scmp.eq.s32.totalorder %s45, 0
      %p265 = por %p263, %p264
      %s266 = ssub.s32 %s39, %s46
      %p267 = scmp.eq.s32.totalorder %s266, 0
      %s269 = sadd.s32 %s268, 1
      %s270 = scalar_select %p267, %s268, %s269
      %p273 = pneg %p267
      %p274 = scmp.eq.s32.totalorder %s39, 3
      %p275 = por %p273, %p274
      %p276 = scmp.ne.s32.totalorder %s268, %s271
      %p277 = scmp.eq.s32.totalorder %s39, 0
      %p278 = por %p276, %p277
      %p279 = scmp.ne.s32.totalorder %s268, %s271
      %p280 = scmp.eq.s32.totalorder %s44, 3
      %p281 = por %p279, %p280
      %p282 = scmp.ne.s32.totalorder %s271, %s272
      %p283 = scmp.eq.s32.totalorder %s44, 0
      %p284 = por %p282, %p283
      %p285 = scmp.ne.s32.totalorder %s271, %s272
      %p286 = scmp.eq.s32.totalorder %s45, 3
      %p287 = por %p285, %p286
      %p289 = scmp.ne.s32.totalorder %s272, %s288
      %p290 = scmp.eq.s32.totalorder %s45, 0
      %p291 = por %p289, %p290
      %s292 = ssub.s32 %s39, %s46
      %p293 = scmp.eq.s32.totalorder %s292, 0
      %s295 = sadd.s32 %s294, 1
      %s296 = scalar_select %p293, %s294, %s295
      %p299 = pneg %p293
      %p300 = scmp.eq.s32.totalorder %s39, 3
      %p301 = por %p299, %p300
      %p302 = scmp.ne.s32.totalorder %s294, %s297
      %p303 = scmp.eq.s32.totalorder %s39, 0
      %p304 = por %p302, %p303
      %p305 = scmp.ne.s32.totalorder %s294, %s297
      %p306 = scmp.eq.s32.totalorder %s44, 3
      %p307 = por %p305, %p306
      %p308 = scmp.ne.s32.totalorder %s297, %s298
      %p309 = scmp.eq.s32.totalorder %s44, 0
      %p310 = por %p308, %p309
      %p311 = scmp.ne.s32.totalorder %s297, %s298
      %p312 = scmp.eq.s32.totalorder %s45, 3
      %p313 = por %p311, %p312
      %p315 = scmp.ne.s32.totalorder %s298, %s314
      %p316 = scmp.eq.s32.totalorder %s45, 0
      %p317 = por %p315, %p316
      %s318 = ssub.s32 %s39, %s46
      %p319 = scmp.eq.s32.totalorder %s318, 0
      %s321 = sadd.s32 %s320, 1
      %s322 = scalar_select %p319, %s320, %s321
      %p325 = pneg %p319
      %p326 = scmp.eq.s32.totalorder %s39, 3
      %p327 = por %p325, %p326
      %p328 = scmp.ne.s32.totalorder %s320, %s323
      %p329 = scmp.eq.s32.totalorder %s39, 0
      %p330 = por %p328, %p329
      %p331 = scmp.ne.s32.totalorder %s320, %s323
      %p332 = scmp.eq.s32.totalorder %s44, 3
      %p333 = por %p331, %p332
      %p334 = scmp.ne.s32.totalorder %s323, %s324
      %p335 = scmp.eq.s32.totalorder %s44, 0
      %p336 = por %p334, %p335
      %p337 = scmp.ne.s32.totalorder %s323, %s324
      %p338 = scmp.eq.s32.totalorder %s45, 3
      %p339 = por %p337, %p338
      %p341 = scmp.ne.s32.totalorder %s324, %s340
      %p342 = scmp.eq.s32.totalorder %s45, 0
      %p343 = por %p341, %p342
      %s344 = ssub.s32 %s39, %s46
      %p345 = scmp.eq.s32.totalorder %s344, 0
      %s347 = sadd.s32 %s346, 1
      %s348 = scalar_select %p345, %s346, %s347
      %p351 = pneg %p345
      %p352 = scmp.eq.s32.totalorder %s39, 3
      %p353 = por %p351, %p352
      %p354 = scmp.ne.s32.totalorder %s346, %s349
      %p355 = scmp.eq.s32.totalorder %s39, 0
      %p356 = por %p354, %p355
      %p357 = scmp.ne.s32.totalorder %s346, %s349
      %p358 = scmp.eq.s32.totalorder %s44, 3
      %p359 = por %p357, %p358
      %p360 = scmp.ne.s32.totalorder %s349, %s350
      %p361 = scmp.eq.s32.totalorder %s44, 0
      %p362 = por %p360, %p361
      %p363 = scmp.ne.s32.totalorder %s349, %s350
      %p364 = scmp.eq.s32.totalorder %s45, 3
      %p365 = por %p363, %p364
      %p367 = scmp.ne.s32.totalorder %s350, %s366
      %p368 = scmp.eq.s32.totalorder %s45, 0
      %p369 = por %p367, %p368
      %s370 = ssub.s32 %s39, %s46
      %p371 = scmp.eq.s32.totalorder %s370, 0
      %s373 = sadd.s32 %s372, 1
      %s374 = scalar_select %p371, %s372, %s373
      %p377 = pneg %p371
      %p378 = scmp.eq.s32.totalorder %s39, 3
      %p379 = por %p377, %p378
      %p380 = scmp.ne.s32.totalorder %s372, %s375
      %p381 = scmp.eq.s32.totalorder %s39, 0
      %p382 = por %p380, %p381
      %p383 = scmp.ne.s32.totalorder %s372, %s375
      %p384 = scmp.eq.s32.totalorder %s44, 3
      %p385 = por %p383, %p384
      %p386 = scmp.ne.s32.totalorder %s375, %s376
      %p387 = scmp.eq.s32.totalorder %s44, 0
      %p388 = por %p386, %p387
      %p389 = scmp.ne.s32.totalorder %s375, %s376
      %p390 = scmp.eq.s32.totalorder %s45, 3
      %p391 = por %p389, %p390
      %p393 = scmp.ne.s32.totalorder %s376, %s392
      %p394 = scmp.eq.s32.totalorder %s45, 0
      %p395 = por %p393, %p394
      %s396 = ssub.s32 %s39, %s46
      %p397 = scmp.eq.s32.totalorder %s396, 0
      %s399 = sadd.s32 %s398, 1
      %s400 = scalar_select %p397, %s398, %s399
      %p403 = pneg %p397
      %p404 = scmp.eq.s32.totalorder %s39, 3
      %p405 = por %p403, %p404
      %p406 = scmp.ne.s32.totalorder %s398, %s401
      %p407 = scmp.eq.s32.totalorder %s39, 0
      %p408 = por %p406, %p407
      %p409 = scmp.ne.s32.totalorder %s398, %s401
      %p410 = scmp.eq.s32.totalorder %s44, 3
      %p411 = por %p409, %p410
      %p412 = scmp.ne.s32.totalorder %s401, %s402
      %p413 = scmp.eq.s32.totalorder %s44, 0
      %p414 = por %p412, %p413
      %p415 = scmp.ne.s32.totalorder %s401, %s402
      %p416 = scmp.eq.s32.totalorder %s45, 3
      %p417 = por %p415, %p416
      %p419 = scmp.ne.s32.totalorder %s402, %s418
      %p420 = scmp.eq.s32.totalorder %s45, 0
      %p421 = por %p419, %p420
      %s423 = sadd.s32 %s422, 1
      %p426 = scmp.eq.s32.totalorder %s39, 3
      %p427 = scmp.ne.s32.totalorder %s422, %s424
      %p428 = scmp.eq.s32.totalorder %s39, 0
      %p429 = por %p427, %p428
      %p430 = scmp.ne.s32.totalorder %s422, %s424
      %p431 = scmp.eq.s32.totalorder %s44, 3
      %p432 = por %p430, %p431
      %p433 = scmp.ne.s32.totalorder %s424, %s425
      %p434 = scmp.eq.s32.totalorder %s44, 0
      %p435 = por %p433, %p434
      %p436 = scmp.ne.s32.totalorder %s424, %s425
      %p437 = scmp.eq.s32.totalorder %s45, 3
      %p438 = por %p436, %p437
      %p440 = scmp.ne.s32.totalorder %s425, %s439
      %p441 = scmp.eq.s32.totalorder %s45, 0
      %p442 = por %p440, %p441
      %p443 = scmp.le.s32.totalorder 1, %s39
      %p444 = scmp.lt.s32.totalorder %s39, 5
      %p445 = pnand %p443, %p444
      %p446 = pneg %p445
      // Predicated region
      $region9: #{tpu_custom_call.1} parent=5 // pred_check
        _
      $region10: #{tpu_custom_call.1} parent=5 // pred_check_branch
        %448 = sbr.rel (%p445) target = $region12
      $region11: #{tpu_custom_call.1} parent=5 // pred_region
        %s449 = ssub.s32 %s39, 1
        // Predicated region
        $region13: #{tpu_custom_call.1} parent=11 // pred_check
          %p450 = pneg %p60
        $region14: #{tpu_custom_call.1} parent=11 // pred_check_branch
          %452 = sbr.rel (%p450) target = $region16
        $region15: #{tpu_custom_call.1} parent=11 // pred_region
          %454 = vsyncadd [#allocation4], 0
          %s455 = sshll.u32 %s0, 4
          %s456 = int_to_ptr.hbm [resolvable:$true] %s455
          %s457 = sshll.u32 [#allocation3], 4
          %s458 = int_to_ptr.vmem [resolvable:$true] %s457
          %463 = dma.hbm_to_vmem [thread:$0]  %s456, 512, %s458, [#allocation4], 128, 128, 8
        $region16: #{tpu_custom_call.1} parent=11 // pred_fallthru
          _
        // Predicated region
        $region17: #{tpu_custom_call.1} parent=11 // pred_check
          %p464 = pneg %p81
        $region18: #{tpu_custom_call.1} parent=11 // pred_check_branch
          %466 = sbr.rel (%p464) target = $region20
        $region19: #{tpu_custom_call.1} parent=11 // pred_region
          %468 = vsyncadd [#allocation7], 0
          %s469 = sshll.u32 %s1, 4
          %s470 = int_to_ptr.hbm [resolvable:$true] %s469
          %s471 = sshll.u32 [#allocation6], 4
          %s472 = int_to_ptr.vmem [resolvable:$true] %s471
          %477 = dma.hbm_to_vmem [thread:$0]  %s470, 512, %s472, [#allocation7], 64, 64, 4
        $region20: #{tpu_custom_call.1} parent=11 // pred_fallthru
          _
        // Predicated region
        $region21: #{tpu_custom_call.1} parent=11 // pred_check
          %p478 = pneg %p102
        $region22: #{tpu_custom_call.1} parent=11 // pred_check_branch
          %480 = sbr.rel (%p478) target = $region24
        $region23: #{tpu_custom_call.1} parent=11 // pred_region
          %482 = vsyncadd [#allocation7], 0
          %s483 = sshll.u32 %s2, 4
          %s484 = int_to_ptr.hbm [resolvable:$true] %s483
          %s485 = sshll.u32 [#allocation8], 4
          %s486 = int_to_ptr.vmem [resolvable:$true] %s485
          %491 = dma.hbm_to_vmem [thread:$0]  %s484, 512, %s486, [#allocation7], 128, 128, 8
        $region24: #{tpu_custom_call.1} parent=11 // pred_fallthru
          _
      $region12: #{tpu_custom_call.1} parent=5 // pred_fallthru
        _
      %p492 = scmp.lt.s32.totalorder %s39, 4
      // Predicated region
      $region25: #{tpu_custom_call.1} parent=5 // pred_check
        %p493 = pneg %p492
      $region26: #{tpu_custom_call.1} parent=5 // pred_check_branch
        %495 = sbr.rel (%p493) target = $region28
      $region27: #{tpu_custom_call.1} parent=5 // pred_region
        // Predicated region
        $region29: #{tpu_custom_call.1} parent=27 // pred_check
          %p496 = pneg %p122
        $region30: #{tpu_custom_call.1} parent=27 // pred_check_branch
          %498 = sbr.rel (%p496) target = $region32
        $region31: #{tpu_custom_call.1} parent=27 // pred_region
          %s499 = sand.u32 %s39, 1
          %s500 = scalar_lea.sflag [#allocation10], %s499
          %s501 = sand.u32 %s112, 1
          %s502 = smul.addr %s501, 192
          %s503 = scalar_lea.vmem [#allocation9], %s502
          %505 = vsyncadd %s500, 0
          %s506 = smul.addr %s39, 48
          %s507 = smul.addr %s506, 4
          %s508 = scalar_lea.hbm %s3, %s507
          %s509 = sshll.u32 %s508, 4
          %s510 = int_to_ptr.hbm [resolvable:$true] %s509
          %s511 = sshll.u32 %s503, 4
          %s512 = int_to_ptr.vmem [resolvable:$true] %s511
          %517 = dma.hbm_to_vmem [thread:$0]  %s510, 3072, %s512, %s500, 192, 192, 12
        $region32: #{tpu_custom_call.1} parent=27 // pred_fallthru
          _
        // Predicated region
        $region33: #{tpu_custom_call.1} parent=27 // pred_check
          %p518 = pneg %p148
        $region34: #{tpu_custom_call.1} parent=27 // pred_check_branch
          %520 = sbr.rel (%p518) target = $region36
        $region35: #{tpu_custom_call.1} parent=27 // pred_region
          %s521 = sand.u32 %s39, 1
          %s522 = scalar_lea.sflag [#allocation10], %s521
          %s523 = sand.u32 %s138, 1
          %s524 = smul.addr %s523, 3
          %s525 = scalar_lea.vmem [#allocation11], %s524
          %527 = vsyncadd %s522, 0
          %s528 = smul.addr %s39, 3
          %s529 = scalar_lea.hbm %s4, %s528
          %s531 = sshll.u32 %s529, 4
          %s532 = int_to_ptr.hbm [resolvable:$true] %s531
          %s533 = sshll.u32 %s525, 4
          %s534 = int_to_ptr.vmem [resolvable:$true] %s533
          %536 = dma.hbm_to_vmem [thread:$0]  %s532, 48, %s534, %s522
        $region36: #{tpu_custom_call.1} parent=27 // pred_fallthru
          _
        // Predicated region
        $region37: #{tpu_custom_call.1} parent=27 // pred_check
          %p537 = pneg %p174
        $region38: #{tpu_custom_call.1} parent=27 // pred_check_branch
          %539 = sbr.rel (%p537) target = $region40
        $region39: #{tpu_custom_call.1} parent=27 // pred_region
          %s540 = sand.u32 %s39, 1
          %s541 = scalar_lea.sflag [#allocation13], %s540
          %s542 = sand.u32 %s164, 1
          %s543 = smul.addr %s542, 64
          %s544 = scalar_lea.vmem [#allocation12], %s543
          %546 = vsyncadd %s541, 0
          %s547 = smul.addr %s39, 16
          %s548 = smul.addr %s547, 4
          %s549 = scalar_lea.hbm %s5, %s548
          %s550 = sshll.u32 %s549, 4
          %s551 = int_to_ptr.hbm [resolvable:$true] %s550
          %s552 = sshll.u32 %s544, 4
          %s553 = int_to_ptr.vmem [resolvable:$true] %s552
          %558 = dma.hbm_to_vmem [thread:$0]  %s551, 1024, %s553, %s541, 64, 64, 4
        $region40: #{tpu_custom_call.1} parent=27 // pred_fallthru
          _
        // Predicated region
        $region41: #{tpu_custom_call.1} parent=27 // pred_check
          %p559 = pneg %p200
        $region42: #{tpu_custom_call.1} parent=27 // pred_check_branch
          %561 = sbr.rel (%p559) target = $region44
        $region43: #{tpu_custom_call.1} parent=27 // pred_region
          %p562 = scmp.lt.s32.totalorder %s39, 3
          %s563 = scalar_select %p562, %s39, 3
          %s564 = scalar_lea.vmem %s6, %s563
        $region44: #{tpu_custom_call.1} parent=27 // pred_fallthru
          _
        // Predicated region
        $region45: #{tpu_custom_call.1} parent=27 // pred_check
          %p565 = pneg %p226
        $region46: #{tpu_custom_call.1} parent=27 // pred_check_branch
          %567 = sbr.rel (%p565) target = $region48
        $region47: #{tpu_custom_call.1} parent=27 // pred_region
          %s568 = sand.u32 %s39, 1
          %s569 = scalar_lea.sflag [#allocation13], %s568
          %s570 = sand.u32 %s216, 1
          %s571 = scalar_lea.vmem [#allocation14], %s570
          %573 = vsyncadd %s569, 0
          %s574 = scalar_lea.hbm %s7, %s39
          %s576 = sshll.u32 %s574, 4
          %s577 = int_to_ptr.hbm [resolvable:$true] %s576
          %s578 = sshll.u32 %s571, 4
          %s579 = int_to_ptr.vmem [resolvable:$true] %s578
          %581 = dma.hbm_to_vmem [thread:$0]  %s577, 16, %s579, %s569
        $region48: #{tpu_custom_call.1} parent=27 // pred_fallthru
          _
        // Predicated region
        $region49: #{tpu_custom_call.1} parent=27 // pred_check
          %p582 = pneg %p252
        $region50: #{tpu_custom_call.1} parent=27 // pred_check_branch
          %584 = sbr.rel (%p582) target = $region52
        $region51: #{tpu_custom_call.1} parent=27 // pred_region
          %s585 = sand.u32 %s39, 1
          %s586 = scalar_lea.sflag [#allocation16], %s585
          %s587 = sand.u32 %s242, 1
          %s588 = scalar_lea.vmem [#allocation15], %s587
          %590 = vsyncadd %s586, 0
          %s591 = scalar_lea.hbm %s8, %s39
          %s593 = sshll.u32 %s591, 4
          %s594 = int_to_ptr.hbm [resolvable:$true] %s593
          %s595 = sshll.u32 %s588, 4
          %s596 = int_to_ptr.vmem [resolvable:$true] %s595
          %598 = dma.hbm_to_vmem [thread:$0]  %s594, 16, %s596, %s586
        $region52: #{tpu_custom_call.1} parent=27 // pred_fallthru
          _
        // Predicated region
        $region53: #{tpu_custom_call.1} parent=27 // pred_check
          %p599 = pneg %p278
        $region54: #{tpu_custom_call.1} parent=27 // pred_check_branch
          %601 = sbr.rel (%p599) target = $region56
        $region55: #{tpu_custom_call.1} parent=27 // pred_region
          %s602 = sand.u32 %s39, 1
          %s603 = scalar_lea.sflag [#allocation16], %s602
          %s604 = sand.u32 %s268, 1
          %s605 = smul.addr %s604, 512
          %s606 = scalar_lea.vmem [#allocation17], %s605
          %608 = vsyncadd %s603, 0
          %s609 = smul.addr %s39, 128
          %s610 = smul.addr %s609, 4
          %s611 = scalar_lea.hbm %s9, %s610
          %s612 = sshll.u32 %s611, 4
          %s613 = int_to_ptr.hbm [resolvable:$true] %s612
          %s614 = sshll.u32 %s606, 4
          %s615 = int_to_ptr.vmem [resolvable:$true] %s614
          %620 = dma.hbm_to_vmem [thread:$0]  %s613, 8192, %s615, %s603, 512, 512, 32
        $region56: #{tpu_custom_call.1} parent=27 // pred_fallthru
          _
        // Predicated region
        $region57: #{tpu_custom_call.1} parent=27 // pred_check
          %p621 = pneg %p304
        $region58: #{tpu_custom_call.1} parent=27 // pred_check_branch
          %623 = sbr.rel (%p621) target = $region60
        $region59: #{tpu_custom_call.1} parent=27 // pred_region
          %s624 = sand.u32 %s39, 1
          %s625 = scalar_lea.sflag [#allocation19], %s624
          %s626 = sand.u32 %s294, 1
          %s627 = smul.addr %s626, 8
          %s628 = scalar_lea.vmem [#allocation18], %s627
          %630 = vsyncadd %s625, 0
          %s631 = smul.addr %s39, 8
          %s632 = scalar_lea.hbm %s10, %s631
          %s634 = sshll.u32 %s632, 4
          %s635 = int_to_ptr.hbm [resolvable:$true] %s634
          %s636 = sshll.u32 %s628, 4
          %s637 = int_to_ptr.vmem [resolvable:$true] %s636
          %639 = dma.hbm_to_vmem [thread:$0]  %s635, 128, %s637, %s625
        $region60: #{tpu_custom_call.1} parent=27 // pred_fallthru
          _
        // Predicated region
        $region61: #{tpu_custom_call.1} parent=27 // pred_check
          %p640 = pneg %p330
        $region62: #{tpu_custom_call.1} parent=27 // pred_check_branch
          %642 = sbr.rel (%p640) target = $region64
        $region63: #{tpu_custom_call.1} parent=27 // pred_region
          %s643 = sand.u32 %s39, 1
          %s644 = scalar_lea.sflag [#allocation19], %s643
          %s645 = sand.u32 %s320, 1
          %s646 = smul.addr %s645, 512
          %s647 = scalar_lea.vmem [#allocation20], %s646
          %649 = vsyncadd %s644, 0
          %s650 = smul.addr %s39, 128
          %s651 = smul.addr %s650, 4
          %s652 = scalar_lea.hbm %s11, %s651
          %s653 = sshll.u32 %s652, 4
          %s654 = int_to_ptr.hbm [resolvable:$true] %s653
          %s655 = sshll.u32 %s647, 4
          %s656 = int_to_ptr.vmem [resolvable:$true] %s655
          %661 = dma.hbm_to_vmem [thread:$0]  %s654, 8192, %s656, %s644, 64, 64, 4
        $region64: #{tpu_custom_call.1} parent=27 // pred_fallthru
          _
        // Predicated region
        $region65: #{tpu_custom_call.1} parent=27 // pred_check
          %p662 = pneg %p356
        $region66: #{tpu_custom_call.1} parent=27 // pred_check_branch
          %664 = sbr.rel (%p662) target = $region68
        $region67: #{tpu_custom_call.1} parent=27 // pred_region
          %p665 = scmp.lt.s32.totalorder %s39, 3
          %s666 = scalar_select %p665, %s39, 3
          %s667 = scalar_lea.vmem %s12, %s666
        $region68: #{tpu_custom_call.1} parent=27 // pred_fallthru
          _
        // Predicated region
        $region69: #{tpu_custom_call.1} parent=27 // pred_check
          %p668 = pneg %p382
        $region70: #{tpu_custom_call.1} parent=27 // pred_check_branch
          %670 = sbr.rel (%p668) target = $region72
        $region71: #{tpu_custom_call.1} parent=27 // pred_region
          %p671 = scmp.lt.s32.totalorder %s39, 3
          %s672 = scalar_select %p671, %s39, 3
          %s673 = scalar_lea.vmem %s13, %s672
        $region72: #{tpu_custom_call.1} parent=27 // pred_fallthru
          _
        // Predicated region
        $region73: #{tpu_custom_call.1} parent=27 // pred_check
          %p674 = pneg %p408
        $region74: #{tpu_custom_call.1} parent=27 // pred_check_branch
          %676 = sbr.rel (%p674) target = $region76
        $region75: #{tpu_custom_call.1} parent=27 // pred_region
          %s677 = sand.u32 %s398, 1
          %s678 = scalar_lea.sflag [#allocation22], %s677
          %s679 = sand.u32 %s398, 1
          %s680 = scalar_lea.vmem [#allocation21], %s679
          %682 = vsyncadd %s678, 0
          %s683 = scalar_lea.hbm %s14, %s39
          %s685 = sshll.u32 %s683, 4
          %s686 = int_to_ptr.hbm [resolvable:$true] %s685
          %s687 = sshll.u32 %s680, 4
          %s688 = int_to_ptr.vmem [resolvable:$true] %s687
          %690 = dma.hbm_to_vmem [thread:$0]  %s686, 16, %s688, %s678
        $region76: #{tpu_custom_call.1} parent=27 // pred_fallthru
          _
      $region28: #{tpu_custom_call.1} parent=5 // pred_fallthru
        _
      %p691 = scmp.le.s32.totalorder 1, %s39
      %p692 = scmp.lt.s32.totalorder %s39, 5
      %p693 = pnand %p691, %p692
      %p694 = pneg %p693
      // Predicated region
      $region77: #{tpu_custom_call.1} parent=5 // pred_check
        _
      $region78: #{tpu_custom_call.1} parent=5 // pred_check_branch
        %696 = sbr.rel (%p693) target = $region80
      $region79: #{tpu_custom_call.1} parent=5 // pred_region
        %s697 = ssub.s32 %s39, 1
        // Predicated region
        $region81: #{tpu_custom_call.1} parent=79 // pred_check
          %p698 = pneg %p60
        $region82: #{tpu_custom_call.1} parent=79 // pred_check_branch
          %700 = sbr.rel (%p698) target = $region84
        $region83: #{tpu_custom_call.1} parent=79 // pred_region
          %702 = dma.done [#allocation4], 512
        $region84: #{tpu_custom_call.1} parent=79 // pred_fallthru
          _
        // Predicated region
        $region85: #{tpu_custom_call.1} parent=79 // pred_check
          %p703 = pneg %p81
        $region86: #{tpu_custom_call.1} parent=79 // pred_check_branch
          %705 = sbr.rel (%p703) target = $region88
        $region87: #{tpu_custom_call.1} parent=79 // pred_region
          %707 = dma.done [#allocation7], 512
        $region88: #{tpu_custom_call.1} parent=79 // pred_fallthru
          _
        // Predicated region
        $region89: #{tpu_custom_call.1} parent=79 // pred_check
          %p708 = pneg %p102
        $region90: #{tpu_custom_call.1} parent=79 // pred_check_branch
          %710 = sbr.rel (%p708) target = $region92
        $region91: #{tpu_custom_call.1} parent=79 // pred_region
          %712 = dma.done [#allocation7], 512
        $region92: #{tpu_custom_call.1} parent=79 // pred_fallthru
          _
        %s713 = sand.u32 %s44, 1
        %s714 = scalar_lea.sflag [#allocation10], %s713
        %s715 = sand.u32 %s115, 1
        %s716 = smul.addr %s715, 192
        %s717 = scalar_lea.vmem [#allocation9], %s716
        // Predicated region
        $region93: #{tpu_custom_call.1} parent=79 // pred_check
          %p718 = pneg %p128
        $region94: #{tpu_custom_call.1} parent=79 // pred_check_branch
          %720 = sbr.rel (%p718) target = $region96
        $region95: #{tpu_custom_call.1} parent=79 // pred_region
          %722 = dma.done %s714, 3072
        $region96: #{tpu_custom_call.1} parent=79 // pred_fallthru
          _
        %s723 = sand.u32 %s44, 1
        %s724 = scalar_lea.sflag [#allocation10], %s723
        %s725 = sand.u32 %s141, 1
        %s726 = smul.addr %s725, 3
        %s727 = scalar_lea.vmem [#allocation11], %s726
        // Predicated region
        $region97: #{tpu_custom_call.1} parent=79 // pred_check
          %p728 = pneg %p154
        $region98: #{tpu_custom_call.1} parent=79 // pred_check_branch
          %730 = sbr.rel (%p728) target = $region100
        $region99: #{tpu_custom_call.1} parent=79 // pred_region
          %732 = dma.done %s724, 48
        $region100: #{tpu_custom_call.1} parent=79 // pred_fallthru
          _
        %s733 = sand.u32 %s44, 1
        %s734 = scalar_lea.sflag [#allocation13], %s733
        %s735 = sand.u32 %s167, 1
        %s736 = smul.addr %s735, 64
        %s737 = scalar_lea.vmem [#allocation12], %s736
        // Predicated region
        $region101: #{tpu_custom_call.1} parent=79 // pred_check
          %p738 = pneg %p180
        $region102: #{tpu_custom_call.1} parent=79 // pred_check_branch
          %740 = sbr.rel (%p738) target = $region104
        $region103: #{tpu_custom_call.1} parent=79 // pred_region
          %742 = dma.done %s734, 1024
        $region104: #{tpu_custom_call.1} parent=79 // pred_fallthru
          _
        %s743 = sand.u32 %s44, 1
        %s744 = scalar_lea.sflag [#allocation13], %s743
        %s745 = sand.u32 %s219, 1
        %s746 = scalar_lea.vmem [#allocation14], %s745
        // Predicated region
        $region105: #{tpu_custom_call.1} parent=79 // pred_check
          %p747 = pneg %p232
        $region106: #{tpu_custom_call.1} parent=79 // pred_check_branch
          %749 = sbr.rel (%p747) target = $region108
        $region107: #{tpu_custom_call.1} parent=79 // pred_region
          %751 = dma.done %s744, 16
        $region108: #{tpu_custom_call.1} parent=79 // pred_fallthru
          _
        %s752 = sand.u32 %s44, 1
        %s753 = scalar_lea.sflag [#allocation16], %s752
        %s754 = sand.u32 %s245, 1
        %s755 = scalar_lea.vmem [#allocation15], %s754
        // Predicated region
        $region109: #{tpu_custom_call.1} parent=79 // pred_check
          %p756 = pneg %p258
        $region110: #{tpu_custom_call.1} parent=79 // pred_check_branch
          %758 = sbr.rel (%p756) target = $region112
        $region111: #{tpu_custom_call.1} parent=79 // pred_region
          %760 = dma.done %s753, 16
        $region112: #{tpu_custom_call.1} parent=79 // pred_fallthru
          _
        %s761 = sand.u32 %s44, 1
        %s762 = scalar_lea.sflag [#allocation16], %s761
        %s763 = sand.u32 %s271, 1
        %s764 = smul.addr %s763, 512
        %s765 = scalar_lea.vmem [#allocation17], %s764
        // Predicated region
        $region113: #{tpu_custom_call.1} parent=79 // pred_check
          %p766 = pneg %p284
        $region114: #{tpu_custom_call.1} parent=79 // pred_check_branch
          %768 = sbr.rel (%p766) target = $region116
        $region115: #{tpu_custom_call.1} parent=79 // pred_region
          %770 = dma.done %s762, 8192
        $region116: #{tpu_custom_call.1} parent=79 // pred_fallthru
          _
        %s771 = sand.u32 %s44, 1
        %s772 = scalar_lea.sflag [#allocation19], %s771
        %s773 = sand.u32 %s297, 1
        %s774 = smul.addr %s773, 8
        %s775 = scalar_lea.vmem [#allocation18], %s774
        // Predicated region
        $region117: #{tpu_custom_call.1} parent=79 // pred_check
          %p776 = pneg %p310
        $region118: #{tpu_custom_call.1} parent=79 // pred_check_branch
          %778 = sbr.rel (%p776) target = $region120
        $region119: #{tpu_custom_call.1} parent=79 // pred_region
          %780 = dma.done %s772, 128
        $region120: #{tpu_custom_call.1} parent=79 // pred_fallthru
          _
        %s781 = sand.u32 %s44, 1
        %s782 = scalar_lea.sflag [#allocation19], %s781
        %s783 = sand.u32 %s323, 1
        %s784 = smul.addr %s783, 512
        %s785 = scalar_lea.vmem [#allocation20], %s784
        // Predicated region
        $region121: #{tpu_custom_call.1} parent=79 // pred_check
          %p786 = pneg %p336
        $region122: #{tpu_custom_call.1} parent=79 // pred_check_branch
          %788 = sbr.rel (%p786) target = $region124
        $region123: #{tpu_custom_call.1} parent=79 // pred_region
          %790 = dma.done %s782, 8192
        $region124: #{tpu_custom_call.1} parent=79 // pred_fallthru
          _
        %s791 = sand.u32 %s401, 1
        %s792 = scalar_lea.sflag [#allocation22], %s791
        %s793 = sand.u32 %s401, 1
        %s794 = scalar_lea.vmem [#allocation21], %s793
        // Predicated region
        $region125: #{tpu_custom_call.1} parent=79 // pred_check
          %p795 = pneg %p414
        $region126: #{tpu_custom_call.1} parent=79 // pred_check_branch
          %797 = sbr.rel (%p795) target = $region128
        $region127: #{tpu_custom_call.1} parent=79 // pred_region
          %799 = dma.done %s792, 16
        $region128: #{tpu_custom_call.1} parent=79 // pred_fallthru
          _
        %p800 = pneg %p60
        %p801 = pneg %p57
        %p802 = pneg %p81
        %p803 = pneg %p78
        %p804 = pneg %p102
        %p805 = pneg %p99
        %s806 = sand.u32 %s44, 1
        %s807 = scalar_lea.sflag [#allocation10], %s806
        %s808 = sand.u32 %s115, 1
        %s809 = smul.addr %s808, 192
        %s810 = scalar_lea.vmem [#allocation9], %s809
        %p811 = pneg %p128
        %p812 = pneg %p125
        %s813 = sand.u32 %s44, 1
        %s814 = scalar_lea.sflag [#allocation10], %s813
        %s815 = sand.u32 %s141, 1
        %s816 = smul.addr %s815, 3
        %s817 = scalar_lea.vmem [#allocation11], %s816
        %p818 = pneg %p154
        %p819 = pneg %p151
        %s820 = sand.u32 %s44, 1
        %s821 = scalar_lea.sflag [#allocation13], %s820
        %s822 = sand.u32 %s167, 1
        %s823 = smul.addr %s822, 64
        %s824 = scalar_lea.vmem [#allocation12], %s823
        %p825 = pneg %p180
        %p826 = pneg %p177
        %p827 = scmp.lt.s32.totalorder %s44, 3
        %s828 = scalar_select %p827, %s44, 3
        %s829 = scalar_lea.vmem %s6, %s828
        %p830 = pneg %p206
        %p831 = pneg %p203
        %s832 = sand.u32 %s44, 1
        %s833 = scalar_lea.sflag [#allocation13], %s832
        %s834 = sand.u32 %s219, 1
        %s835 = scalar_lea.vmem [#allocation14], %s834
        %p836 = pneg %p232
        %p837 = pneg %p229
        %s838 = sand.u32 %s44, 1
        %s839 = scalar_lea.sflag [#allocation16], %s838
        %s840 = sand.u32 %s245, 1
        %s841 = scalar_lea.vmem [#allocation15], %s840
        %p842 = pneg %p258
        %p843 = pneg %p255
        %s844 = sand.u32 %s44, 1
        %s845 = scalar_lea.sflag [#allocation16], %s844
        %s846 = sand.u32 %s271, 1
        %s847 = smul.addr %s846, 512
        %s848 = scalar_lea.vmem [#allocation17], %s847
        %p849 = pneg %p284
        %p850 = pneg %p281
        %s851 = sand.u32 %s44, 1
        %s852 = scalar_lea.sflag [#allocation19], %s851
        %s853 = sand.u32 %s297, 1
        %s854 = smul.addr %s853, 8
        %s855 = scalar_lea.vmem [#allocation18], %s854
        %p856 = pneg %p310
        %p857 = pneg %p307
        %s858 = sand.u32 %s44, 1
        %s859 = scalar_lea.sflag [#allocation19], %s858
        %s860 = sand.u32 %s323, 1
        %s861 = smul.addr %s860, 512
        %s862 = scalar_lea.vmem [#allocation20], %s861
        %p863 = pneg %p336
        %p864 = pneg %p333
        %p865 = scmp.lt.s32.totalorder %s44, 3
        %s866 = scalar_select %p865, %s44, 3
        %s867 = scalar_lea.vmem %s12, %s866
        %p868 = pneg %p362
        %p869 = pneg %p359
        %p870 = scmp.lt.s32.totalorder %s44, 3
        %s871 = scalar_select %p870, %s44, 3
        %s872 = scalar_lea.vmem %s13, %s871
        %p873 = pneg %p388
        %p874 = pneg %p385
        %s875 = sand.u32 %s401, 1
        %s876 = scalar_lea.sflag [#allocation22], %s875
        %s877 = sand.u32 %s401, 1
        %s878 = scalar_lea.vmem [#allocation21], %s877
        %p879 = pneg %p414
        %p880 = pneg %p411
        %p881 = pneg %p435
        %p882 = pneg %p432
        %p883 = scmp.lt.s32.totalorder %s44, 3
        %s884 = scalar_select %p883, %s44, 3
        %s885 = scalar_lea.vmem %s6, %s884
        %p886 = scmp.lt.s32.totalorder %s44, 3
        %s887 = scalar_select %p886, %s44, 3
        %s888 = scalar_lea.vmem %s12, %s887
        %p889 = scmp.lt.s32.totalorder %s44, 3
        %s890 = scalar_select %p889, %s44, 3
        %s891 = scalar_lea.vmem %s13, %s890
        %p893 = scmp.eq.s32.totalorder %s44, 0
        // Predicated region
        $region129: #{tpu_custom_call.1} parent=79 // pred_check
          %p894 = pneg %p893
        $region130: #{tpu_custom_call.1} parent=79 // pred_check_branch
          %896 = sbr.rel (%p894) target = $region132
        $region131: #{tpu_custom_call.1} parent=79 // pred_region
          %v897 = vld [vmem:[#allocation3] sm:$0xff]
          %v898 = vld [vmem:[#allocation3 + $0x8] sm:$0xff]
          %v899 = vld [vmem:[#allocation3 + $0x10] sm:$0xff]
          %v900 = vld [vmem:[#allocation3 + $0x18] sm:$0xff]
          %v901 = vpack.c.bf16 %v898, %v897
          %v902 = vpack.c.bf16 %v900, %v899
          %v903 = vld [vmem:[#allocation6] sm:$0xf]
          %v904 = vld [vmem:[#allocation6 + $0x4] sm:$0xf]
          %v905 = vld [vmem:[#allocation6 + $0x8] sm:$0xf]
          %v906 = vld [vmem:[#allocation6 + $0xc] sm:$0xf]
          %v907 = vld [vmem:[#allocation6 + $0x10] sm:$0xf]
          %v908 = vld [vmem:[#allocation6 + $0x14] sm:$0xf]
          %v909 = vld [vmem:[#allocation6 + $0x18] sm:$0xf]
          %v910 = vld [vmem:[#allocation6 + $0x1c] sm:$0xf]
          %v911 = vld [vmem:[#allocation8] sm:$0xff]
          %v912 = vld [vmem:[#allocation8 + $0x8] sm:$0xff]
          %v913 = vld [vmem:[#allocation8 + $0x10] sm:$0xff]
          %v914 = vld [vmem:[#allocation8 + $0x18] sm:$0xff]
          %v923 = vunpack.c.l.b16 %v903
          %v924 = vunpack.c.l.b16 %v904
          %v925 = vunpack.c.l.b16 %v905
          %v926 = vunpack.c.l.b16 %v906
          %v927 = vunpack.c.l.b16 %v907
          %v928 = vunpack.c.l.b16 %v908
          %v929 = vunpack.c.l.b16 %v909
          %v930 = vunpack.c.l.b16 %v910
          %v931 = vpack.c.b16 %v924, %v923
          %v932 = vpack.c.b16 %v926, %v925
          %v933 = vpack.c.b16 %v928, %v927
          %v934 = vpack.c.b16 %v930, %v929
          %vm939 = vcmask 523264
          %v941 = vsel %vm939, %v901, 0
          %v944 = vsel %vm939, %v902, 0
          %946 = vmatpush.bf16.msra.mxu0 0
          %947 = vmatpush.bf16.msra.mxu0 0
          %948 = vmatpush.bf16.msra.mxu0 0
          %949 = vmatpush.bf16.msra.mxu0 0
          %950 = vmatpush.bf16.msra.mxu0 %v934
          %951 = vmatpush.bf16.msra.mxu0 %v933
          %952 = vmatpush.bf16.msra.mxu0 %v932
          %953 = vmatpush.bf16.msra.mxu0 %v931
          %954 = vmatmul.bf16.gmra.mxu0 %v941
          %v955 = vpop.f32.mrf.mxu0
          %v956 = vadd.f32 %v911, %v955
          %v957 = vpop.f32.mrf.mxu0
          %v958 = vadd.f32 %v912, %v957
          %959 = vmatmul.bf16.gmra.mxu0 %v944
          %v960 = vpop.f32.mrf.mxu0
          %v961 = vadd.f32 %v913, %v960
          %v962 = vpop.f32.mrf.mxu0
          %v963 = vadd.f32 %v914, %v962
          %964 = vdwg.mxu0
          %965 = vst [vmem:[#allocation2] sm:$0xff] %v956
          %966 = vst [vmem:[#allocation2 + $0x8] sm:$0xff] %v958
          %967 = vst [vmem:[#allocation2 + $0x10] sm:$0xff] %v961
          %968 = vst [vmem:[#allocation2 + $0x18] sm:$0xff] %v963
        $region132: #{tpu_custom_call.1} parent=79 // pred_fallthru
          _
        %v969 = vld [vmem:[#allocation2] sm:$0xff]
        %v970 = vld [vmem:[#allocation2 + $0x8] sm:$0xff]
        %v971 = vld [vmem:[#allocation2 + $0x10] sm:$0xff]
        %v972 = vld [vmem:[#allocation2 + $0x18] sm:$0xff]
        %v973 = vld [vmem:[%s717] sm:$0xff]
        %v974 = vld [vmem:[%s717 + $0x8] sm:$0xf]
        %v975 = vld [vmem:[%s717 + $0xc] sm:$0xff]
        %v976 = vld [vmem:[%s717 + $0x14] sm:$0xf]
        %v977 = vld [vmem:[%s717 + $0x18] sm:$0xff]
        %v978 = vld [vmem:[%s717 + $0x20] sm:$0xf]
        %v979 = vld [vmem:[%s717 + $0x24] sm:$0xff]
        %v980 = vld [vmem:[%s717 + $0x2c] sm:$0xf]
        %v981 = vld [vmem:[%s717 + $0x30] sm:$0xff]
        %v982 = vld [vmem:[%s717 + $0x38] sm:$0xf]
        %v983 = vld [vmem:[%s717 + $0x3c] sm:$0xff]
        %v984 = vld [vmem:[%s717 + $0x44] sm:$0xf]
        %v985 = vld [vmem:[%s717 + $0x48] sm:$0xff]
        %v986 = vld [vmem:[%s717 + $0x50] sm:$0xf]
        %v987 = vld [vmem:[%s717 + $0x54] sm:$0xff]
        %v988 = vld [vmem:[%s717 + $0x5c] sm:$0xf]
        %v989 = vld [vmem:[%s717 + $0x60] sm:$0xff]
        %v990 = vld [vmem:[%s717 + $0x68] sm:$0xf]
        %v991 = vld [vmem:[%s717 + $0x6c] sm:$0xff]
        %v992 = vld [vmem:[%s717 + $0x74] sm:$0xf]
        %v993 = vld [vmem:[%s717 + $0x78] sm:$0xff]
        %v994 = vld [vmem:[%s717 + $0x80] sm:$0xf]
        %v995 = vld [vmem:[%s717 + $0x84] sm:$0xff]
        %v996 = vld [vmem:[%s717 + $0x8c] sm:$0xf]
        %v997 = vld [vmem:[%s717 + $0x90] sm:$0xff]
        %v998 = vld [vmem:[%s717 + $0x98] sm:$0xf]
        %v999 = vld [vmem:[%s717 + $0x9c] sm:$0xff]
        %v1000 = vld [vmem:[%s717 + $0xa4] sm:$0xf]
        %v1001 = vld [vmem:[%s717 + $0xa8] sm:$0xff]
        %v1002 = vld [vmem:[%s717 + $0xb0] sm:$0xf]
        %v1003 = vld [vmem:[%s717 + $0xb4] sm:$0xff]
        %v1004 = vld [vmem:[%s717 + $0xbc] sm:$0xf]
        %v1005 = vld [vmem:[%s727] sm:$0x7]
        %v1006 = vld [vmem:[%s737] sm:$0xf]
        %v1007 = vld [vmem:[%s737 + $0x4] sm:$0xf]
        %v1008 = vld [vmem:[%s737 + $0x8] sm:$0xf]
        %v1009 = vld [vmem:[%s737 + $0xc] sm:$0xf]
        %v1010 = vld [vmem:[%s737 + $0x10] sm:$0xf]
        %v1011 = vld [vmem:[%s737 + $0x14] sm:$0xf]
        %v1012 = vld [vmem:[%s737 + $0x18] sm:$0xf]
        %v1013 = vld [vmem:[%s737 + $0x1c] sm:$0xf]
        %v1014 = vld [vmem:[%s737 + $0x20] sm:$0xf]
        %v1015 = vld [vmem:[%s737 + $0x24] sm:$0xf]
        %v1016 = vld [vmem:[%s737 + $0x28] sm:$0xf]
        %v1017 = vld [vmem:[%s737 + $0x2c] sm:$0xf]
        %v1018 = vld [vmem:[%s737 + $0x30] sm:$0xf]
        %v1019 = vld [vmem:[%s737 + $0x34] sm:$0xf]
        %v1020 = vld [vmem:[%s737 + $0x38] sm:$0xf]
        %v1021 = vld [vmem:[%s737 + $0x3c] sm:$0xf]
        %v1022 = vld [vmem:[%s885] sm:$0x1]
        %v1023 = vld [vmem:[%s746] sm:$0x1]
        %v1024 = vld [vmem:[%s755] sm:$0x1]
        %v1025 = vld [vmem:[%s765] sm:$0xff]
        %v1026 = vld [vmem:[%s765 + $0x8] sm:$0xff]
        %v1027 = vld [vmem:[%s765 + $0x10] sm:$0xff]
        %v1028 = vld [vmem:[%s765 + $0x18] sm:$0xff]
        %v1029 = vld [vmem:[%s765 + $0x20] sm:$0xff]
        %v1030 = vld [vmem:[%s765 + $0x28] sm:$0xff]
        %v1031 = vld [vmem:[%s765 + $0x30] sm:$0xff]
        %v1032 = vld [vmem:[%s765 + $0x38] sm:$0xff]
        %v1033 = vld [vmem:[%s765 + $0x40] sm:$0xff]
        %v1034 = vld [vmem:[%s765 + $0x48] sm:$0xff]
        %v1035 = vld [vmem:[%s765 + $0x50] sm:$0xff]
        %v1036 = vld [vmem:[%s765 + $0x58] sm:$0xff]
        %v1037 = vld [vmem:[%s765 + $0x60] sm:$0xff]
        %v1038 = vld [vmem:[%s765 + $0x68] sm:$0xff]
        %v1039 = vld [vmem:[%s765 + $0x70] sm:$0xff]
        %v1040 = vld [vmem:[%s765 + $0x78] sm:$0xff]
        %v1041 = vld [vmem:[%s765 + $0x80] sm:$0xff]
        %v1042 = vld [vmem:[%s765 + $0x88] sm:$0xff]
        %v1043 = vld [vmem:[%s765 + $0x90] sm:$0xff]
        %v1044 = vld [vmem:[%s765 + $0x98] sm:$0xff]
        %v1045 = vld [vmem:[%s765 + $0xa0] sm:$0xff]
        %v1046 = vld [vmem:[%s765 + $0xa8] sm:$0xff]
        %v1047 = vld [vmem:[%s765 + $0xb0] sm:$0xff]
        %v1048 = vld [vmem:[%s765 + $0xb8] sm:$0xff]
        %v1049 = vld [vmem:[%s765 + $0xc0] sm:$0xff]
        %v1050 = vld [vmem:[%s765 + $0xc8] sm:$0xff]
        %v1051 = vld [vmem:[%s765 + $0xd0] sm:$0xff]
        %v1052 = vld [vmem:[%s765 + $0xd8] sm:$0xff]
        %v1053 = vld [vmem:[%s765 + $0xe0] sm:$0xff]
        %v1054 = vld [vmem:[%s765 + $0xe8] sm:$0xff]
        %v1055 = vld [vmem:[%s765 + $0xf0] sm:$0xff]
        %v1056 = vld [vmem:[%s765 + $0xf8] sm:$0xff]
        %v1057 = vld [vmem:[%s765 + $0x100] sm:$0xff]
        %v1058 = vld [vmem:[%s765 + $0x108] sm:$0xff]
        %v1059 = vld [vmem:[%s765 + $0x110] sm:$0xff]
        %v1060 = vld [vmem:[%s765 + $0x118] sm:$0xff]
        %v1061 = vld [vmem:[%s765 + $0x120] sm:$0xff]
        %v1062 = vld [vmem:[%s765 + $0x128] sm:$0xff]
        %v1063 = vld [vmem:[%s765 + $0x130] sm:$0xff]
        %v1064 = vld [vmem:[%s765 + $0x138] sm:$0xff]
        %v1065 = vld [vmem:[%s765 + $0x140] sm:$0xff]
        %v1066 = vld [vmem:[%s765 + $0x148] sm:$0xff]
        %v1067 = vld [vmem:[%s765 + $0x150] sm:$0xff]
        %v1068 = vld [vmem:[%s765 + $0x158] sm:$0xff]
        %v1069 = vld [vmem:[%s765 + $0x160] sm:$0xff]
        %v1070 = vld [vmem:[%s765 + $0x168] sm:$0xff]
        %v1071 = vld [vmem:[%s765 + $0x170] sm:$0xff]
        %v1072 = vld [vmem:[%s765 + $0x178] sm:$0xff]
        %v1073 = vld [vmem:[%s765 + $0x180] sm:$0xff]
        %v1074 = vld [vmem:[%s765 + $0x188] sm:$0xff]
        %v1075 = vld [vmem:[%s765 + $0x190] sm:$0xff]
        %v1076 = vld [vmem:[%s765 + $0x198] sm:$0xff]
        %v1077 = vld [vmem:[%s765 + $0x1a0] sm:$0xff]
        %v1078 = vld [vmem:[%s765 + $0x1a8] sm:$0xff]
        %v1079 = vld [vmem:[%s765 + $0x1b0] sm:$0xff]
        %v1080 = vld [vmem:[%s765 + $0x1b8] sm:$0xff]
        %v1081 = vld [vmem:[%s765 + $0x1c0] sm:$0xff]
        %v1082 = vld [vmem:[%s765 + $0x1c8] sm:$0xff]
        %v1083 = vld [vmem:[%s765 + $0x1d0] sm:$0xff]
        %v1084 = vld [vmem:[%s765 + $0x1d8] sm:$0xff]
        %v1085 = vld [vmem:[%s765 + $0x1e0] sm:$0xff]
        %v1086 = vld [vmem:[%s765 + $0x1e8] sm:$0xff]
        %v1087 = vld [vmem:[%s765 + $0x1f0] sm:$0xff]
        %v1088 = vld [vmem:[%s765 + $0x1f8] sm:$0xff]
        %v1089 = vld [vmem:[%s775] sm:$0xff]
        %v1090 = vld [vmem:[%s785] sm:$0xf]
        %v1091 = vld [vmem:[%s785 + $0x4] sm:$0xf]
        %v1092 = vld [vmem:[%s785 + $0x8] sm:$0xf]
        %v1093 = vld [vmem:[%s785 + $0xc] sm:$0xf]
        %v1094 = vld [vmem:[%s785 + $0x10] sm:$0xf]
        %v1095 = vld [vmem:[%s785 + $0x14] sm:$0xf]
        %v1096 = vld [vmem:[%s785 + $0x18] sm:$0xf]
        %v1097 = vld [vmem:[%s785 + $0x1c] sm:$0xf]
        %v1098 = vld [vmem:[%s785 + $0x20] sm:$0xf]
        %v1099 = vld [vmem:[%s785 + $0x24] sm:$0xf]
        %v1100 = vld [vmem:[%s785 + $0x28] sm:$0xf]
        %v1101 = vld [vmem:[%s785 + $0x2c] sm:$0xf]
        %v1102 = vld [vmem:[%s785 + $0x30] sm:$0xf]
        %v1103 = vld [vmem:[%s785 + $0x34] sm:$0xf]
        %v1104 = vld [vmem:[%s785 + $0x38] sm:$0xf]
        %v1105 = vld [vmem:[%s785 + $0x3c] sm:$0xf]
        %v1106 = vld [vmem:[%s785 + $0x40] sm:$0xf]
        %v1107 = vld [vmem:[%s785 + $0x44] sm:$0xf]
        %v1108 = vld [vmem:[%s785 + $0x48] sm:$0xf]
        %v1109 = vld [vmem:[%s785 + $0x4c] sm:$0xf]
        %v1110 = vld [vmem:[%s785 + $0x50] sm:$0xf]
        %v1111 = vld [vmem:[%s785 + $0x54] sm:$0xf]
        %v1112 = vld [vmem:[%s785 + $0x58] sm:$0xf]
        %v1113 = vld [vmem:[%s785 + $0x5c] sm:$0xf]
        %v1114 = vld [vmem:[%s785 + $0x60] sm:$0xf]
        %v1115 = vld [vmem:[%s785 + $0x64] sm:$0xf]
        %v1116 = vld [vmem:[%s785 + $0x68] sm:$0xf]
        %v1117 = vld [vmem:[%s785 + $0x6c] sm:$0xf]
        %v1118 = vld [vmem:[%s785 + $0x70] sm:$0xf]
        %v1119 = vld [vmem:[%s785 + $0x74] sm:$0xf]
        %v1120 = vld [vmem:[%s785 + $0x78] sm:$0xf]
        %v1121 = vld [vmem:[%s785 + $0x7c] sm:$0xf]
        %v1122 = vld [vmem:[%s785 + $0x80] sm:$0xf]
        %v1123 = vld [vmem:[%s785 + $0x84] sm:$0xf]
        %v1124 = vld [vmem:[%s785 + $0x88] sm:$0xf]
        %v1125 = vld [vmem:[%s785 + $0x8c] sm:$0xf]
        %v1126 = vld [vmem:[%s785 + $0x90] sm:$0xf]
        %v1127 = vld [vmem:[%s785 + $0x94] sm:$0xf]
        %v1128 = vld [vmem:[%s785 + $0x98] sm:$0xf]
        %v1129 = vld [vmem:[%s785 + $0x9c] sm:$0xf]
        %v1130 = vld [vmem:[%s785 + $0xa0] sm:$0xf]
        %v1131 = vld [vmem:[%s785 + $0xa4] sm:$0xf]
        %v1132 = vld [vmem:[%s785 + $0xa8] sm:$0xf]
        %v1133 = vld [vmem:[%s785 + $0xac] sm:$0xf]
        %v1134 = vld [vmem:[%s785 + $0xb0] sm:$0xf]
        %v1135 = vld [vmem:[%s785 + $0xb4] sm:$0xf]
        %v1136 = vld [vmem:[%s785 + $0xb8] sm:$0xf]
        %v1137 = vld [vmem:[%s785 + $0xbc] sm:$0xf]
        %v1138 = vld [vmem:[%s785 + $0xc0] sm:$0xf]
        %v1139 = vld [vmem:[%s785 + $0xc4] sm:$0xf]
        %v1140 = vld [vmem:[%s785 + $0xc8] sm:$0xf]
        %v1141 = vld [vmem:[%s785 + $0xcc] sm:$0xf]
        %v1142 = vld [vmem:[%s785 + $0xd0] sm:$0xf]
        %v1143 = vld [vmem:[%s785 + $0xd4] sm:$0xf]
        %v1144 = vld [vmem:[%s785 + $0xd8] sm:$0xf]
        %v1145 = vld [vmem:[%s785 + $0xdc] sm:$0xf]
        %v1146 = vld [vmem:[%s785 + $0xe0] sm:$0xf]
        %v1147 = vld [vmem:[%s785 + $0xe4] sm:$0xf]
        %v1148 = vld [vmem:[%s785 + $0xe8] sm:$0xf]
        %v1149 = vld [vmem:[%s785 + $0xec] sm:$0xf]
        %v1150 = vld [vmem:[%s785 + $0xf0] sm:$0xf]
        %v1151 = vld [vmem:[%s785 + $0xf4] sm:$0xf]
        %v1152 = vld [vmem:[%s785 + $0xf8] sm:$0xf]
        %v1153 = vld [vmem:[%s785 + $0xfc] sm:$0xf]
        %v1154 = vld [vmem:[%s785 + $0x100] sm:$0xf]
        %v1155 = vld [vmem:[%s785 + $0x104] sm:$0xf]
        %v1156 = vld [vmem:[%s785 + $0x108] sm:$0xf]
        %v1157 = vld [vmem:[%s785 + $0x10c] sm:$0xf]
        %v1158 = vld [vmem:[%s785 + $0x110] sm:$0xf]
        %v1159 = vld [vmem:[%s785 + $0x114] sm:$0xf]
        %v1160 = vld [vmem:[%s785 + $0x118] sm:$0xf]
        %v1161 = vld [vmem:[%s785 + $0x11c] sm:$0xf]
        %v1162 = vld [vmem:[%s785 + $0x120] sm:$0xf]
        %v1163 = vld [vmem:[%s785 + $0x124] sm:$0xf]
        %v1164 = vld [vmem:[%s785 + $0x128] sm:$0xf]
        %v1165 = vld [vmem:[%s785 + $0x12c] sm:$0xf]
        %v1166 = vld [vmem:[%s785 + $0x130] sm:$0xf]
        %v1167 = vld [vmem:[%s785 + $0x134] sm:$0xf]
        %v1168 = vld [vmem:[%s785 + $0x138] sm:$0xf]
        %v1169 = vld [vmem:[%s785 + $0x13c] sm:$0xf]
        %v1170 = vld [vmem:[%s785 + $0x140] sm:$0xf]
        %v1171 = vld [vmem:[%s785 + $0x144] sm:$0xf]
        %v1172 = vld [vmem:[%s785 + $0x148] sm:$0xf]
        %v1173 = vld [vmem:[%s785 + $0x14c] sm:$0xf]
        %v1174 = vld [vmem:[%s785 + $0x150] sm:$0xf]
        %v1175 = vld [vmem:[%s785 + $0x154] sm:$0xf]
        %v1176 = vld [vmem:[%s785 + $0x158] sm:$0xf]
        %v1177 = vld [vmem:[%s785 + $0x15c] sm:$0xf]
        %v1178 = vld [vmem:[%s785 + $0x160] sm:$0xf]
        %v1179 = vld [vmem:[%s785 + $0x164] sm:$0xf]
        %v1180 = vld [vmem:[%s785 + $0x168] sm:$0xf]
        %v1181 = vld [vmem:[%s785 + $0x16c] sm:$0xf]
        %v1182 = vld [vmem:[%s785 + $0x170] sm:$0xf]
        %v1183 = vld [vmem:[%s785 + $0x174] sm:$0xf]
        %v1184 = vld [vmem:[%s785 + $0x178] sm:$0xf]
        %v1185 = vld [vmem:[%s785 + $0x17c] sm:$0xf]
        %v1186 = vld [vmem:[%s785 + $0x180] sm:$0xf]
        %v1187 = vld [vmem:[%s785 + $0x184] sm:$0xf]
        %v1188 = vld [vmem:[%s785 + $0x188] sm:$0xf]
        %v1189 = vld [vmem:[%s785 + $0x18c] sm:$0xf]
        %v1190 = vld [vmem:[%s785 + $0x190] sm:$0xf]
        %v1191 = vld [vmem:[%s785 + $0x194] sm:$0xf]
        %v1192 = vld [vmem:[%s785 + $0x198] sm:$0xf]
        %v1193 = vld [vmem:[%s785 + $0x19c] sm:$0xf]
        %v1194 = vld [vmem:[%s785 + $0x1a0] sm:$0xf]
        %v1195 = vld [vmem:[%s785 + $0x1a4] sm:$0xf]
        %v1196 = vld [vmem:[%s785 + $0x1a8] sm:$0xf]
        %v1197 = vld [vmem:[%s785 + $0x1ac] sm:$0xf]
        %v1198 = vld [vmem:[%s785 + $0x1b0] sm:$0xf]
        %v1199 = vld [vmem:[%s785 + $0x1b4] sm:$0xf]
        %v1200 = vld [vmem:[%s785 + $0x1b8] sm:$0xf]
        %v1201 = vld [vmem:[%s785 + $0x1bc] sm:$0xf]
        %v1202 = vld [vmem:[%s785 + $0x1c0] sm:$0xf]
        %v1203 = vld [vmem:[%s785 + $0x1c4] sm:$0xf]
        %v1204 = vld [vmem:[%s785 + $0x1c8] sm:$0xf]
        %v1205 = vld [vmem:[%s785 + $0x1cc] sm:$0xf]
        %v1206 = vld [vmem:[%s785 + $0x1d0] sm:$0xf]
        %v1207 = vld [vmem:[%s785 + $0x1d4] sm:$0xf]
        %v1208 = vld [vmem:[%s785 + $0x1d8] sm:$0xf]
        %v1209 = vld [vmem:[%s785 + $0x1dc] sm:$0xf]
        %v1210 = vld [vmem:[%s785 + $0x1e0] sm:$0xf]
        %v1211 = vld [vmem:[%s785 + $0x1e4] sm:$0xf]
        %v1212 = vld [vmem:[%s785 + $0x1e8] sm:$0xf]
        %v1213 = vld [vmem:[%s785 + $0x1ec] sm:$0xf]
        %v1214 = vld [vmem:[%s785 + $0x1f0] sm:$0xf]
        %v1215 = vld [vmem:[%s785 + $0x1f4] sm:$0xf]
        %v1216 = vld [vmem:[%s785 + $0x1f8] sm:$0xf]
        %v1217 = vld [vmem:[%s785 + $0x1fc] sm:$0xf]
        %v1218 = vld [vmem:[%s888] sm:$0x1]
        %v1219 = vld [vmem:[%s891] sm:$0x1]
        %v1220 = vld [vmem:[%s794] sm:$0x1]
        %v1221 = vpack.c.bf16 %v970, %v969
        %v1222 = vpack.c.bf16 %v972, %v971
        %v1224 = vperm.slane %v1005, 0
        %v1225 = vperm.slane %v1005, 1
        %v1226 = vperm.slane %v1005, 2
        %v1262 = vunpack.c.l.b16 %v973
        %v1263 = vunpack.c.h.b16 %v973
        %v1264 = vunpack.c.l.b16 %v974
        %v1265 = vunpack.c.l.b16 %v975
        %v1266 = vunpack.c.h.b16 %v975
        %v1267 = vunpack.c.l.b16 %v976
        %v1268 = vunpack.c.l.b16 %v977
        %v1269 = vunpack.c.h.b16 %v977
        %v1270 = vunpack.c.l.b16 %v978
        %v1271 = vunpack.c.l.b16 %v979
        %v1272 = vunpack.c.h.b16 %v979
        %v1273 = vunpack.c.l.b16 %v980
        %v1274 = vunpack.c.l.b16 %v981
        %v1275 = vunpack.c.h.b16 %v981
        %v1276 = vunpack.c.l.b16 %v982
        %v1277 = vunpack.c.l.b16 %v983
        %v1278 = vunpack.c.h.b16 %v983
        %v1279 = vunpack.c.l.b16 %v984
        %v1280 = vunpack.c.l.b16 %v985
        %v1281 = vunpack.c.h.b16 %v985
        %v1282 = vunpack.c.l.b16 %v986
        %v1283 = vunpack.c.l.b16 %v987
        %v1284 = vunpack.c.h.b16 %v987
        %v1285 = vunpack.c.l.b16 %v988
        %v1286 = vunpack.c.l.b16 %v989
        %v1287 = vunpack.c.h.b16 %v989
        %v1288 = vunpack.c.l.b16 %v990
        %v1289 = vunpack.c.l.b16 %v991
        %v1290 = vunpack.c.h.b16 %v991
        %v1291 = vunpack.c.l.b16 %v992
        %v1292 = vunpack.c.l.b16 %v993
        %v1293 = vunpack.c.h.b16 %v993
        %v1294 = vunpack.c.l.b16 %v994
        %v1295 = vunpack.c.l.b16 %v995
        %v1296 = vunpack.c.h.b16 %v995
        %v1297 = vunpack.c.l.b16 %v996
        %v1298 = vunpack.c.l.b16 %v997
        %v1299 = vunpack.c.h.b16 %v997
        %v1300 = vunpack.c.l.b16 %v998
        %v1301 = vunpack.c.l.b16 %v999
        %v1302 = vunpack.c.h.b16 %v999
        %v1303 = vunpack.c.l.b16 %v1000
        %v1304 = vunpack.c.l.b16 %v1001
        %v1305 = vunpack.c.h.b16 %v1001
        %v1306 = vunpack.c.l.b16 %v1002
        %v1307 = vunpack.c.l.b16 %v1003
        %v1308 = vunpack.c.h.b16 %v1003
        %v1309 = vunpack.c.l.b16 %v1004
        %v1310 = vpack.c.b16 %v1265, %v1262
        %v1311 = vpack.c.b16 %v1266, %v1263
        %v1312 = vpack.c.b16 %v1267, %v1264
        %v1313 = vpack.c.b16 %v1271, %v1268
        %v1314 = vpack.c.b16 %v1272, %v1269
        %v1315 = vpack.c.b16 %v1273, %v1270
        %v1316 = vpack.c.b16 %v1277, %v1274
        %v1317 = vpack.c.b16 %v1278, %v1275
        %v1318 = vpack.c.b16 %v1279, %v1276
        %v1319 = vpack.c.b16 %v1283, %v1280
        %v1320 = vpack.c.b16 %v1284, %v1281
        %v1321 = vpack.c.b16 %v1285, %v1282
        %v1322 = vpack.c.b16 %v1289, %v1286
        %v1323 = vpack.c.b16 %v1290, %v1287
        %v1324 = vpack.c.b16 %v1291, %v1288
        %v1325 = vpack.c.b16 %v1295, %v1292
        %v1326 = vpack.c.b16 %v1296, %v1293
        %v1327 = vpack.c.b16 %v1297, %v1294
        %v1328 = vpack.c.b16 %v1301, %v1298
        %v1329 = vpack.c.b16 %v1302, %v1299
        %v1330 = vpack.c.b16 %v1303, %v1300
        %v1331 = vpack.c.b16 %v1307, %v1304
        %v1332 = vpack.c.b16 %v1308, %v1305
        %v1333 = vpack.c.b16 %v1309, %v1306
        %1358 = vmatpush.bf16.msra.mxu0 %v1331
        %1359 = vmatpush.bf16.msra.mxu0 %v1328
        %1360 = vmatpush.bf16.msra.mxu0 %v1325
        %1361 = vmatpush.bf16.msra.mxu0 %v1322
        %1362 = vmatpush.bf16.msra.mxu0 %v1319
        %1363 = vmatpush.bf16.msra.mxu0 %v1316
        %1364 = vmatpush.bf16.msra.mxu0 %v1313
        %1365 = vmatpush.bf16.msra.mxu0 %v1310
        %1366 = vmatmul.bf16.gmra.mxu0 %v1221
        %v1367 = vpop.f32.mrf.mxu0
        %v1368 = vadd.f32 %v1224, %v1367
        %v1369 = vpop.f32.mrf.mxu0
        %v1370 = vadd.f32 %v1224, %v1369
        %1371 = vmatmul.bf16.gmra.mxu0 %v1222
        %v1372 = vpop.f32.mrf.mxu0
        %v1373 = vadd.f32 %v1224, %v1372
        %v1374 = vpop.f32.mrf.mxu0
        %v1375 = vadd.f32 %v1224, %v1374
        %1376 = vdwg.mxu0
        %1377 = vmatpush.bf16.msra.mxu0 %v1332
        %1378 = vmatpush.bf16.msra.mxu0 %v1329
        %1379 = vmatpush.bf16.msra.mxu0 %v1326
        %1380 = vmatpush.bf16.msra.mxu0 %v1323
        %1381 = vmatpush.bf16.msra.mxu0 %v1320
        %1382 = vmatpush.bf16.msra.mxu0 %v1317
        %1383 = vmatpush.bf16.msra.mxu0 %v1314
        %1384 = vmatpush.bf16.msra.mxu0 %v1311
        %1385 = vmatmul.bf16.gmra.mxu0 %v1221
        %v1386 = vpop.f32.mrf.mxu0
        %v1387 = vadd.f32 %v1225, %v1386
        %v1388 = vpop.f32.mrf.mxu0
        %v1389 = vadd.f32 %v1225, %v1388
        %1390 = vmatmul.bf16.gmra.mxu0 %v1222
        %v1391 = vpop.f32.mrf.mxu0
        %v1392 = vadd.f32 %v1225, %v1391
        %v1393 = vpop.f32.mrf.mxu0
        %v1394 = vadd.f32 %v1225, %v1393
        %1395 = vdwg.mxu0
        %1396 = vmatpush.bf16.msra.mxu0 %v1333
        %1397 = vmatpush.bf16.msra.mxu0 %v1330
        %1398 = vmatpush.bf16.msra.mxu0 %v1327
        %1399 = vmatpush.bf16.msra.mxu0 %v1324
        %1400 = vmatpush.bf16.msra.mxu0 %v1321
        %1401 = vmatpush.bf16.msra.mxu0 %v1318
        %1402 = vmatpush.bf16.msra.mxu0 %v1315
        %1403 = vmatpush.bf16.msra.mxu0 %v1312
        %1404 = vmatmul.bf16.gmra.mxu0 %v1221
        %v1405 = vpop.f32.mrf.mxu0
        %v1406 = vadd.f32 %v1226, %v1405
        %v1407 = vpop.f32.mrf.mxu0
        %v1408 = vadd.f32 %v1226, %v1407
        %1409 = vmatmul.bf16.gmra.mxu0 %v1222
        %v1410 = vpop.f32.mrf.mxu0
        %v1411 = vadd.f32 %v1226, %v1410
        %v1412 = vpop.f32.mrf.mxu0
        %v1413 = vadd.f32 %v1226, %v1412
        %1414 = vdwg.mxu0
        %1419 = vrot.lane.b32.xlu0 %v1368, 112
        %v1420 = vpop.permute.xlu0 %1419
        %1421 = vrot.lane.b32.xlu0 %v1370, 112
        %v1422 = vpop.permute.xlu0 %1421
        %1423 = vrot.lane.b32.xlu0 %v1373, 112
        %v1424 = vpop.permute.xlu0 %1423
        %1425 = vrot.lane.b32.xlu0 %v1375, 112
        %v1426 = vpop.permute.xlu0 %1425
        %1427 = vrot.lane.b32.xlu0 %v1368, 96
        %v1428 = vpop.permute.xlu0 %1427
        %1429 = vrot.lane.b32.xlu0 %v1370, 96
        %v1430 = vpop.permute.xlu0 %1429
        %1431 = vrot.lane.b32.xlu0 %v1373, 96
        %v1432 = vpop.permute.xlu0 %1431
        %1433 = vrot.lane.b32.xlu0 %v1375, 96
        %v1434 = vpop.permute.xlu0 %1433
        %1435 = vrot.lane.b32.xlu0 %v1368, 80
        %v1436 = vpop.permute.xlu0 %1435
        %1437 = vrot.lane.b32.xlu0 %v1370, 80
        %v1438 = vpop.permute.xlu0 %1437
        %1439 = vrot.lane.b32.xlu0 %v1373, 80
        %v1440 = vpop.permute.xlu0 %1439
        %1441 = vrot.lane.b32.xlu0 %v1375, 80
        %v1442 = vpop.permute.xlu0 %1441
        %1443 = vrot.lane.b32.xlu0 %v1368, 64
        %v1444 = vpop.permute.xlu0 %1443
        %1445 = vrot.lane.b32.xlu0 %v1370, 64
        %v1446 = vpop.permute.xlu0 %1445
        %1447 = vrot.lane.b32.xlu0 %v1373, 64
        %v1448 = vpop.permute.xlu0 %1447
        %1449 = vrot.lane.b32.xlu0 %v1375, 64
        %v1450 = vpop.permute.xlu0 %1449
        %1451 = vrot.lane.b32.xlu0 %v1368, 48
        %v1452 = vpop.permute.xlu0 %1451
        %1453 = vrot.lane.b32.xlu0 %v1370, 48
        %v1454 = vpop.permute.xlu0 %1453
        %1455 = vrot.lane.b32.xlu0 %v1373, 48
        %v1456 = vpop.permute.xlu0 %1455
        %1457 = vrot.lane.b32.xlu0 %v1375, 48
        %v1458 = vpop.permute.xlu0 %1457
        %1459 = vrot.lane.b32.xlu0 %v1368, 32
        %v1460 = vpop.permute.xlu0 %1459
        %1461 = vrot.lane.b32.xlu0 %v1370, 32
        %v1462 = vpop.permute.xlu0 %1461
        %1463 = vrot.lane.b32.xlu0 %v1373, 32
        %v1464 = vpop.permute.xlu0 %1463
        %1465 = vrot.lane.b32.xlu0 %v1375, 32
        %v1466 = vpop.permute.xlu0 %1465
        %1467 = vrot.lane.b32.xlu0 %v1368, 16
        %v1468 = vpop.permute.xlu0 %1467
        %1469 = vrot.lane.b32.xlu0 %v1370, 16
        %v1470 = vpop.permute.xlu0 %1469
        %1471 = vrot.lane.b32.xlu0 %v1373, 16
        %v1472 = vpop.permute.xlu0 %1471
        %1473 = vrot.lane.b32.xlu0 %v1375, 16
        %v1474 = vpop.permute.xlu0 %1473
        %1479 = vrot.lane.b32.xlu0 %v1387, 112
        %v1480 = vpop.permute.xlu0 %1479
        %1481 = vrot.lane.b32.xlu0 %v1389, 112
        %v1482 = vpop.permute.xlu0 %1481
        %1483 = vrot.lane.b32.xlu0 %v1392, 112
        %v1484 = vpop.permute.xlu0 %1483
        %1485 = vrot.lane.b32.xlu0 %v1394, 112
        %v1486 = vpop.permute.xlu0 %1485
        %1487 = vrot.lane.b32.xlu0 %v1387, 96
        %v1488 = vpop.permute.xlu0 %1487
        %1489 = vrot.lane.b32.xlu0 %v1389, 96
        %v1490 = vpop.permute.xlu0 %1489
        %1491 = vrot.lane.b32.xlu0 %v1392, 96
        %v1492 = vpop.permute.xlu0 %1491
        %1493 = vrot.lane.b32.xlu0 %v1394, 96
        %v1494 = vpop.permute.xlu0 %1493
        %1495 = vrot.lane.b32.xlu0 %v1387, 80
        %v1496 = vpop.permute.xlu0 %1495
        %1497 = vrot.lane.b32.xlu0 %v1389, 80
        %v1498 = vpop.permute.xlu0 %1497
        %1499 = vrot.lane.b32.xlu0 %v1392, 80
        %v1500 = vpop.permute.xlu0 %1499
        %1501 = vrot.lane.b32.xlu0 %v1394, 80
        %v1502 = vpop.permute.xlu0 %1501
        %1503 = vrot.lane.b32.xlu0 %v1387, 64
        %v1504 = vpop.permute.xlu0 %1503
        %1505 = vrot.lane.b32.xlu0 %v1389, 64
        %v1506 = vpop.permute.xlu0 %1505
        %1507 = vrot.lane.b32.xlu0 %v1392, 64
        %v1508 = vpop.permute.xlu0 %1507
        %1509 = vrot.lane.b32.xlu0 %v1394, 64
        %v1510 = vpop.permute.xlu0 %1509
        %1511 = vrot.lane.b32.xlu0 %v1387, 48
        %v1512 = vpop.permute.xlu0 %1511
        %1513 = vrot.lane.b32.xlu0 %v1389, 48
        %v1514 = vpop.permute.xlu0 %1513
        %1515 = vrot.lane.b32.xlu0 %v1392, 48
        %v1516 = vpop.permute.xlu0 %1515
        %1517 = vrot.lane.b32.xlu0 %v1394, 48
        %v1518 = vpop.permute.xlu0 %1517
        %1519 = vrot.lane.b32.xlu0 %v1387, 32
        %v1520 = vpop.permute.xlu0 %1519
        %1521 = vrot.lane.b32.xlu0 %v1389, 32
        %v1522 = vpop.permute.xlu0 %1521
        %1523 = vrot.lane.b32.xlu0 %v1392, 32
        %v1524 = vpop.permute.xlu0 %1523
        %1525 = vrot.lane.b32.xlu0 %v1394, 32
        %v1526 = vpop.permute.xlu0 %1525
        %1527 = vrot.lane.b32.xlu0 %v1387, 16
        %v1528 = vpop.permute.xlu0 %1527
        %1529 = vrot.lane.b32.xlu0 %v1389, 16
        %v1530 = vpop.permute.xlu0 %1529
        %1531 = vrot.lane.b32.xlu0 %v1392, 16
        %v1532 = vpop.permute.xlu0 %1531
        %1533 = vrot.lane.b32.xlu0 %v1394, 16
        %v1534 = vpop.permute.xlu0 %1533
        %1539 = vrot.lane.b32.xlu0 %v1406, 112
        %v1540 = vpop.permute.xlu0 %1539
        %1541 = vrot.lane.b32.xlu0 %v1408, 112
        %v1542 = vpop.permute.xlu0 %1541
        %1543 = vrot.lane.b32.xlu0 %v1411, 112
        %v1544 = vpop.permute.xlu0 %1543
        %1545 = vrot.lane.b32.xlu0 %v1413, 112
        %v1546 = vpop.permute.xlu0 %1545
        %1551 = vrot.lane.b32.xlu0 %v1406, 96
        %v1552 = vpop.permute.xlu0 %1551
        %1553 = vrot.lane.b32.xlu0 %v1408, 96
        %v1554 = vpop.permute.xlu0 %1553
        %1555 = vrot.lane.b32.xlu0 %v1411, 96
        %v1556 = vpop.permute.xlu0 %1555
        %1557 = vrot.lane.b32.xlu0 %v1413, 96
        %v1558 = vpop.permute.xlu0 %1557
        %1563 = vrot.lane.b32.xlu0 %v1406, 80
        %v1564 = vpop.permute.xlu0 %1563
        %1565 = vrot.lane.b32.xlu0 %v1408, 80
        %v1566 = vpop.permute.xlu0 %1565
        %1567 = vrot.lane.b32.xlu0 %v1411, 80
        %v1568 = vpop.permute.xlu0 %1567
        %1569 = vrot.lane.b32.xlu0 %v1413, 80
        %v1570 = vpop.permute.xlu0 %1569
        %1575 = vrot.lane.b32.xlu0 %v1406, 64
        %v1576 = vpop.permute.xlu0 %1575
        %1577 = vrot.lane.b32.xlu0 %v1408, 64
        %v1578 = vpop.permute.xlu0 %1577
        %1579 = vrot.lane.b32.xlu0 %v1411, 64
        %v1580 = vpop.permute.xlu0 %1579
        %1581 = vrot.lane.b32.xlu0 %v1413, 64
        %v1582 = vpop.permute.xlu0 %1581
        %1587 = vrot.lane.b32.xlu0 %v1406, 48
        %v1588 = vpop.permute.xlu0 %1587
        %1589 = vrot.lane.b32.xlu0 %v1408, 48
        %v1590 = vpop.permute.xlu0 %1589
        %1591 = vrot.lane.b32.xlu0 %v1411, 48
        %v1592 = vpop.permute.xlu0 %1591
        %1593 = vrot.lane.b32.xlu0 %v1413, 48
        %v1594 = vpop.permute.xlu0 %1593
        %1599 = vrot.lane.b32.xlu0 %v1406, 32
        %v1600 = vpop.permute.xlu0 %1599
        %1601 = vrot.lane.b32.xlu0 %v1408, 32
        %v1602 = vpop.permute.xlu0 %1601
        %1603 = vrot.lane.b32.xlu0 %v1411, 32
        %v1604 = vpop.permute.xlu0 %1603
        %1605 = vrot.lane.b32.xlu0 %v1413, 32
        %v1606 = vpop.permute.xlu0 %1605
        %1611 = vrot.lane.b32.xlu0 %v1406, 16
        %v1612 = vpop.permute.xlu0 %1611
        %1613 = vrot.lane.b32.xlu0 %v1408, 16
        %v1614 = vpop.permute.xlu0 %1613
        %1615 = vrot.lane.b32.xlu0 %v1411, 16
        %v1616 = vpop.permute.xlu0 %1615
        %1617 = vrot.lane.b32.xlu0 %v1413, 16
        %v1618 = vpop.permute.xlu0 %1617
        %vm1623 = vcmask 130048
        %v1624 = vsel %vm1623, %v1368, 0
        %v1626 = vsel %vm1623, %v1370, 0
        %v1628 = vsel %vm1623, %v1387, 0
        %v1630 = vsel %vm1623, %v1389, 0
        %1632 = vmatpush.xpose.msra.mxu0 0.0
        %1633 = vmatpush.xpose.msra.mxu0 0.0
        %1634 = vmatpush.xpose.msra.mxu0 0.0
        %1635 = vmatpush.xpose.msra.mxu0 0.0
        %1636 = vmatpush.xpose.msra.mxu0 0.0
        %1637 = vmatpush.xpose.msra.mxu0 0.0
        %1638 = vmatpush.xpose.msra.mxu0 0.0
        %1639 = vmatpush.xpose.msra.mxu0 0.0
        %1640 = vmatpush.xpose.msra.mxu0 0.0
        %1641 = vmatpush.xpose.msra.mxu0 0.0
        %1642 = vmatpush.xpose.msra.mxu0 0.0
        %1643 = vmatpush.xpose.msra.mxu0 0.0
        %1644 = vmatpush.xpose.msra.mxu0 0.0
        %1645 = vmatpush.xpose.msra.mxu0 0.0
        %1646 = vmatpush.xpose.msra.mxu0 %v1630
        %1647 = vmatpush.xpose.msra.mxu0 %v1628
        %1648 = vmatmul.f32.gmra.mxu0 %v1624
        %v1649 = vpop.f32.mrf.mxu0
        %v1650 = vadd.f32 0.0, %v1649
        %1651 = vmatmul.f32.gmra.mxu0 %v1626
        %v1652 = vpop.f32.mrf.mxu0
        %v1653 = vadd.f32 0.0, %v1652
        %1654 = vdwg.mxu0
        %v1655 = vsel %vm1623, %v1373, 0
        %v1657 = vsel %vm1623, %v1375, 0
        %v1659 = vsel %vm1623, %v1392, 0
        %v1661 = vsel %vm1623, %v1394, 0
        %1663 = vmatpush.xpose.msra.mxu0 0.0
        %1664 = vmatpush.xpose.msra.mxu0 0.0
        %1665 = vmatpush.xpose.msra.mxu0 0.0
        %1666 = vmatpush.xpose.msra.mxu0 0.0
        %1667 = vmatpush.xpose.msra.mxu0 0.0
        %1668 = vmatpush.xpose.msra.mxu0 0.0
        %1669 = vmatpush.xpose.msra.mxu0 0.0
        %1670 = vmatpush.xpose.msra.mxu0 0.0
        %1671 = vmatpush.xpose.msra.mxu0 0.0
        %1672 = vmatpush.xpose.msra.mxu0 0.0
        %1673 = vmatpush.xpose.msra.mxu0 0.0
        %1674 = vmatpush.xpose.msra.mxu0 0.0
        %1675 = vmatpush.xpose.msra.mxu0 0.0
        %1676 = vmatpush.xpose.msra.mxu0 0.0
        %1677 = vmatpush.xpose.msra.mxu0 %v1661
        %1678 = vmatpush.xpose.msra.mxu0 %v1659
        %1679 = vmatmul.f32.gmra.mxu0 %v1655
        %v1680 = vpop.f32.mrf.mxu0
        %v1681 = vadd.f32 0.0, %v1680
        %1682 = vmatmul.f32.gmra.mxu0 %v1657
        %v1683 = vpop.f32.mrf.mxu0
        %v1684 = vadd.f32 0.0, %v1683
        %1685 = vdwg.mxu0
        %v1686 = vsel %vm1623, %v1420, 0
        %v1688 = vsel %vm1623, %v1422, 0
        %v1690 = vsel %vm1623, %v1480, 0
        %v1692 = vsel %vm1623, %v1482, 0
        %1694 = vmatpush.xpose.msra.mxu0 0.0
        %1695 = vmatpush.xpose.msra.mxu0 0.0
        %1696 = vmatpush.xpose.msra.mxu0 0.0
        %1697 = vmatpush.xpose.msra.mxu0 0.0
        %1698 = vmatpush.xpose.msra.mxu0 0.0
        %1699 = vmatpush.xpose.msra.mxu0 0.0
        %1700 = vmatpush.xpose.msra.mxu0 0.0
        %1701 = vmatpush.xpose.msra.mxu0 0.0
        %1702 = vmatpush.xpose.msra.mxu0 0.0
        %1703 = vmatpush.xpose.msra.mxu0 0.0
        %1704 = vmatpush.xpose.msra.mxu0 0.0
        %1705 = vmatpush.xpose.msra.mxu0 0.0
        %1706 = vmatpush.xpose.msra.mxu0 0.0
        %1707 = vmatpush.xpose.msra.mxu0 0.0
        %1708 = vmatpush.xpose.msra.mxu0 %v1692
        %1709 = vmatpush.xpose.msra.mxu0 %v1690
        %1710 = vmatmul.f32.gmra.mxu0 %v1686
        %v1711 = vpop.f32.mrf.mxu0
        %v1712 = vadd.f32 0.0, %v1711
        %1713 = vmatmul.f32.gmra.mxu0 %v1688
        %v1714 = vpop.f32.mrf.mxu0
        %v1715 = vadd.f32 0.0, %v1714
        %1716 = vdwg.mxu0
        %v1717 = vsel %vm1623, %v1424, 0
        %v1719 = vsel %vm1623, %v1426, 0
        %v1721 = vsel %vm1623, %v1484, 0
        %v1723 = vsel %vm1623, %v1486, 0
        %1725 = vmatpush.xpose.msra.mxu0 0.0
        %1726 = vmatpush.xpose.msra.mxu0 0.0
        %1727 = vmatpush.xpose.msra.mxu0 0.0
        %1728 = vmatpush.xpose.msra.mxu0 0.0
        %1729 = vmatpush.xpose.msra.mxu0 0.0
        %1730 = vmatpush.xpose.msra.mxu0 0.0
        %1731 = vmatpush.xpose.msra.mxu0 0.0
        %1732 = vmatpush.xpose.msra.mxu0 0.0
        %1733 = vmatpush.xpose.msra.mxu0 0.0
        %1734 = vmatpush.xpose.msra.mxu0 0.0
        %1735 = vmatpush.xpose.msra.mxu0 0.0
        %1736 = vmatpush.xpose.msra.mxu0 0.0
        %1737 = vmatpush.xpose.msra.mxu0 0.0
        %1738 = vmatpush.xpose.msra.mxu0 0.0
        %1739 = vmatpush.xpose.msra.mxu0 %v1723
        %1740 = vmatpush.xpose.msra.mxu0 %v1721
        %1741 = vmatmul.f32.gmra.mxu0 %v1717
        %v1742 = vpop.f32.mrf.mxu0
        %v1743 = vadd.f32 0.0, %v1742
        %1744 = vmatmul.f32.gmra.mxu0 %v1719
        %v1745 = vpop.f32.mrf.mxu0
        %v1746 = vadd.f32 0.0, %v1745
        %1747 = vdwg.mxu0
        %v1748 = vsel %vm1623, %v1428, 0
        %v1750 = vsel %vm1623, %v1430, 0
        %v1752 = vsel %vm1623, %v1488, 0
        %v1754 = vsel %vm1623, %v1490, 0
        %1756 = vmatpush.xpose.msra.mxu0 0.0
        %1757 = vmatpush.xpose.msra.mxu0 0.0
        %1758 = vmatpush.xpose.msra.mxu0 0.0
        %1759 = vmatpush.xpose.msra.mxu0 0.0
        %1760 = vmatpush.xpose.msra.mxu0 0.0
        %1761 = vmatpush.xpose.msra.mxu0 0.0
        %1762 = vmatpush.xpose.msra.mxu0 0.0
        %1763 = vmatpush.xpose.msra.mxu0 0.0
        %1764 = vmatpush.xpose.msra.mxu0 0.0
        %1765 = vmatpush.xpose.msra.mxu0 0.0
        %1766 = vmatpush.xpose.msra.mxu0 0.0
        %1767 = vmatpush.xpose.msra.mxu0 0.0
        %1768 = vmatpush.xpose.msra.mxu0 0.0
        %1769 = vmatpush.xpose.msra.mxu0 0.0
        %1770 = vmatpush.xpose.msra.mxu0 %v1754
        %1771 = vmatpush.xpose.msra.mxu0 %v1752
        %1772 = vmatmul.f32.gmra.mxu0 %v1748
        %v1773 = vpop.f32.mrf.mxu0
        %v1774 = vadd.f32 0.0, %v1773
        %1775 = vmatmul.f32.gmra.mxu0 %v1750
        %v1776 = vpop.f32.mrf.mxu0
        %v1777 = vadd.f32 0.0, %v1776
        %1778 = vdwg.mxu0
        %v1779 = vsel %vm1623, %v1432, 0
        %v1781 = vsel %vm1623, %v1434, 0
        %v1783 = vsel %vm1623, %v1492, 0
        %v1785 = vsel %vm1623, %v1494, 0
        %1787 = vmatpush.xpose.msra.mxu0 0.0
        %1788 = vmatpush.xpose.msra.mxu0 0.0
        %1789 = vmatpush.xpose.msra.mxu0 0.0
        %1790 = vmatpush.xpose.msra.mxu0 0.0
        %1791 = vmatpush.xpose.msra.mxu0 0.0
        %1792 = vmatpush.xpose.msra.mxu0 0.0
        %1793 = vmatpush.xpose.msra.mxu0 0.0
        %1794 = vmatpush.xpose.msra.mxu0 0.0
        %1795 = vmatpush.xpose.msra.mxu0 0.0
        %1796 = vmatpush.xpose.msra.mxu0 0.0
        %1797 = vmatpush.xpose.msra.mxu0 0.0
        %1798 = vmatpush.xpose.msra.mxu0 0.0
        %1799 = vmatpush.xpose.msra.mxu0 0.0
        %1800 = vmatpush.xpose.msra.mxu0 0.0
        %1801 = vmatpush.xpose.msra.mxu0 %v1785
        %1802 = vmatpush.xpose.msra.mxu0 %v1783
        %1803 = vmatmul.f32.gmra.mxu0 %v1779
        %v1804 = vpop.f32.mrf.mxu0
        %v1805 = vadd.f32 0.0, %v1804
        %1806 = vmatmul.f32.gmra.mxu0 %v1781
        %v1807 = vpop.f32.mrf.mxu0
        %v1808 = vadd.f32 0.0, %v1807
        %1809 = vdwg.mxu0
        %v1810 = vsel %vm1623, %v1436, 0
        %v1812 = vsel %vm1623, %v1438, 0
        %v1814 = vsel %vm1623, %v1496, 0
        %v1816 = vsel %vm1623, %v1498, 0
        %1818 = vmatpush.xpose.msra.mxu0 0.0
        %1819 = vmatpush.xpose.msra.mxu0 0.0
        %1820 = vmatpush.xpose.msra.mxu0 0.0
        %1821 = vmatpush.xpose.msra.mxu0 0.0
        %1822 = vmatpush.xpose.msra.mxu0 0.0
        %1823 = vmatpush.xpose.msra.mxu0 0.0
        %1824 = vmatpush.xpose.msra.mxu0 0.0
        %1825 = vmatpush.xpose.msra.mxu0 0.0
        %1826 = vmatpush.xpose.msra.mxu0 0.0
        %1827 = vmatpush.xpose.msra.mxu0 0.0
        %1828 = vmatpush.xpose.msra.mxu0 0.0
        %1829 = vmatpush.xpose.msra.mxu0 0.0
        %1830 = vmatpush.xpose.msra.mxu0 0.0
        %1831 = vmatpush.xpose.msra.mxu0 0.0
        %1832 = vmatpush.xpose.msra.mxu0 %v1816
        %1833 = vmatpush.xpose.msra.mxu0 %v1814
        %1834 = vmatmul.f32.gmra.mxu0 %v1810
        %v1835 = vpop.f32.mrf.mxu0
        %v1836 = vadd.f32 0.0, %v1835
        %1837 = vmatmul.f32.gmra.mxu0 %v1812
        %v1838 = vpop.f32.mrf.mxu0
        %v1839 = vadd.f32 0.0, %v1838
        %1840 = vdwg.mxu0
        %v1841 = vsel %vm1623, %v1440, 0
        %v1843 = vsel %vm1623, %v1442, 0
        %v1845 = vsel %vm1623, %v1500, 0
        %v1847 = vsel %vm1623, %v1502, 0
        %1849 = vmatpush.xpose.msra.mxu0 0.0
        %1850 = vmatpush.xpose.msra.mxu0 0.0
        %1851 = vmatpush.xpose.msra.mxu0 0.0
        %1852 = vmatpush.xpose.msra.mxu0 0.0
        %1853 = vmatpush.xpose.msra.mxu0 0.0
        %1854 = vmatpush.xpose.msra.mxu0 0.0
        %1855 = vmatpush.xpose.msra.mxu0 0.0
        %1856 = vmatpush.xpose.msra.mxu0 0.0
        %1857 = vmatpush.xpose.msra.mxu0 0.0
        %1858 = vmatpush.xpose.msra.mxu0 0.0
        %1859 = vmatpush.xpose.msra.mxu0 0.0
        %1860 = vmatpush.xpose.msra.mxu0 0.0
        %1861 = vmatpush.xpose.msra.mxu0 0.0
        %1862 = vmatpush.xpose.msra.mxu0 0.0
        %1863 = vmatpush.xpose.msra.mxu0 %v1847
        %1864 = vmatpush.xpose.msra.mxu0 %v1845
        %1865 = vmatmul.f32.gmra.mxu0 %v1841
        %v1866 = vpop.f32.mrf.mxu0
        %v1867 = vadd.f32 0.0, %v1866
        %1868 = vmatmul.f32.gmra.mxu0 %v1843
        %v1869 = vpop.f32.mrf.mxu0
        %v1870 = vadd.f32 0.0, %v1869
        %1871 = vdwg.mxu0
        %v1872 = vsel %vm1623, %v1444, 0
        %v1874 = vsel %vm1623, %v1446, 0
        %v1876 = vsel %vm1623, %v1504, 0
        %v1878 = vsel %vm1623, %v1506, 0
        %1880 = vmatpush.xpose.msra.mxu0 0.0
        %1881 = vmatpush.xpose.msra.mxu0 0.0
        %1882 = vmatpush.xpose.msra.mxu0 0.0
        %1883 = vmatpush.xpose.msra.mxu0 0.0
        %1884 = vmatpush.xpose.msra.mxu0 0.0
        %1885 = vmatpush.xpose.msra.mxu0 0.0
        %1886 = vmatpush.xpose.msra.mxu0 0.0
        %1887 = vmatpush.xpose.msra.mxu0 0.0
        %1888 = vmatpush.xpose.msra.mxu0 0.0
        %1889 = vmatpush.xpose.msra.mxu0 0.0
        %1890 = vmatpush.xpose.msra.mxu0 0.0
        %1891 = vmatpush.xpose.msra.mxu0 0.0
        %1892 = vmatpush.xpose.msra.mxu0 0.0
        %1893 = vmatpush.xpose.msra.mxu0 0.0
        %1894 = vmatpush.xpose.msra.mxu0 %v1878
        %1895 = vmatpush.xpose.msra.mxu0 %v1876
        %1896 = vmatmul.f32.gmra.mxu0 %v1872
        %v1897 = vpop.f32.mrf.mxu0
        %v1898 = vadd.f32 0.0, %v1897
        %1899 = vmatmul.f32.gmra.mxu0 %v1874
        %v1900 = vpop.f32.mrf.mxu0
        %v1901 = vadd.f32 0.0, %v1900
        %1902 = vdwg.mxu0
        %v1903 = vsel %vm1623, %v1448, 0
        %v1905 = vsel %vm1623, %v1450, 0
        %v1907 = vsel %vm1623, %v1508, 0
        %v1909 = vsel %vm1623, %v1510, 0
        %1911 = vmatpush.xpose.msra.mxu0 0.0
        %1912 = vmatpush.xpose.msra.mxu0 0.0
        %1913 = vmatpush.xpose.msra.mxu0 0.0
        %1914 = vmatpush.xpose.msra.mxu0 0.0
        %1915 = vmatpush.xpose.msra.mxu0 0.0
        %1916 = vmatpush.xpose.msra.mxu0 0.0
        %1917 = vmatpush.xpose.msra.mxu0 0.0
        %1918 = vmatpush.xpose.msra.mxu0 0.0
        %1919 = vmatpush.xpose.msra.mxu0 0.0
        %1920 = vmatpush.xpose.msra.mxu0 0.0
        %1921 = vmatpush.xpose.msra.mxu0 0.0
        %1922 = vmatpush.xpose.msra.mxu0 0.0
        %1923 = vmatpush.xpose.msra.mxu0 0.0
        %1924 = vmatpush.xpose.msra.mxu0 0.0
        %1925 = vmatpush.xpose.msra.mxu0 %v1909
        %1926 = vmatpush.xpose.msra.mxu0 %v1907
        %1927 = vmatmul.f32.gmra.mxu0 %v1903
        %v1928 = vpop.f32.mrf.mxu0
        %v1929 = vadd.f32 0.0, %v1928
        %1930 = vmatmul.f32.gmra.mxu0 %v1905
        %v1931 = vpop.f32.mrf.mxu0
        %v1932 = vadd.f32 0.0, %v1931
        %1933 = vdwg.mxu0
        %v1934 = vsel %vm1623, %v1452, 0
        %v1936 = vsel %vm1623, %v1454, 0
        %v1938 = vsel %vm1623, %v1512, 0
        %v1940 = vsel %vm1623, %v1514, 0
        %1942 = vmatpush.xpose.msra.mxu0 0.0
        %1943 = vmatpush.xpose.msra.mxu0 0.0
        %1944 = vmatpush.xpose.msra.mxu0 0.0
        %1945 = vmatpush.xpose.msra.mxu0 0.0
        %1946 = vmatpush.xpose.msra.mxu0 0.0
        %1947 = vmatpush.xpose.msra.mxu0 0.0
        %1948 = vmatpush.xpose.msra.mxu0 0.0
        %1949 = vmatpush.xpose.msra.mxu0 0.0
        %1950 = vmatpush.xpose.msra.mxu0 0.0
        %1951 = vmatpush.xpose.msra.mxu0 0.0
        %1952 = vmatpush.xpose.msra.mxu0 0.0
        %1953 = vmatpush.xpose.msra.mxu0 0.0
        %1954 = vmatpush.xpose.msra.mxu0 0.0
        %1955 = vmatpush.xpose.msra.mxu0 0.0
        %1956 = vmatpush.xpose.msra.mxu0 %v1940
        %1957 = vmatpush.xpose.msra.mxu0 %v1938
        %1958 = vmatmul.f32.gmra.mxu0 %v1934
        %v1959 = vpop.f32.mrf.mxu0
        %v1960 = vadd.f32 0.0, %v1959
        %1961 = vmatmul.f32.gmra.mxu0 %v1936
        %v1962 = vpop.f32.mrf.mxu0
        %v1963 = vadd.f32 0.0, %v1962
        %1964 = vdwg.mxu0
        %v1965 = vsel %vm1623, %v1456, 0
        %v1967 = vsel %vm1623, %v1458, 0
        %v1969 = vsel %vm1623, %v1516, 0
        %v1971 = vsel %vm1623, %v1518, 0
        %1973 = vmatpush.xpose.msra.mxu0 0.0
        %1974 = vmatpush.xpose.msra.mxu0 0.0
        %1975 = vmatpush.xpose.msra.mxu0 0.0
        %1976 = vmatpush.xpose.msra.mxu0 0.0
        %1977 = vmatpush.xpose.msra.mxu0 0.0
        %1978 = vmatpush.xpose.msra.mxu0 0.0
        %1979 = vmatpush.xpose.msra.mxu0 0.0
        %1980 = vmatpush.xpose.msra.mxu0 0.0
        %1981 = vmatpush.xpose.msra.mxu0 0.0
        %1982 = vmatpush.xpose.msra.mxu0 0.0
        %1983 = vmatpush.xpose.msra.mxu0 0.0
        %1984 = vmatpush.xpose.msra.mxu0 0.0
        %1985 = vmatpush.xpose.msra.mxu0 0.0
        %1986 = vmatpush.xpose.msra.mxu0 0.0
        %1987 = vmatpush.xpose.msra.mxu0 %v1971
        %1988 = vmatpush.xpose.msra.mxu0 %v1969
        %1989 = vmatmul.f32.gmra.mxu0 %v1965
        %v1990 = vpop.f32.mrf.mxu0
        %v1991 = vadd.f32 0.0, %v1990
        %1992 = vmatmul.f32.gmra.mxu0 %v1967
        %v1993 = vpop.f32.mrf.mxu0
        %v1994 = vadd.f32 0.0, %v1993
        %1995 = vdwg.mxu0
        %v1996 = vsel %vm1623, %v1460, 0
        %v1998 = vsel %vm1623, %v1462, 0
        %v2000 = vsel %vm1623, %v1520, 0
        %v2002 = vsel %vm1623, %v1522, 0
        %2004 = vmatpush.xpose.msra.mxu0 0.0
        %2005 = vmatpush.xpose.msra.mxu0 0.0
        %2006 = vmatpush.xpose.msra.mxu0 0.0
        %2007 = vmatpush.xpose.msra.mxu0 0.0
        %2008 = vmatpush.xpose.msra.mxu0 0.0
        %2009 = vmatpush.xpose.msra.mxu0 0.0
        %2010 = vmatpush.xpose.msra.mxu0 0.0
        %2011 = vmatpush.xpose.msra.mxu0 0.0
        %2012 = vmatpush.xpose.msra.mxu0 0.0
        %2013 = vmatpush.xpose.msra.mxu0 0.0
        %2014 = vmatpush.xpose.msra.mxu0 0.0
        %2015 = vmatpush.xpose.msra.mxu0 0.0
        %2016 = vmatpush.xpose.msra.mxu0 0.0
        %2017 = vmatpush.xpose.msra.mxu0 0.0
        %2018 = vmatpush.xpose.msra.mxu0 %v2002
        %2019 = vmatpush.xpose.msra.mxu0 %v2000
        %2020 = vmatmul.f32.gmra.mxu0 %v1996
        %v2021 = vpop.f32.mrf.mxu0
        %v2022 = vadd.f32 0.0, %v2021
        %2023 = vmatmul.f32.gmra.mxu0 %v1998
        %v2024 = vpop.f32.mrf.mxu0
        %v2025 = vadd.f32 0.0, %v2024
        %2026 = vdwg.mxu0
        %v2027 = vsel %vm1623, %v1464, 0
        %v2029 = vsel %vm1623, %v1466, 0
        %v2031 = vsel %vm1623, %v1524, 0
        %v2033 = vsel %vm1623, %v1526, 0
        %2035 = vmatpush.xpose.msra.mxu0 0.0
        %2036 = vmatpush.xpose.msra.mxu0 0.0
        %2037 = vmatpush.xpose.msra.mxu0 0.0
        %2038 = vmatpush.xpose.msra.mxu0 0.0
        %2039 = vmatpush.xpose.msra.mxu0 0.0
        %2040 = vmatpush.xpose.msra.mxu0 0.0
        %2041 = vmatpush.xpose.msra.mxu0 0.0
        %2042 = vmatpush.xpose.msra.mxu0 0.0
        %2043 = vmatpush.xpose.msra.mxu0 0.0
        %2044 = vmatpush.xpose.msra.mxu0 0.0
        %2045 = vmatpush.xpose.msra.mxu0 0.0
        %2046 = vmatpush.xpose.msra.mxu0 0.0
        %2047 = vmatpush.xpose.msra.mxu0 0.0
        %2048 = vmatpush.xpose.msra.mxu0 0.0
        %2049 = vmatpush.xpose.msra.mxu0 %v2033
        %2050 = vmatpush.xpose.msra.mxu0 %v2031
        %2051 = vmatmul.f32.gmra.mxu0 %v2027
        %v2052 = vpop.f32.mrf.mxu0
        %v2053 = vadd.f32 0.0, %v2052
        %2054 = vmatmul.f32.gmra.mxu0 %v2029
        %v2055 = vpop.f32.mrf.mxu0
        %v2056 = vadd.f32 0.0, %v2055
        %2057 = vdwg.mxu0
        %v2058 = vsel %vm1623, %v1468, 0
        %v2060 = vsel %vm1623, %v1470, 0
        %v2062 = vsel %vm1623, %v1528, 0
        %v2064 = vsel %vm1623, %v1530, 0
        %2066 = vmatpush.xpose.msra.mxu0 0.0
        %2067 = vmatpush.xpose.msra.mxu0 0.0
        %2068 = vmatpush.xpose.msra.mxu0 0.0
        %2069 = vmatpush.xpose.msra.mxu0 0.0
        %2070 = vmatpush.xpose.msra.mxu0 0.0
        %2071 = vmatpush.xpose.msra.mxu0 0.0
        %2072 = vmatpush.xpose.msra.mxu0 0.0
        %2073 = vmatpush.xpose.msra.mxu0 0.0
        %2074 = vmatpush.xpose.msra.mxu0 0.0
        %2075 = vmatpush.xpose.msra.mxu0 0.0
        %2076 = vmatpush.xpose.msra.mxu0 0.0
        %2077 = vmatpush.xpose.msra.mxu0 0.0
        %2078 = vmatpush.xpose.msra.mxu0 0.0
        %2079 = vmatpush.xpose.msra.mxu0 0.0
        %2080 = vmatpush.xpose.msra.mxu0 %v2064
        %2081 = vmatpush.xpose.msra.mxu0 %v2062
        %2082 = vmatmul.f32.gmra.mxu0 %v2058
        %v2083 = vpop.f32.mrf.mxu0
        %v2084 = vadd.f32 0.0, %v2083
        %2085 = vmatmul.f32.gmra.mxu0 %v2060
        %v2086 = vpop.f32.mrf.mxu0
        %v2087 = vadd.f32 0.0, %v2086
        %2088 = vdwg.mxu0
        %v2089 = vsel %vm1623, %v1472, 0
        %v2091 = vsel %vm1623, %v1474, 0
        %v2093 = vsel %vm1623, %v1532, 0
        %v2095 = vsel %vm1623, %v1534, 0
        %2097 = vmatpush.xpose.msra.mxu0 0.0
        %2098 = vmatpush.xpose.msra.mxu0 0.0
        %2099 = vmatpush.xpose.msra.mxu0 0.0
        %2100 = vmatpush.xpose.msra.mxu0 0.0
        %2101 = vmatpush.xpose.msra.mxu0 0.0
        %2102 = vmatpush.xpose.msra.mxu0 0.0
        %2103 = vmatpush.xpose.msra.mxu0 0.0
        %2104 = vmatpush.xpose.msra.mxu0 0.0
        %2105 = vmatpush.xpose.msra.mxu0 0.0
        %2106 = vmatpush.xpose.msra.mxu0 0.0
        %2107 = vmatpush.xpose.msra.mxu0 0.0
        %2108 = vmatpush.xpose.msra.mxu0 0.0
        %2109 = vmatpush.xpose.msra.mxu0 0.0
        %2110 = vmatpush.xpose.msra.mxu0 0.0
        %2111 = vmatpush.xpose.msra.mxu0 %v2095
        %2112 = vmatpush.xpose.msra.mxu0 %v2093
        %2113 = vmatmul.f32.gmra.mxu0 %v2089
        %v2114 = vpop.f32.mrf.mxu0
        %v2115 = vadd.f32 0.0, %v2114
        %2116 = vmatmul.f32.gmra.mxu0 %v2091
        %v2117 = vpop.f32.mrf.mxu0
        %v2118 = vadd.f32 0.0, %v2117
        %2119 = vdwg.mxu0
        %v2120 = vsel %vm1623, %v1650, -inf
        %2121 = vmax.xlane.f32.xlu0 %v2120
        %v2122 = vpop.xlane.xlu0 %2121
        %v2123 = vsel %vm1623, %v1653, -inf
        %2124 = vmax.xlane.f32.xlu0 %v2123
        %v2125 = vpop.xlane.xlu0 %2124
        %v2126 = vsel %vm1623, %v1681, -inf
        %2127 = vmax.xlane.f32.xlu0 %v2126
        %v2128 = vpop.xlane.xlu0 %2127
        %v2129 = vsel %vm1623, %v1684, -inf
        %2130 = vmax.xlane.f32.xlu0 %v2129
        %v2131 = vpop.xlane.xlu0 %2130
        %v2132 = vsel %vm1623, %v1712, -inf
        %2133 = vmax.xlane.f32.xlu0 %v2132
        %v2134 = vpop.xlane.xlu0 %2133
        %v2135 = vsel %vm1623, %v1715, -inf
        %2136 = vmax.xlane.f32.xlu0 %v2135
        %v2137 = vpop.xlane.xlu0 %2136
        %v2138 = vsel %vm1623, %v1743, -inf
        %2139 = vmax.xlane.f32.xlu0 %v2138
        %v2140 = vpop.xlane.xlu0 %2139
        %v2141 = vsel %vm1623, %v1746, -inf
        %2142 = vmax.xlane.f32.xlu0 %v2141
        %v2143 = vpop.xlane.xlu0 %2142
        %v2144 = vsel %vm1623, %v1774, -inf
        %2145 = vmax.xlane.f32.xlu0 %v2144
        %v2146 = vpop.xlane.xlu0 %2145
        %v2147 = vsel %vm1623, %v1777, -inf
        %2148 = vmax.xlane.f32.xlu0 %v2147
        %v2149 = vpop.xlane.xlu0 %2148
        %v2150 = vsel %vm1623, %v1805, -inf
        %2151 = vmax.xlane.f32.xlu0 %v2150
        %v2152 = vpop.xlane.xlu0 %2151
        %v2153 = vsel %vm1623, %v1808, -inf
        %2154 = vmax.xlane.f32.xlu0 %v2153
        %v2155 = vpop.xlane.xlu0 %2154
        %v2156 = vsel %vm1623, %v1836, -inf
        %2157 = vmax.xlane.f32.xlu0 %v2156
        %v2158 = vpop.xlane.xlu0 %2157
        %v2159 = vsel %vm1623, %v1839, -inf
        %2160 = vmax.xlane.f32.xlu0 %v2159
        %v2161 = vpop.xlane.xlu0 %2160
        %v2162 = vsel %vm1623, %v1867, -inf
        %2163 = vmax.xlane.f32.xlu0 %v2162
        %v2164 = vpop.xlane.xlu0 %2163
        %v2165 = vsel %vm1623, %v1870, -inf
        %2166 = vmax.xlane.f32.xlu0 %v2165
        %v2167 = vpop.xlane.xlu0 %2166
        %v2168 = vsel %vm1623, %v1898, -inf
        %2169 = vmax.xlane.f32.xlu0 %v2168
        %v2170 = vpop.xlane.xlu0 %2169
        %v2171 = vsel %vm1623, %v1901, -inf
        %2172 = vmax.xlane.f32.xlu0 %v2171
        %v2173 = vpop.xlane.xlu0 %2172
        %v2174 = vsel %vm1623, %v1929, -inf
        %2175 = vmax.xlane.f32.xlu0 %v2174
        %v2176 = vpop.xlane.xlu0 %2175
        %v2177 = vsel %vm1623, %v1932, -inf
        %2178 = vmax.xlane.f32.xlu0 %v2177
        %v2179 = vpop.xlane.xlu0 %2178
        %v2180 = vsel %vm1623, %v1960, -inf
        %2181 = vmax.xlane.f32.xlu0 %v2180
        %v2182 = vpop.xlane.xlu0 %2181
        %v2183 = vsel %vm1623, %v1963, -inf
        %2184 = vmax.xlane.f32.xlu0 %v2183
        %v2185 = vpop.xlane.xlu0 %2184
        %v2186 = vsel %vm1623, %v1991, -inf
        %2187 = vmax.xlane.f32.xlu0 %v2186
        %v2188 = vpop.xlane.xlu0 %2187
        %v2189 = vsel %vm1623, %v1994, -inf
        %2190 = vmax.xlane.f32.xlu0 %v2189
        %v2191 = vpop.xlane.xlu0 %2190
        %v2192 = vsel %vm1623, %v2022, -inf
        %2193 = vmax.xlane.f32.xlu0 %v2192
        %v2194 = vpop.xlane.xlu0 %2193
        %v2195 = vsel %vm1623, %v2025, -inf
        %2196 = vmax.xlane.f32.xlu0 %v2195
        %v2197 = vpop.xlane.xlu0 %2196
        %v2198 = vsel %vm1623, %v2053, -inf
        %2199 = vmax.xlane.f32.xlu0 %v2198
        %v2200 = vpop.xlane.xlu0 %2199
        %v2201 = vsel %vm1623, %v2056, -inf
        %2202 = vmax.xlane.f32.xlu0 %v2201
        %v2203 = vpop.xlane.xlu0 %2202
        %v2204 = vsel %vm1623, %v2084, -inf
        %2205 = vmax.xlane.f32.xlu0 %v2204
        %v2206 = vpop.xlane.xlu0 %2205
        %v2207 = vsel %vm1623, %v2087, -inf
        %2208 = vmax.xlane.f32.xlu0 %v2207
        %v2209 = vpop.xlane.xlu0 %2208
        %v2210 = vsel %vm1623, %v2115, -inf
        %2211 = vmax.xlane.f32.xlu0 %v2210
        %v2212 = vpop.xlane.xlu0 %2211
        %v2213 = vsel %vm1623, %v2118, -inf
        %2214 = vmax.xlane.f32.xlu0 %v2213
        %v2215 = vpop.xlane.xlu0 %2214
        %v2216 = vsub.f32 %v1650, %v2122
        %v2217 = vsub.f32 %v1653, %v2125
        %v2218 = vsub.f32 %v1681, %v2128
        %v2219 = vsub.f32 %v1684, %v2131
        %v2220 = vsub.f32 %v1712, %v2134
        %v2221 = vsub.f32 %v1715, %v2137
        %v2222 = vsub.f32 %v1743, %v2140
        %v2223 = vsub.f32 %v1746, %v2143
        %v2224 = vsub.f32 %v1774, %v2146
        %v2225 = vsub.f32 %v1777, %v2149
        %v2226 = vsub.f32 %v1805, %v2152
        %v2227 = vsub.f32 %v1808, %v2155
        %v2228 = vsub.f32 %v1836, %v2158
        %v2229 = vsub.f32 %v1839, %v2161
        %v2230 = vsub.f32 %v1867, %v2164
        %v2231 = vsub.f32 %v1870, %v2167
        %v2232 = vsub.f32 %v1898, %v2170
        %v2233 = vsub.f32 %v1901, %v2173
        %v2234 = vsub.f32 %v1929, %v2176
        %v2235 = vsub.f32 %v1932, %v2179
        %v2236 = vsub.f32 %v1960, %v2182
        %v2237 = vsub.f32 %v1963, %v2185
        %v2238 = vsub.f32 %v1991, %v2188
        %v2239 = vsub.f32 %v1994, %v2191
        %v2240 = vsub.f32 %v2022, %v2194
        %v2241 = vsub.f32 %v2025, %v2197
        %v2242 = vsub.f32 %v2053, %v2200
        %v2243 = vsub.f32 %v2056, %v2203
        %v2244 = vsub.f32 %v2084, %v2206
        %v2245 = vsub.f32 %v2087, %v2209
        %v2246 = vsub.f32 %v2115, %v2212
        %v2247 = vsub.f32 %v2118, %v2215
        %v2248 = vmul.f32 %v2216, 1.442695
        %v2249 = vpow.pop %v2248
        %v2250 = vmul.f32 %v2217, 1.442695
        %v2251 = vpow.pop %v2250
        %v2252 = vmul.f32 %v2218, 1.442695
        %v2253 = vpow.pop %v2252
        %v2254 = vmul.f32 %v2219, 1.442695
        %v2255 = vpow.pop %v2254
        %v2256 = vmul.f32 %v2220, 1.442695
        %v2257 = vpow.pop %v2256
        %v2258 = vmul.f32 %v2221, 1.442695
        %v2259 = vpow.pop %v2258
        %v2260 = vmul.f32 %v2222, 1.442695
        %v2261 = vpow.pop %v2260
        %v2262 = vmul.f32 %v2223, 1.442695
        %v2263 = vpow.pop %v2262
        %v2264 = vmul.f32 %v2224, 1.442695
        %v2265 = vpow.pop %v2264
        %v2266 = vmul.f32 %v2225, 1.442695
        %v2267 = vpow.pop %v2266
        %v2268 = vmul.f32 %v2226, 1.442695
        %v2269 = vpow.pop %v2268
        %v2270 = vmul.f32 %v2227, 1.442695
        %v2271 = vpow.pop %v2270
        %v2272 = vmul.f32 %v2228, 1.442695
        %v2273 = vpow.pop %v2272
        %v2274 = vmul.f32 %v2229, 1.442695
        %v2275 = vpow.pop %v2274
        %v2276 = vmul.f32 %v2230, 1.442695
        %v2277 = vpow.pop %v2276
        %v2278 = vmul.f32 %v2231, 1.442695
        %v2279 = vpow.pop %v2278
        %v2280 = vmul.f32 %v2232, 1.442695
        %v2281 = vpow.pop %v2280
        %v2282 = vmul.f32 %v2233, 1.442695
        %v2283 = vpow.pop %v2282
        %v2284 = vmul.f32 %v2234, 1.442695
        %v2285 = vpow.pop %v2284
        %v2286 = vmul.f32 %v2235, 1.442695
        %v2287 = vpow.pop %v2286
        %v2288 = vmul.f32 %v2236, 1.442695
        %v2289 = vpow.pop %v2288
        %v2290 = vmul.f32 %v2237, 1.442695
        %v2291 = vpow.pop %v2290
        %v2292 = vmul.f32 %v2238, 1.442695
        %v2293 = vpow.pop %v2292
        %v2294 = vmul.f32 %v2239, 1.442695
        %v2295 = vpow.pop %v2294
        %v2296 = vmul.f32 %v2240, 1.442695
        %v2297 = vpow.pop %v2296
        %v2298 = vmul.f32 %v2241, 1.442695
        %v2299 = vpow.pop %v2298
        %v2300 = vmul.f32 %v2242, 1.442695
        %v2301 = vpow.pop %v2300
        %v2302 = vmul.f32 %v2243, 1.442695
        %v2303 = vpow.pop %v2302
        %v2304 = vmul.f32 %v2244, 1.442695
        %v2305 = vpow.pop %v2304
        %v2306 = vmul.f32 %v2245, 1.442695
        %v2307 = vpow.pop %v2306
        %v2308 = vmul.f32 %v2246, 1.442695
        %v2309 = vpow.pop %v2308
        %v2310 = vmul.f32 %v2247, 1.442695
        %v2311 = vpow.pop %v2310
        %v2312 = vsel %vm1623, %v2249, 0.0
        %2313 = vadd.xlane.f32.xlu0 %v2312
        %v2314 = vpop.xlane.xlu0 %2313
        %v2315 = vsel %vm1623, %v2251, 0.0
        %2316 = vadd.xlane.f32.xlu0 %v2315
        %v2317 = vpop.xlane.xlu0 %2316
        %v2318 = vsel %vm1623, %v2253, 0.0
        %2319 = vadd.xlane.f32.xlu0 %v2318
        %v2320 = vpop.xlane.xlu0 %2319
        %v2321 = vsel %vm1623, %v2255, 0.0
        %2322 = vadd.xlane.f32.xlu0 %v2321
        %v2323 = vpop.xlane.xlu0 %2322
        %v2324 = vsel %vm1623, %v2257, 0.0
        %2325 = vadd.xlane.f32.xlu0 %v2324
        %v2326 = vpop.xlane.xlu0 %2325
        %v2327 = vsel %vm1623, %v2259, 0.0
        %2328 = vadd.xlane.f32.xlu0 %v2327
        %v2329 = vpop.xlane.xlu0 %2328
        %v2330 = vsel %vm1623, %v2261, 0.0
        %2331 = vadd.xlane.f32.xlu0 %v2330
        %v2332 = vpop.xlane.xlu0 %2331
        %v2333 = vsel %vm1623, %v2263, 0.0
        %2334 = vadd.xlane.f32.xlu0 %v2333
        %v2335 = vpop.xlane.xlu0 %2334
        %v2336 = vsel %vm1623, %v2265, 0.0
        %2337 = vadd.xlane.f32.xlu0 %v2336
        %v2338 = vpop.xlane.xlu0 %2337
        %v2339 = vsel %vm1623, %v2267, 0.0
        %2340 = vadd.xlane.f32.xlu0 %v2339
        %v2341 = vpop.xlane.xlu0 %2340
        %v2342 = vsel %vm1623, %v2269, 0.0
        %2343 = vadd.xlane.f32.xlu0 %v2342
        %v2344 = vpop.xlane.xlu0 %2343
        %v2345 = vsel %vm1623, %v2271, 0.0
        %2346 = vadd.xlane.f32.xlu0 %v2345
        %v2347 = vpop.xlane.xlu0 %2346
        %v2348 = vsel %vm1623, %v2273, 0.0
        %2349 = vadd.xlane.f32.xlu0 %v2348
        %v2350 = vpop.xlane.xlu0 %2349
        %v2351 = vsel %vm1623, %v2275, 0.0
        %2352 = vadd.xlane.f32.xlu0 %v2351
        %v2353 = vpop.xlane.xlu0 %2352
        %v2354 = vsel %vm1623, %v2277, 0.0
        %2355 = vadd.xlane.f32.xlu0 %v2354
        %v2356 = vpop.xlane.xlu0 %2355
        %v2357 = vsel %vm1623, %v2279, 0.0
        %2358 = vadd.xlane.f32.xlu0 %v2357
        %v2359 = vpop.xlane.xlu0 %2358
        %v2360 = vsel %vm1623, %v2281, 0.0
        %2361 = vadd.xlane.f32.xlu0 %v2360
        %v2362 = vpop.xlane.xlu0 %2361
        %v2363 = vsel %vm1623, %v2283, 0.0
        %2364 = vadd.xlane.f32.xlu0 %v2363
        %v2365 = vpop.xlane.xlu0 %2364
        %v2366 = vsel %vm1623, %v2285, 0.0
        %2367 = vadd.xlane.f32.xlu0 %v2366
        %v2368 = vpop.xlane.xlu0 %2367
        %v2369 = vsel %vm1623, %v2287, 0.0
        %2370 = vadd.xlane.f32.xlu0 %v2369
        %v2371 = vpop.xlane.xlu0 %2370
        %v2372 = vsel %vm1623, %v2289, 0.0
        %2373 = vadd.xlane.f32.xlu0 %v2372
        %v2374 = vpop.xlane.xlu0 %2373
        %v2375 = vsel %vm1623, %v2291, 0.0
        %2376 = vadd.xlane.f32.xlu0 %v2375
        %v2377 = vpop.xlane.xlu0 %2376
        %v2378 = vsel %vm1623, %v2293, 0.0
        %2379 = vadd.xlane.f32.xlu0 %v2378
        %v2380 = vpop.xlane.xlu0 %2379
        %v2381 = vsel %vm1623, %v2295, 0.0
        %2382 = vadd.xlane.f32.xlu0 %v2381
        %v2383 = vpop.xlane.xlu0 %2382
        %v2384 = vsel %vm1623, %v2297, 0.0
        %2385 = vadd.xlane.f32.xlu0 %v2384
        %v2386 = vpop.xlane.xlu0 %2385
        %v2387 = vsel %vm1623, %v2299, 0.0
        %2388 = vadd.xlane.f32.xlu0 %v2387
        %v2389 = vpop.xlane.xlu0 %2388
        %v2390 = vsel %vm1623, %v2301, 0.0
        %2391 = vadd.xlane.f32.xlu0 %v2390
        %v2392 = vpop.xlane.xlu0 %2391
        %v2393 = vsel %vm1623, %v2303, 0.0
        %2394 = vadd.xlane.f32.xlu0 %v2393
        %v2395 = vpop.xlane.xlu0 %2394
        %v2396 = vsel %vm1623, %v2305, 0.0
        %2397 = vadd.xlane.f32.xlu0 %v2396
        %v2398 = vpop.xlane.xlu0 %2397
        %v2399 = vsel %vm1623, %v2307, 0.0
        %2400 = vadd.xlane.f32.xlu0 %v2399
        %v2401 = vpop.xlane.xlu0 %2400
        %v2402 = vsel %vm1623, %v2309, 0.0
        %2403 = vadd.xlane.f32.xlu0 %v2402
        %v2404 = vpop.xlane.xlu0 %2403
        %v2405 = vsel %vm1623, %v2311, 0.0
        %2406 = vadd.xlane.f32.xlu0 %v2405
        %v2407 = vpop.xlane.xlu0 %2406
        %v2408 = vrcp.pop %v2314
        %v2409 = vmul.f32 %v2314, %v2408
        %v2410 = vsub.f32 1.0, %v2409
        %v2411 = vmul.f32 %v2408, %v2410
        %v2412 = vadd.f32 %v2408, %v2411
        %vm2413 = vweird.f32 %v2314
        %vm2414 = vweird.f32 %v2408
        %vm2415 = vmor %vm2413, %vm2414
        %v2416 = vsel %vm2415, %v2408, %v2412
        %v2417 = vand.u32 2147483647, %v2314
        %vm2418 = vcmp.eq.f32.partialorder %v2417, 8.507059e+37
        %v2419 = vand.u32 %v2314, 2147483648
        %v2420 = vor.u32 1.1754944e-38, %v2419
        %v2421 = vsel %vm2418, %v2420, %v2416
        %v2422 = vmul.f32 %v2249, %v2421
        %v2423 = vrcp.pop %v2317
        %v2424 = vmul.f32 %v2317, %v2423
        %v2425 = vsub.f32 1.0, %v2424
        %v2426 = vmul.f32 %v2423, %v2425
        %v2427 = vadd.f32 %v2423, %v2426
        %vm2428 = vweird.f32 %v2317
        %vm2429 = vweird.f32 %v2423
        %vm2430 = vmor %vm2428, %vm2429
        %v2431 = vsel %vm2430, %v2423, %v2427
        %v2432 = vand.u32 2147483647, %v2317
        %vm2433 = vcmp.eq.f32.partialorder %v2432, 8.507059e+37
        %v2434 = vand.u32 %v2317, 2147483648
        %v2435 = vor.u32 1.1754944e-38, %v2434
        %v2436 = vsel %vm2433, %v2435, %v2431
        %v2437 = vmul.f32 %v2251, %v2436
        %v2438 = vrcp.pop %v2320
        %v2439 = vmul.f32 %v2320, %v2438
        %v2440 = vsub.f32 1.0, %v2439
        %v2441 = vmul.f32 %v2438, %v2440
        %v2442 = vadd.f32 %v2438, %v2441
        %vm2443 = vweird.f32 %v2320
        %vm2444 = vweird.f32 %v2438
        %vm2445 = vmor %vm2443, %vm2444
        %v2446 = vsel %vm2445, %v2438, %v2442
        %v2447 = vand.u32 2147483647, %v2320
        %vm2448 = vcmp.eq.f32.partialorder %v2447, 8.507059e+37
        %v2449 = vand.u32 %v2320, 2147483648
        %v2450 = vor.u32 1.1754944e-38, %v2449
        %v2451 = vsel %vm2448, %v2450, %v2446
        %v2452 = vmul.f32 %v2253, %v2451
        %v2453 = vrcp.pop %v2323
        %v2454 = vmul.f32 %v2323, %v2453
        %v2455 = vsub.f32 1.0, %v2454
        %v2456 = vmul.f32 %v2453, %v2455
        %v2457 = vadd.f32 %v2453, %v2456
        %vm2458 = vweird.f32 %v2323
        %vm2459 = vweird.f32 %v2453
        %vm2460 = vmor %vm2458, %vm2459
        %v2461 = vsel %vm2460, %v2453, %v2457
        %v2462 = vand.u32 2147483647, %v2323
        %vm2463 = vcmp.eq.f32.partialorder %v2462, 8.507059e+37
        %v2464 = vand.u32 %v2323, 2147483648
        %v2465 = vor.u32 1.1754944e-38, %v2464
        %v2466 = vsel %vm2463, %v2465, %v2461
        %v2467 = vmul.f32 %v2255, %v2466
        %v2468 = vrcp.pop %v2326
        %v2469 = vmul.f32 %v2326, %v2468
        %v2470 = vsub.f32 1.0, %v2469
        %v2471 = vmul.f32 %v2468, %v2470
        %v2472 = vadd.f32 %v2468, %v2471
        %vm2473 = vweird.f32 %v2326
        %vm2474 = vweird.f32 %v2468
        %vm2475 = vmor %vm2473, %vm2474
        %v2476 = vsel %vm2475, %v2468, %v2472
        %v2477 = vand.u32 2147483647, %v2326
        %vm2478 = vcmp.eq.f32.partialorder %v2477, 8.507059e+37
        %v2479 = vand.u32 %v2326, 2147483648
        %v2480 = vor.u32 1.1754944e-38, %v2479
        %v2481 = vsel %vm2478, %v2480, %v2476
        %v2482 = vmul.f32 %v2257, %v2481
        %v2483 = vrcp.pop %v2329
        %v2484 = vmul.f32 %v2329, %v2483
        %v2485 = vsub.f32 1.0, %v2484
        %v2486 = vmul.f32 %v2483, %v2485
        %v2487 = vadd.f32 %v2483, %v2486
        %vm2488 = vweird.f32 %v2329
        %vm2489 = vweird.f32 %v2483
        %vm2490 = vmor %vm2488, %vm2489
        %v2491 = vsel %vm2490, %v2483, %v2487
        %v2492 = vand.u32 2147483647, %v2329
        %vm2493 = vcmp.eq.f32.partialorder %v2492, 8.507059e+37
        %v2494 = vand.u32 %v2329, 2147483648
        %v2495 = vor.u32 1.1754944e-38, %v2494
        %v2496 = vsel %vm2493, %v2495, %v2491
        %v2497 = vmul.f32 %v2259, %v2496
        %v2498 = vrcp.pop %v2332
        %v2499 = vmul.f32 %v2332, %v2498
        %v2500 = vsub.f32 1.0, %v2499
        %v2501 = vmul.f32 %v2498, %v2500
        %v2502 = vadd.f32 %v2498, %v2501
        %vm2503 = vweird.f32 %v2332
        %vm2504 = vweird.f32 %v2498
        %vm2505 = vmor %vm2503, %vm2504
        %v2506 = vsel %vm2505, %v2498, %v2502
        %v2507 = vand.u32 2147483647, %v2332
        %vm2508 = vcmp.eq.f32.partialorder %v2507, 8.507059e+37
        %v2509 = vand.u32 %v2332, 2147483648
        %v2510 = vor.u32 1.1754944e-38, %v2509
        %v2511 = vsel %vm2508, %v2510, %v2506
        %v2512 = vmul.f32 %v2261, %v2511
        %v2513 = vrcp.pop %v2335
        %v2514 = vmul.f32 %v2335, %v2513
        %v2515 = vsub.f32 1.0, %v2514
        %v2516 = vmul.f32 %v2513, %v2515
        %v2517 = vadd.f32 %v2513, %v2516
        %vm2518 = vweird.f32 %v2335
        %vm2519 = vweird.f32 %v2513
        %vm2520 = vmor %vm2518, %vm2519
        %v2521 = vsel %vm2520, %v2513, %v2517
        %v2522 = vand.u32 2147483647, %v2335
        %vm2523 = vcmp.eq.f32.partialorder %v2522, 8.507059e+37
        %v2524 = vand.u32 %v2335, 2147483648
        %v2525 = vor.u32 1.1754944e-38, %v2524
        %v2526 = vsel %vm2523, %v2525, %v2521
        %v2527 = vmul.f32 %v2263, %v2526
        %v2528 = vrcp.pop %v2338
        %v2529 = vmul.f32 %v2338, %v2528
        %v2530 = vsub.f32 1.0, %v2529
        %v2531 = vmul.f32 %v2528, %v2530
        %v2532 = vadd.f32 %v2528, %v2531
        %vm2533 = vweird.f32 %v2338
        %vm2534 = vweird.f32 %v2528
        %vm2535 = vmor %vm2533, %vm2534
        %v2536 = vsel %vm2535, %v2528, %v2532
        %v2537 = vand.u32 2147483647, %v2338
        %vm2538 = vcmp.eq.f32.partialorder %v2537, 8.507059e+37
        %v2539 = vand.u32 %v2338, 2147483648
        %v2540 = vor.u32 1.1754944e-38, %v2539
        %v2541 = vsel %vm2538, %v2540, %v2536
        %v2542 = vmul.f32 %v2265, %v2541
        %v2543 = vrcp.pop %v2341
        %v2544 = vmul.f32 %v2341, %v2543
        %v2545 = vsub.f32 1.0, %v2544
        %v2546 = vmul.f32 %v2543, %v2545
        %v2547 = vadd.f32 %v2543, %v2546
        %vm2548 = vweird.f32 %v2341
        %vm2549 = vweird.f32 %v2543
        %vm2550 = vmor %vm2548, %vm2549
        %v2551 = vsel %vm2550, %v2543, %v2547
        %v2552 = vand.u32 2147483647, %v2341
        %vm2553 = vcmp.eq.f32.partialorder %v2552, 8.507059e+37
        %v2554 = vand.u32 %v2341, 2147483648
        %v2555 = vor.u32 1.1754944e-38, %v2554
        %v2556 = vsel %vm2553, %v2555, %v2551
        %v2557 = vmul.f32 %v2267, %v2556
        %v2558 = vrcp.pop %v2344
        %v2559 = vmul.f32 %v2344, %v2558
        %v2560 = vsub.f32 1.0, %v2559
        %v2561 = vmul.f32 %v2558, %v2560
        %v2562 = vadd.f32 %v2558, %v2561
        %vm2563 = vweird.f32 %v2344
        %vm2564 = vweird.f32 %v2558
        %vm2565 = vmor %vm2563, %vm2564
        %v2566 = vsel %vm2565, %v2558, %v2562
        %v2567 = vand.u32 2147483647, %v2344
        %vm2568 = vcmp.eq.f32.partialorder %v2567, 8.507059e+37
        %v2569 = vand.u32 %v2344, 2147483648
        %v2570 = vor.u32 1.1754944e-38, %v2569
        %v2571 = vsel %vm2568, %v2570, %v2566
        %v2572 = vmul.f32 %v2269, %v2571
        %v2573 = vrcp.pop %v2347
        %v2574 = vmul.f32 %v2347, %v2573
        %v2575 = vsub.f32 1.0, %v2574
        %v2576 = vmul.f32 %v2573, %v2575
        %v2577 = vadd.f32 %v2573, %v2576
        %vm2578 = vweird.f32 %v2347
        %vm2579 = vweird.f32 %v2573
        %vm2580 = vmor %vm2578, %vm2579
        %v2581 = vsel %vm2580, %v2573, %v2577
        %v2582 = vand.u32 2147483647, %v2347
        %vm2583 = vcmp.eq.f32.partialorder %v2582, 8.507059e+37
        %v2584 = vand.u32 %v2347, 2147483648
        %v2585 = vor.u32 1.1754944e-38, %v2584
        %v2586 = vsel %vm2583, %v2585, %v2581
        %v2587 = vmul.f32 %v2271, %v2586
        %v2588 = vrcp.pop %v2350
        %v2589 = vmul.f32 %v2350, %v2588
        %v2590 = vsub.f32 1.0, %v2589
        %v2591 = vmul.f32 %v2588, %v2590
        %v2592 = vadd.f32 %v2588, %v2591
        %vm2593 = vweird.f32 %v2350
        %vm2594 = vweird.f32 %v2588
        %vm2595 = vmor %vm2593, %vm2594
        %v2596 = vsel %vm2595, %v2588, %v2592
        %v2597 = vand.u32 2147483647, %v2350
        %vm2598 = vcmp.eq.f32.partialorder %v2597, 8.507059e+37
        %v2599 = vand.u32 %v2350, 2147483648
        %v2600 = vor.u32 1.1754944e-38, %v2599
        %v2601 = vsel %vm2598, %v2600, %v2596
        %v2602 = vmul.f32 %v2273, %v2601
        %v2603 = vrcp.pop %v2353
        %v2604 = vmul.f32 %v2353, %v2603
        %v2605 = vsub.f32 1.0, %v2604
        %v2606 = vmul.f32 %v2603, %v2605
        %v2607 = vadd.f32 %v2603, %v2606
        %vm2608 = vweird.f32 %v2353
        %vm2609 = vweird.f32 %v2603
        %vm2610 = vmor %vm2608, %vm2609
        %v2611 = vsel %vm2610, %v2603, %v2607
        %v2612 = vand.u32 2147483647, %v2353
        %vm2613 = vcmp.eq.f32.partialorder %v2612, 8.507059e+37
        %v2614 = vand.u32 %v2353, 2147483648
        %v2615 = vor.u32 1.1754944e-38, %v2614
        %v2616 = vsel %vm2613, %v2615, %v2611
        %v2617 = vmul.f32 %v2275, %v2616
        %v2618 = vrcp.pop %v2356
        %v2619 = vmul.f32 %v2356, %v2618
        %v2620 = vsub.f32 1.0, %v2619
        %v2621 = vmul.f32 %v2618, %v2620
        %v2622 = vadd.f32 %v2618, %v2621
        %vm2623 = vweird.f32 %v2356
        %vm2624 = vweird.f32 %v2618
        %vm2625 = vmor %vm2623, %vm2624
        %v2626 = vsel %vm2625, %v2618, %v2622
        %v2627 = vand.u32 2147483647, %v2356
        %vm2628 = vcmp.eq.f32.partialorder %v2627, 8.507059e+37
        %v2629 = vand.u32 %v2356, 2147483648
        %v2630 = vor.u32 1.1754944e-38, %v2629
        %v2631 = vsel %vm2628, %v2630, %v2626
        %v2632 = vmul.f32 %v2277, %v2631
        %v2633 = vrcp.pop %v2359
        %v2634 = vmul.f32 %v2359, %v2633
        %v2635 = vsub.f32 1.0, %v2634
        %v2636 = vmul.f32 %v2633, %v2635
        %v2637 = vadd.f32 %v2633, %v2636
        %vm2638 = vweird.f32 %v2359
        %vm2639 = vweird.f32 %v2633
        %vm2640 = vmor %vm2638, %vm2639
        %v2641 = vsel %vm2640, %v2633, %v2637
        %v2642 = vand.u32 2147483647, %v2359
        %vm2643 = vcmp.eq.f32.partialorder %v2642, 8.507059e+37
        %v2644 = vand.u32 %v2359, 2147483648
        %v2645 = vor.u32 1.1754944e-38, %v2644
        %v2646 = vsel %vm2643, %v2645, %v2641
        %v2647 = vmul.f32 %v2279, %v2646
        %v2648 = vrcp.pop %v2362
        %v2649 = vmul.f32 %v2362, %v2648
        %v2650 = vsub.f32 1.0, %v2649
        %v2651 = vmul.f32 %v2648, %v2650
        %v2652 = vadd.f32 %v2648, %v2651
        %vm2653 = vweird.f32 %v2362
        %vm2654 = vweird.f32 %v2648
        %vm2655 = vmor %vm2653, %vm2654
        %v2656 = vsel %vm2655, %v2648, %v2652
        %v2657 = vand.u32 2147483647, %v2362
        %vm2658 = vcmp.eq.f32.partialorder %v2657, 8.507059e+37
        %v2659 = vand.u32 %v2362, 2147483648
        %v2660 = vor.u32 1.1754944e-38, %v2659
        %v2661 = vsel %vm2658, %v2660, %v2656
        %v2662 = vmul.f32 %v2281, %v2661
        %v2663 = vrcp.pop %v2365
        %v2664 = vmul.f32 %v2365, %v2663
        %v2665 = vsub.f32 1.0, %v2664
        %v2666 = vmul.f32 %v2663, %v2665
        %v2667 = vadd.f32 %v2663, %v2666
        %vm2668 = vweird.f32 %v2365
        %vm2669 = vweird.f32 %v2663
        %vm2670 = vmor %vm2668, %vm2669
        %v2671 = vsel %vm2670, %v2663, %v2667
        %v2672 = vand.u32 2147483647, %v2365
        %vm2673 = vcmp.eq.f32.partialorder %v2672, 8.507059e+37
        %v2674 = vand.u32 %v2365, 2147483648
        %v2675 = vor.u32 1.1754944e-38, %v2674
        %v2676 = vsel %vm2673, %v2675, %v2671
        %v2677 = vmul.f32 %v2283, %v2676
        %v2678 = vrcp.pop %v2368
        %v2679 = vmul.f32 %v2368, %v2678
        %v2680 = vsub.f32 1.0, %v2679
        %v2681 = vmul.f32 %v2678, %v2680
        %v2682 = vadd.f32 %v2678, %v2681
        %vm2683 = vweird.f32 %v2368
        %vm2684 = vweird.f32 %v2678
        %vm2685 = vmor %vm2683, %vm2684
        %v2686 = vsel %vm2685, %v2678, %v2682
        %v2687 = vand.u32 2147483647, %v2368
        %vm2688 = vcmp.eq.f32.partialorder %v2687, 8.507059e+37
        %v2689 = vand.u32 %v2368, 2147483648
        %v2690 = vor.u32 1.1754944e-38, %v2689
        %v2691 = vsel %vm2688, %v2690, %v2686
        %v2692 = vmul.f32 %v2285, %v2691
        %v2693 = vrcp.pop %v2371
        %v2694 = vmul.f32 %v2371, %v2693
        %v2695 = vsub.f32 1.0, %v2694
        %v2696 = vmul.f32 %v2693, %v2695
        %v2697 = vadd.f32 %v2693, %v2696
        %vm2698 = vweird.f32 %v2371
        %vm2699 = vweird.f32 %v2693
        %vm2700 = vmor %vm2698, %vm2699
        %v2701 = vsel %vm2700, %v2693, %v2697
        %v2702 = vand.u32 2147483647, %v2371
        %vm2703 = vcmp.eq.f32.partialorder %v2702, 8.507059e+37
        %v2704 = vand.u32 %v2371, 2147483648
        %v2705 = vor.u32 1.1754944e-38, %v2704
        %v2706 = vsel %vm2703, %v2705, %v2701
        %v2707 = vmul.f32 %v2287, %v2706
        %v2708 = vrcp.pop %v2374
        %v2709 = vmul.f32 %v2374, %v2708
        %v2710 = vsub.f32 1.0, %v2709
        %v2711 = vmul.f32 %v2708, %v2710
        %v2712 = vadd.f32 %v2708, %v2711
        %vm2713 = vweird.f32 %v2374
        %vm2714 = vweird.f32 %v2708
        %vm2715 = vmor %vm2713, %vm2714
        %v2716 = vsel %vm2715, %v2708, %v2712
        %v2717 = vand.u32 2147483647, %v2374
        %vm2718 = vcmp.eq.f32.partialorder %v2717, 8.507059e+37
        %v2719 = vand.u32 %v2374, 2147483648
        %v2720 = vor.u32 1.1754944e-38, %v2719
        %v2721 = vsel %vm2718, %v2720, %v2716
        %v2722 = vmul.f32 %v2289, %v2721
        %v2723 = vrcp.pop %v2377
        %v2724 = vmul.f32 %v2377, %v2723
        %v2725 = vsub.f32 1.0, %v2724
        %v2726 = vmul.f32 %v2723, %v2725
        %v2727 = vadd.f32 %v2723, %v2726
        %vm2728 = vweird.f32 %v2377
        %vm2729 = vweird.f32 %v2723
        %vm2730 = vmor %vm2728, %vm2729
        %v2731 = vsel %vm2730, %v2723, %v2727
        %v2732 = vand.u32 2147483647, %v2377
        %vm2733 = vcmp.eq.f32.partialorder %v2732, 8.507059e+37
        %v2734 = vand.u32 %v2377, 2147483648
        %v2735 = vor.u32 1.1754944e-38, %v2734
        %v2736 = vsel %vm2733, %v2735, %v2731
        %v2737 = vmul.f32 %v2291, %v2736
        %v2738 = vrcp.pop %v2380
        %v2739 = vmul.f32 %v2380, %v2738
        %v2740 = vsub.f32 1.0, %v2739
        %v2741 = vmul.f32 %v2738, %v2740
        %v2742 = vadd.f32 %v2738, %v2741
        %vm2743 = vweird.f32 %v2380
        %vm2744 = vweird.f32 %v2738
        %vm2745 = vmor %vm2743, %vm2744
        %v2746 = vsel %vm2745, %v2738, %v2742
        %v2747 = vand.u32 2147483647, %v2380
        %vm2748 = vcmp.eq.f32.partialorder %v2747, 8.507059e+37
        %v2749 = vand.u32 %v2380, 2147483648
        %v2750 = vor.u32 1.1754944e-38, %v2749
        %v2751 = vsel %vm2748, %v2750, %v2746
        %v2752 = vmul.f32 %v2293, %v2751
        %v2753 = vrcp.pop %v2383
        %v2754 = vmul.f32 %v2383, %v2753
        %v2755 = vsub.f32 1.0, %v2754
        %v2756 = vmul.f32 %v2753, %v2755
        %v2757 = vadd.f32 %v2753, %v2756
        %vm2758 = vweird.f32 %v2383
        %vm2759 = vweird.f32 %v2753
        %vm2760 = vmor %vm2758, %vm2759
        %v2761 = vsel %vm2760, %v2753, %v2757
        %v2762 = vand.u32 2147483647, %v2383
        %vm2763 = vcmp.eq.f32.partialorder %v2762, 8.507059e+37
        %v2764 = vand.u32 %v2383, 2147483648
        %v2765 = vor.u32 1.1754944e-38, %v2764
        %v2766 = vsel %vm2763, %v2765, %v2761
        %v2767 = vmul.f32 %v2295, %v2766
        %v2768 = vrcp.pop %v2386
        %v2769 = vmul.f32 %v2386, %v2768
        %v2770 = vsub.f32 1.0, %v2769
        %v2771 = vmul.f32 %v2768, %v2770
        %v2772 = vadd.f32 %v2768, %v2771
        %vm2773 = vweird.f32 %v2386
        %vm2774 = vweird.f32 %v2768
        %vm2775 = vmor %vm2773, %vm2774
        %v2776 = vsel %vm2775, %v2768, %v2772
        %v2777 = vand.u32 2147483647, %v2386
        %vm2778 = vcmp.eq.f32.partialorder %v2777, 8.507059e+37
        %v2779 = vand.u32 %v2386, 2147483648
        %v2780 = vor.u32 1.1754944e-38, %v2779
        %v2781 = vsel %vm2778, %v2780, %v2776
        %v2782 = vmul.f32 %v2297, %v2781
        %v2783 = vrcp.pop %v2389
        %v2784 = vmul.f32 %v2389, %v2783
        %v2785 = vsub.f32 1.0, %v2784
        %v2786 = vmul.f32 %v2783, %v2785
        %v2787 = vadd.f32 %v2783, %v2786
        %vm2788 = vweird.f32 %v2389
        %vm2789 = vweird.f32 %v2783
        %vm2790 = vmor %vm2788, %vm2789
        %v2791 = vsel %vm2790, %v2783, %v2787
        %v2792 = vand.u32 2147483647, %v2389
        %vm2793 = vcmp.eq.f32.partialorder %v2792, 8.507059e+37
        %v2794 = vand.u32 %v2389, 2147483648
        %v2795 = vor.u32 1.1754944e-38, %v2794
        %v2796 = vsel %vm2793, %v2795, %v2791
        %v2797 = vmul.f32 %v2299, %v2796
        %v2798 = vrcp.pop %v2392
        %v2799 = vmul.f32 %v2392, %v2798
        %v2800 = vsub.f32 1.0, %v2799
        %v2801 = vmul.f32 %v2798, %v2800
        %v2802 = vadd.f32 %v2798, %v2801
        %vm2803 = vweird.f32 %v2392
        %vm2804 = vweird.f32 %v2798
        %vm2805 = vmor %vm2803, %vm2804
        %v2806 = vsel %vm2805, %v2798, %v2802
        %v2807 = vand.u32 2147483647, %v2392
        %vm2808 = vcmp.eq.f32.partialorder %v2807, 8.507059e+37
        %v2809 = vand.u32 %v2392, 2147483648
        %v2810 = vor.u32 1.1754944e-38, %v2809
        %v2811 = vsel %vm2808, %v2810, %v2806
        %v2812 = vmul.f32 %v2301, %v2811
        %v2813 = vrcp.pop %v2395
        %v2814 = vmul.f32 %v2395, %v2813
        %v2815 = vsub.f32 1.0, %v2814
        %v2816 = vmul.f32 %v2813, %v2815
        %v2817 = vadd.f32 %v2813, %v2816
        %vm2818 = vweird.f32 %v2395
        %vm2819 = vweird.f32 %v2813
        %vm2820 = vmor %vm2818, %vm2819
        %v2821 = vsel %vm2820, %v2813, %v2817
        %v2822 = vand.u32 2147483647, %v2395
        %vm2823 = vcmp.eq.f32.partialorder %v2822, 8.507059e+37
        %v2824 = vand.u32 %v2395, 2147483648
        %v2825 = vor.u32 1.1754944e-38, %v2824
        %v2826 = vsel %vm2823, %v2825, %v2821
        %v2827 = vmul.f32 %v2303, %v2826
        %v2828 = vrcp.pop %v2398
        %v2829 = vmul.f32 %v2398, %v2828
        %v2830 = vsub.f32 1.0, %v2829
        %v2831 = vmul.f32 %v2828, %v2830
        %v2832 = vadd.f32 %v2828, %v2831
        %vm2833 = vweird.f32 %v2398
        %vm2834 = vweird.f32 %v2828
        %vm2835 = vmor %vm2833, %vm2834
        %v2836 = vsel %vm2835, %v2828, %v2832
        %v2837 = vand.u32 2147483647, %v2398
        %vm2838 = vcmp.eq.f32.partialorder %v2837, 8.507059e+37
        %v2839 = vand.u32 %v2398, 2147483648
        %v2840 = vor.u32 1.1754944e-38, %v2839
        %v2841 = vsel %vm2838, %v2840, %v2836
        %v2842 = vmul.f32 %v2305, %v2841
        %v2843 = vrcp.pop %v2401
        %v2844 = vmul.f32 %v2401, %v2843
        %v2845 = vsub.f32 1.0, %v2844
        %v2846 = vmul.f32 %v2843, %v2845
        %v2847 = vadd.f32 %v2843, %v2846
        %vm2848 = vweird.f32 %v2401
        %vm2849 = vweird.f32 %v2843
        %vm2850 = vmor %vm2848, %vm2849
        %v2851 = vsel %vm2850, %v2843, %v2847
        %v2852 = vand.u32 2147483647, %v2401
        %vm2853 = vcmp.eq.f32.partialorder %v2852, 8.507059e+37
        %v2854 = vand.u32 %v2401, 2147483648
        %v2855 = vor.u32 1.1754944e-38, %v2854
        %v2856 = vsel %vm2853, %v2855, %v2851
        %v2857 = vmul.f32 %v2307, %v2856
        %v2858 = vrcp.pop %v2404
        %v2859 = vmul.f32 %v2404, %v2858
        %v2860 = vsub.f32 1.0, %v2859
        %v2861 = vmul.f32 %v2858, %v2860
        %v2862 = vadd.f32 %v2858, %v2861
        %vm2863 = vweird.f32 %v2404
        %vm2864 = vweird.f32 %v2858
        %vm2865 = vmor %vm2863, %vm2864
        %v2866 = vsel %vm2865, %v2858, %v2862
        %v2867 = vand.u32 2147483647, %v2404
        %vm2868 = vcmp.eq.f32.partialorder %v2867, 8.507059e+37
        %v2869 = vand.u32 %v2404, 2147483648
        %v2870 = vor.u32 1.1754944e-38, %v2869
        %v2871 = vsel %vm2868, %v2870, %v2866
        %v2872 = vmul.f32 %v2309, %v2871
        %v2873 = vrcp.pop %v2407
        %v2874 = vmul.f32 %v2407, %v2873
        %v2875 = vsub.f32 1.0, %v2874
        %v2876 = vmul.f32 %v2873, %v2875
        %v2877 = vadd.f32 %v2873, %v2876
        %vm2878 = vweird.f32 %v2407
        %vm2879 = vweird.f32 %v2873
        %vm2880 = vmor %vm2878, %vm2879
        %v2881 = vsel %vm2880, %v2873, %v2877
        %v2882 = vand.u32 2147483647, %v2407
        %vm2883 = vcmp.eq.f32.partialorder %v2882, 8.507059e+37
        %v2884 = vand.u32 %v2407, 2147483648
        %v2885 = vor.u32 1.1754944e-38, %v2884
        %v2886 = vsel %vm2883, %v2885, %v2881
        %v2887 = vmul.f32 %v2311, %v2886
        %v2889 = vsel %vm1623, %v2422, 0
        %v2892 = vsel %vm1623, %v2437, 0
        %2894 = vmatpush.msra.mxu0 0.0
        %2895 = vmatpush.msra.mxu0 0.0
        %2896 = vmatpush.msra.mxu0 0.0
        %2897 = vmatpush.msra.mxu0 0.0
        %2898 = vmatpush.msra.mxu0 0.0
        %2899 = vmatpush.msra.mxu0 0.0
        %2900 = vmatpush.msra.mxu0 0.0
        %2901 = vmatpush.msra.mxu0 0.0
        %2902 = vmatpush.msra.mxu0 0.0
        %2903 = vmatpush.msra.mxu0 0.0
        %2904 = vmatpush.msra.mxu0 0.0
        %2905 = vmatpush.msra.mxu0 0.0
        %2906 = vmatpush.msra.mxu0 0.0
        %2907 = vmatpush.msra.mxu0 0.0
        %2908 = vmatpush.msra.mxu0 %v1408
        %2909 = vmatpush.msra.mxu0 %v1406
        %2910 = vmatmul.f32.gmra.mxu0 %v2889
        %v2911 = vpop.f32.mrf.mxu0
        %v2912 = vadd.f32 0.0, %v2911
        %2913 = vmatmul.f32.gmra.mxu0 %v2892
        %v2914 = vpop.f32.mrf.mxu0
        %v2915 = vadd.f32 0.0, %v2914
        %2916 = vdwg.mxu0
        %v2918 = vsel %vm1623, %v2452, 0
        %v2921 = vsel %vm1623, %v2467, 0
        %2923 = vmatpush.msra.mxu0 0.0
        %2924 = vmatpush.msra.mxu0 0.0
        %2925 = vmatpush.msra.mxu0 0.0
        %2926 = vmatpush.msra.mxu0 0.0
        %2927 = vmatpush.msra.mxu0 0.0
        %2928 = vmatpush.msra.mxu0 0.0
        %2929 = vmatpush.msra.mxu0 0.0
        %2930 = vmatpush.msra.mxu0 0.0
        %2931 = vmatpush.msra.mxu0 0.0
        %2932 = vmatpush.msra.mxu0 0.0
        %2933 = vmatpush.msra.mxu0 0.0
        %2934 = vmatpush.msra.mxu0 0.0
        %2935 = vmatpush.msra.mxu0 0.0
        %2936 = vmatpush.msra.mxu0 0.0
        %2937 = vmatpush.msra.mxu0 %v1413
        %2938 = vmatpush.msra.mxu0 %v1411
        %2939 = vmatmul.f32.gmra.mxu0 %v2918
        %v2940 = vpop.f32.mrf.mxu0
        %v2941 = vadd.f32 0.0, %v2940
        %2942 = vmatmul.f32.gmra.mxu0 %v2921
        %v2943 = vpop.f32.mrf.mxu0
        %v2944 = vadd.f32 0.0, %v2943
        %2945 = vdwg.mxu0
        %v2947 = vsel %vm1623, %v2482, 0
        %v2950 = vsel %vm1623, %v2497, 0
        %2952 = vmatpush.msra.mxu0 0.0
        %2953 = vmatpush.msra.mxu0 0.0
        %2954 = vmatpush.msra.mxu0 0.0
        %2955 = vmatpush.msra.mxu0 0.0
        %2956 = vmatpush.msra.mxu0 0.0
        %2957 = vmatpush.msra.mxu0 0.0
        %2958 = vmatpush.msra.mxu0 0.0
        %2959 = vmatpush.msra.mxu0 0.0
        %2960 = vmatpush.msra.mxu0 0.0
        %2961 = vmatpush.msra.mxu0 0.0
        %2962 = vmatpush.msra.mxu0 0.0
        %2963 = vmatpush.msra.mxu0 0.0
        %2964 = vmatpush.msra.mxu0 0.0
        %2965 = vmatpush.msra.mxu0 0.0
        %2966 = vmatpush.msra.mxu0 %v1542
        %2967 = vmatpush.msra.mxu0 %v1540
        %2968 = vmatmul.f32.gmra.mxu0 %v2947
        %v2969 = vpop.f32.mrf.mxu0
        %v2970 = vadd.f32 0.0, %v2969
        %2971 = vmatmul.f32.gmra.mxu0 %v2950
        %v2972 = vpop.f32.mrf.mxu0
        %v2973 = vadd.f32 0.0, %v2972
        %2974 = vdwg.mxu0
        %v2976 = vsel %vm1623, %v2512, 0
        %v2979 = vsel %vm1623, %v2527, 0
        %2981 = vmatpush.msra.mxu0 0.0
        %2982 = vmatpush.msra.mxu0 0.0
        %2983 = vmatpush.msra.mxu0 0.0
        %2984 = vmatpush.msra.mxu0 0.0
        %2985 = vmatpush.msra.mxu0 0.0
        %2986 = vmatpush.msra.mxu0 0.0
        %2987 = vmatpush.msra.mxu0 0.0
        %2988 = vmatpush.msra.mxu0 0.0
        %2989 = vmatpush.msra.mxu0 0.0
        %2990 = vmatpush.msra.mxu0 0.0
        %2991 = vmatpush.msra.mxu0 0.0
        %2992 = vmatpush.msra.mxu0 0.0
        %2993 = vmatpush.msra.mxu0 0.0
        %2994 = vmatpush.msra.mxu0 0.0
        %2995 = vmatpush.msra.mxu0 %v1546
        %2996 = vmatpush.msra.mxu0 %v1544
        %2997 = vmatmul.f32.gmra.mxu0 %v2976
        %v2998 = vpop.f32.mrf.mxu0
        %v2999 = vadd.f32 0.0, %v2998
        %3000 = vmatmul.f32.gmra.mxu0 %v2979
        %v3001 = vpop.f32.mrf.mxu0
        %v3002 = vadd.f32 0.0, %v3001
        %3003 = vdwg.mxu0
        %v3005 = vsel %vm1623, %v2542, 0
        %v3008 = vsel %vm1623, %v2557, 0
        %3010 = vmatpush.msra.mxu0 0.0
        %3011 = vmatpush.msra.mxu0 0.0
        %3012 = vmatpush.msra.mxu0 0.0
        %3013 = vmatpush.msra.mxu0 0.0
        %3014 = vmatpush.msra.mxu0 0.0
        %3015 = vmatpush.msra.mxu0 0.0
        %3016 = vmatpush.msra.mxu0 0.0
        %3017 = vmatpush.msra.mxu0 0.0
        %3018 = vmatpush.msra.mxu0 0.0
        %3019 = vmatpush.msra.mxu0 0.0
        %3020 = vmatpush.msra.mxu0 0.0
        %3021 = vmatpush.msra.mxu0 0.0
        %3022 = vmatpush.msra.mxu0 0.0
        %3023 = vmatpush.msra.mxu0 0.0
        %3024 = vmatpush.msra.mxu0 %v1554
        %3025 = vmatpush.msra.mxu0 %v1552
        %3026 = vmatmul.f32.gmra.mxu0 %v3005
        %v3027 = vpop.f32.mrf.mxu0
        %v3028 = vadd.f32 0.0, %v3027
        %3029 = vmatmul.f32.gmra.mxu0 %v3008
        %v3030 = vpop.f32.mrf.mxu0
        %v3031 = vadd.f32 0.0, %v3030
        %3032 = vdwg.mxu0
        %v3034 = vsel %vm1623, %v2572, 0
        %v3037 = vsel %vm1623, %v2587, 0
        %3039 = vmatpush.msra.mxu0 0.0
        %3040 = vmatpush.msra.mxu0 0.0
        %3041 = vmatpush.msra.mxu0 0.0
        %3042 = vmatpush.msra.mxu0 0.0
        %3043 = vmatpush.msra.mxu0 0.0
        %3044 = vmatpush.msra.mxu0 0.0
        %3045 = vmatpush.msra.mxu0 0.0
        %3046 = vmatpush.msra.mxu0 0.0
        %3047 = vmatpush.msra.mxu0 0.0
        %3048 = vmatpush.msra.mxu0 0.0
        %3049 = vmatpush.msra.mxu0 0.0
        %3050 = vmatpush.msra.mxu0 0.0
        %3051 = vmatpush.msra.mxu0 0.0
        %3052 = vmatpush.msra.mxu0 0.0
        %3053 = vmatpush.msra.mxu0 %v1558
        %3054 = vmatpush.msra.mxu0 %v1556
        %3055 = vmatmul.f32.gmra.mxu0 %v3034
        %v3056 = vpop.f32.mrf.mxu0
        %v3057 = vadd.f32 0.0, %v3056
        %3058 = vmatmul.f32.gmra.mxu0 %v3037
        %v3059 = vpop.f32.mrf.mxu0
        %v3060 = vadd.f32 0.0, %v3059
        %3061 = vdwg.mxu0
        %v3063 = vsel %vm1623, %v2602, 0
        %v3066 = vsel %vm1623, %v2617, 0
        %3068 = vmatpush.msra.mxu0 0.0
        %3069 = vmatpush.msra.mxu0 0.0
        %3070 = vmatpush.msra.mxu0 0.0
        %3071 = vmatpush.msra.mxu0 0.0
        %3072 = vmatpush.msra.mxu0 0.0
        %3073 = vmatpush.msra.mxu0 0.0
        %3074 = vmatpush.msra.mxu0 0.0
        %3075 = vmatpush.msra.mxu0 0.0
        %3076 = vmatpush.msra.mxu0 0.0
        %3077 = vmatpush.msra.mxu0 0.0
        %3078 = vmatpush.msra.mxu0 0.0
        %3079 = vmatpush.msra.mxu0 0.0
        %3080 = vmatpush.msra.mxu0 0.0
        %3081 = vmatpush.msra.mxu0 0.0
        %3082 = vmatpush.msra.mxu0 %v1566
        %3083 = vmatpush.msra.mxu0 %v1564
        %3084 = vmatmul.f32.gmra.mxu0 %v3063
        %v3085 = vpop.f32.mrf.mxu0
        %v3086 = vadd.f32 0.0, %v3085
        %3087 = vmatmul.f32.gmra.mxu0 %v3066
        %v3088 = vpop.f32.mrf.mxu0
        %v3089 = vadd.f32 0.0, %v3088
        %3090 = vdwg.mxu0
        %v3092 = vsel %vm1623, %v2632, 0
        %v3095 = vsel %vm1623, %v2647, 0
        %3097 = vmatpush.msra.mxu0 0.0
        %3098 = vmatpush.msra.mxu0 0.0
        %3099 = vmatpush.msra.mxu0 0.0
        %3100 = vmatpush.msra.mxu0 0.0
        %3101 = vmatpush.msra.mxu0 0.0
        %3102 = vmatpush.msra.mxu0 0.0
        %3103 = vmatpush.msra.mxu0 0.0
        %3104 = vmatpush.msra.mxu0 0.0
        %3105 = vmatpush.msra.mxu0 0.0
        %3106 = vmatpush.msra.mxu0 0.0
        %3107 = vmatpush.msra.mxu0 0.0
        %3108 = vmatpush.msra.mxu0 0.0
        %3109 = vmatpush.msra.mxu0 0.0
        %3110 = vmatpush.msra.mxu0 0.0
        %3111 = vmatpush.msra.mxu0 %v1570
        %3112 = vmatpush.msra.mxu0 %v1568
        %3113 = vmatmul.f32.gmra.mxu0 %v3092
        %v3114 = vpop.f32.mrf.mxu0
        %v3115 = vadd.f32 0.0, %v3114
        %3116 = vmatmul.f32.gmra.mxu0 %v3095
        %v3117 = vpop.f32.mrf.mxu0
        %v3118 = vadd.f32 0.0, %v3117
        %3119 = vdwg.mxu0
        %v3121 = vsel %vm1623, %v2662, 0
        %v3124 = vsel %vm1623, %v2677, 0
        %3126 = vmatpush.msra.mxu0 0.0
        %3127 = vmatpush.msra.mxu0 0.0
        %3128 = vmatpush.msra.mxu0 0.0
        %3129 = vmatpush.msra.mxu0 0.0
        %3130 = vmatpush.msra.mxu0 0.0
        %3131 = vmatpush.msra.mxu0 0.0
        %3132 = vmatpush.msra.mxu0 0.0
        %3133 = vmatpush.msra.mxu0 0.0
        %3134 = vmatpush.msra.mxu0 0.0
        %3135 = vmatpush.msra.mxu0 0.0
        %3136 = vmatpush.msra.mxu0 0.0
        %3137 = vmatpush.msra.mxu0 0.0
        %3138 = vmatpush.msra.mxu0 0.0
        %3139 = vmatpush.msra.mxu0 0.0
        %3140 = vmatpush.msra.mxu0 %v1578
        %3141 = vmatpush.msra.mxu0 %v1576
        %3142 = vmatmul.f32.gmra.mxu0 %v3121
        %v3143 = vpop.f32.mrf.mxu0
        %v3144 = vadd.f32 0.0, %v3143
        %3145 = vmatmul.f32.gmra.mxu0 %v3124
        %v3146 = vpop.f32.mrf.mxu0
        %v3147 = vadd.f32 0.0, %v3146
        %3148 = vdwg.mxu0
        %v3150 = vsel %vm1623, %v2692, 0
        %v3153 = vsel %vm1623, %v2707, 0
        %3155 = vmatpush.msra.mxu0 0.0
        %3156 = vmatpush.msra.mxu0 0.0
        %3157 = vmatpush.msra.mxu0 0.0
        %3158 = vmatpush.msra.mxu0 0.0
        %3159 = vmatpush.msra.mxu0 0.0
        %3160 = vmatpush.msra.mxu0 0.0
        %3161 = vmatpush.msra.mxu0 0.0
        %3162 = vmatpush.msra.mxu0 0.0
        %3163 = vmatpush.msra.mxu0 0.0
        %3164 = vmatpush.msra.mxu0 0.0
        %3165 = vmatpush.msra.mxu0 0.0
        %3166 = vmatpush.msra.mxu0 0.0
        %3167 = vmatpush.msra.mxu0 0.0
        %3168 = vmatpush.msra.mxu0 0.0
        %3169 = vmatpush.msra.mxu0 %v1582
        %3170 = vmatpush.msra.mxu0 %v1580
        %3171 = vmatmul.f32.gmra.mxu0 %v3150
        %v3172 = vpop.f32.mrf.mxu0
        %v3173 = vadd.f32 0.0, %v3172
        %3174 = vmatmul.f32.gmra.mxu0 %v3153
        %v3175 = vpop.f32.mrf.mxu0
        %v3176 = vadd.f32 0.0, %v3175
        %3177 = vdwg.mxu0
        %v3179 = vsel %vm1623, %v2722, 0
        %v3182 = vsel %vm1623, %v2737, 0
        %3184 = vmatpush.msra.mxu0 0.0
        %3185 = vmatpush.msra.mxu0 0.0
        %3186 = vmatpush.msra.mxu0 0.0
        %3187 = vmatpush.msra.mxu0 0.0
        %3188 = vmatpush.msra.mxu0 0.0
        %3189 = vmatpush.msra.mxu0 0.0
        %3190 = vmatpush.msra.mxu0 0.0
        %3191 = vmatpush.msra.mxu0 0.0
        %3192 = vmatpush.msra.mxu0 0.0
        %3193 = vmatpush.msra.mxu0 0.0
        %3194 = vmatpush.msra.mxu0 0.0
        %3195 = vmatpush.msra.mxu0 0.0
        %3196 = vmatpush.msra.mxu0 0.0
        %3197 = vmatpush.msra.mxu0 0.0
        %3198 = vmatpush.msra.mxu0 %v1590
        %3199 = vmatpush.msra.mxu0 %v1588
        %3200 = vmatmul.f32.gmra.mxu0 %v3179
        %v3201 = vpop.f32.mrf.mxu0
        %v3202 = vadd.f32 0.0, %v3201
        %3203 = vmatmul.f32.gmra.mxu0 %v3182
        %v3204 = vpop.f32.mrf.mxu0
        %v3205 = vadd.f32 0.0, %v3204
        %3206 = vdwg.mxu0
        %v3208 = vsel %vm1623, %v2752, 0
        %v3211 = vsel %vm1623, %v2767, 0
        %3213 = vmatpush.msra.mxu0 0.0
        %3214 = vmatpush.msra.mxu0 0.0
        %3215 = vmatpush.msra.mxu0 0.0
        %3216 = vmatpush.msra.mxu0 0.0
        %3217 = vmatpush.msra.mxu0 0.0
        %3218 = vmatpush.msra.mxu0 0.0
        %3219 = vmatpush.msra.mxu0 0.0
        %3220 = vmatpush.msra.mxu0 0.0
        %3221 = vmatpush.msra.mxu0 0.0
        %3222 = vmatpush.msra.mxu0 0.0
        %3223 = vmatpush.msra.mxu0 0.0
        %3224 = vmatpush.msra.mxu0 0.0
        %3225 = vmatpush.msra.mxu0 0.0
        %3226 = vmatpush.msra.mxu0 0.0
        %3227 = vmatpush.msra.mxu0 %v1594
        %3228 = vmatpush.msra.mxu0 %v1592
        %3229 = vmatmul.f32.gmra.mxu0 %v3208
        %v3230 = vpop.f32.mrf.mxu0
        %v3231 = vadd.f32 0.0, %v3230
        %3232 = vmatmul.f32.gmra.mxu0 %v3211
        %v3233 = vpop.f32.mrf.mxu0
        %v3234 = vadd.f32 0.0, %v3233
        %3235 = vdwg.mxu0
        %v3237 = vsel %vm1623, %v2782, 0
        %v3240 = vsel %vm1623, %v2797, 0
        %3242 = vmatpush.msra.mxu0 0.0
        %3243 = vmatpush.msra.mxu0 0.0
        %3244 = vmatpush.msra.mxu0 0.0
        %3245 = vmatpush.msra.mxu0 0.0
        %3246 = vmatpush.msra.mxu0 0.0
        %3247 = vmatpush.msra.mxu0 0.0
        %3248 = vmatpush.msra.mxu0 0.0
        %3249 = vmatpush.msra.mxu0 0.0
        %3250 = vmatpush.msra.mxu0 0.0
        %3251 = vmatpush.msra.mxu0 0.0
        %3252 = vmatpush.msra.mxu0 0.0
        %3253 = vmatpush.msra.mxu0 0.0
        %3254 = vmatpush.msra.mxu0 0.0
        %3255 = vmatpush.msra.mxu0 0.0
        %3256 = vmatpush.msra.mxu0 %v1602
        %3257 = vmatpush.msra.mxu0 %v1600
        %3258 = vmatmul.f32.gmra.mxu0 %v3237
        %v3259 = vpop.f32.mrf.mxu0
        %v3260 = vadd.f32 0.0, %v3259
        %3261 = vmatmul.f32.gmra.mxu0 %v3240
        %v3262 = vpop.f32.mrf.mxu0
        %v3263 = vadd.f32 0.0, %v3262
        %3264 = vdwg.mxu0
        %v3266 = vsel %vm1623, %v2812, 0
        %v3269 = vsel %vm1623, %v2827, 0
        %3271 = vmatpush.msra.mxu0 0.0
        %3272 = vmatpush.msra.mxu0 0.0
        %3273 = vmatpush.msra.mxu0 0.0
        %3274 = vmatpush.msra.mxu0 0.0
        %3275 = vmatpush.msra.mxu0 0.0
        %3276 = vmatpush.msra.mxu0 0.0
        %3277 = vmatpush.msra.mxu0 0.0
        %3278 = vmatpush.msra.mxu0 0.0
        %3279 = vmatpush.msra.mxu0 0.0
        %3280 = vmatpush.msra.mxu0 0.0
        %3281 = vmatpush.msra.mxu0 0.0
        %3282 = vmatpush.msra.mxu0 0.0
        %3283 = vmatpush.msra.mxu0 0.0
        %3284 = vmatpush.msra.mxu0 0.0
        %3285 = vmatpush.msra.mxu0 %v1606
        %3286 = vmatpush.msra.mxu0 %v1604
        %3287 = vmatmul.f32.gmra.mxu0 %v3266
        %v3288 = vpop.f32.mrf.mxu0
        %v3289 = vadd.f32 0.0, %v3288
        %3290 = vmatmul.f32.gmra.mxu0 %v3269
        %v3291 = vpop.f32.mrf.mxu0
        %v3292 = vadd.f32 0.0, %v3291
        %3293 = vdwg.mxu0
        %v3295 = vsel %vm1623, %v2842, 0
        %v3298 = vsel %vm1623, %v2857, 0
        %3300 = vmatpush.msra.mxu0 0.0
        %3301 = vmatpush.msra.mxu0 0.0
        %3302 = vmatpush.msra.mxu0 0.0
        %3303 = vmatpush.msra.mxu0 0.0
        %3304 = vmatpush.msra.mxu0 0.0
        %3305 = vmatpush.msra.mxu0 0.0
        %3306 = vmatpush.msra.mxu0 0.0
        %3307 = vmatpush.msra.mxu0 0.0
        %3308 = vmatpush.msra.mxu0 0.0
        %3309 = vmatpush.msra.mxu0 0.0
        %3310 = vmatpush.msra.mxu0 0.0
        %3311 = vmatpush.msra.mxu0 0.0
        %3312 = vmatpush.msra.mxu0 0.0
        %3313 = vmatpush.msra.mxu0 0.0
        %3314 = vmatpush.msra.mxu0 %v1614
        %3315 = vmatpush.msra.mxu0 %v1612
        %3316 = vmatmul.f32.gmra.mxu0 %v3295
        %v3317 = vpop.f32.mrf.mxu0
        %v3318 = vadd.f32 0.0, %v3317
        %3319 = vmatmul.f32.gmra.mxu0 %v3298
        %v3320 = vpop.f32.mrf.mxu0
        %v3321 = vadd.f32 0.0, %v3320
        %3322 = vdwg.mxu0
        %v3324 = vsel %vm1623, %v2872, 0
        %v3327 = vsel %vm1623, %v2887, 0
        %3329 = vmatpush.msra.mxu0 0.0
        %3330 = vmatpush.msra.mxu0 0.0
        %3331 = vmatpush.msra.mxu0 0.0
        %3332 = vmatpush.msra.mxu0 0.0
        %3333 = vmatpush.msra.mxu0 0.0
        %3334 = vmatpush.msra.mxu0 0.0
        %3335 = vmatpush.msra.mxu0 0.0
        %3336 = vmatpush.msra.mxu0 0.0
        %3337 = vmatpush.msra.mxu0 0.0
        %3338 = vmatpush.msra.mxu0 0.0
        %3339 = vmatpush.msra.mxu0 0.0
        %3340 = vmatpush.msra.mxu0 0.0
        %3341 = vmatpush.msra.mxu0 0.0
        %3342 = vmatpush.msra.mxu0 0.0
        %3343 = vmatpush.msra.mxu0 %v1618
        %3344 = vmatpush.msra.mxu0 %v1616
        %3345 = vmatmul.f32.gmra.mxu0 %v3324
        %v3346 = vpop.f32.mrf.mxu0
        %v3347 = vadd.f32 0.0, %v3346
        %3348 = vmatmul.f32.gmra.mxu0 %v3327
        %v3349 = vpop.f32.mrf.mxu0
        %v3350 = vadd.f32 0.0, %v3349
        %3351 = vdwg.mxu0
        %3356 = vrot.lane.b32.xlu0 %v2970, 16
        %v3357 = vpop.permute.xlu0 %3356
        %3358 = vrot.lane.b32.xlu0 %v2973, 16
        %v3359 = vpop.permute.xlu0 %3358
        %3360 = vrot.lane.b32.xlu0 %v2999, 16
        %v3361 = vpop.permute.xlu0 %3360
        %3362 = vrot.lane.b32.xlu0 %v3002, 16
        %v3363 = vpop.permute.xlu0 %3362
        %3372 = vrot.lane.b32.xlu0 %v3028, 32
        %v3373 = vpop.permute.xlu0 %3372
        %3374 = vrot.lane.b32.xlu0 %v3031, 32
        %v3375 = vpop.permute.xlu0 %3374
        %3376 = vrot.lane.b32.xlu0 %v3057, 32
        %v3377 = vpop.permute.xlu0 %3376
        %3378 = vrot.lane.b32.xlu0 %v3060, 32
        %v3379 = vpop.permute.xlu0 %3378
        %3388 = vrot.lane.b32.xlu0 %v3086, 48
        %v3389 = vpop.permute.xlu0 %3388
        %3390 = vrot.lane.b32.xlu0 %v3089, 48
        %v3391 = vpop.permute.xlu0 %3390
        %3392 = vrot.lane.b32.xlu0 %v3115, 48
        %v3393 = vpop.permute.xlu0 %3392
        %3394 = vrot.lane.b32.xlu0 %v3118, 48
        %v3395 = vpop.permute.xlu0 %3394
        %3404 = vrot.lane.b32.xlu0 %v3144, 64
        %v3405 = vpop.permute.xlu0 %3404
        %3406 = vrot.lane.b32.xlu0 %v3147, 64
        %v3407 = vpop.permute.xlu0 %3406
        %3408 = vrot.lane.b32.xlu0 %v3173, 64
        %v3409 = vpop.permute.xlu0 %3408
        %3410 = vrot.lane.b32.xlu0 %v3176, 64
        %v3411 = vpop.permute.xlu0 %3410
        %3420 = vrot.lane.b32.xlu0 %v3202, 80
        %v3421 = vpop.permute.xlu0 %3420
        %3422 = vrot.lane.b32.xlu0 %v3205, 80
        %v3423 = vpop.permute.xlu0 %3422
        %3424 = vrot.lane.b32.xlu0 %v3231, 80
        %v3425 = vpop.permute.xlu0 %3424
        %3426 = vrot.lane.b32.xlu0 %v3234, 80
        %v3427 = vpop.permute.xlu0 %3426
        %3436 = vrot.lane.b32.xlu0 %v3260, 96
        %v3437 = vpop.permute.xlu0 %3436
        %3438 = vrot.lane.b32.xlu0 %v3263, 96
        %v3439 = vpop.permute.xlu0 %3438
        %3440 = vrot.lane.b32.xlu0 %v3289, 96
        %v3441 = vpop.permute.xlu0 %3440
        %3442 = vrot.lane.b32.xlu0 %v3292, 96
        %v3443 = vpop.permute.xlu0 %3442
        %3452 = vrot.lane.b32.xlu0 %v3318, 112
        %v3453 = vpop.permute.xlu0 %3452
        %3454 = vrot.lane.b32.xlu0 %v3321, 112
        %v3455 = vpop.permute.xlu0 %3454
        %3456 = vrot.lane.b32.xlu0 %v3347, 112
        %v3457 = vpop.permute.xlu0 %3456
        %3458 = vrot.lane.b32.xlu0 %v3350, 112
        %v3459 = vpop.permute.xlu0 %3458
        %v3464 = vsel %vm1623, %v2912, %v3357
        %v3465 = vsel %vm1623, %v2915, %v3359
        %v3466 = vsel %vm1623, %v2941, %v3361
        %v3467 = vsel %vm1623, %v2944, %v3363
        %vm3468 = vcmask 261120
        %v3469 = vsel %vm3468, %v3464, %v3373
        %v3470 = vsel %vm3468, %v3465, %v3375
        %v3471 = vsel %vm3468, %v3466, %v3377
        %v3472 = vsel %vm3468, %v3467, %v3379
        %vm3473 = vcmask 392192
        %v3474 = vsel %vm3473, %v3469, %v3389
        %v3475 = vsel %vm3473, %v3470, %v3391
        %v3476 = vsel %vm3473, %v3471, %v3393
        %v3477 = vsel %vm3473, %v3472, %v3395
        %vm3478 = vcmask 523264
        %v3479 = vsel %vm3478, %v3474, %v3405
        %v3480 = vsel %vm3478, %v3475, %v3407
        %v3481 = vsel %vm3478, %v3476, %v3409
        %v3482 = vsel %vm3478, %v3477, %v3411
        %vm3483 = vcmask 654336
        %v3484 = vsel %vm3483, %v3479, %v3421
        %v3485 = vsel %vm3483, %v3480, %v3423
        %v3486 = vsel %vm3483, %v3481, %v3425
        %v3487 = vsel %vm3483, %v3482, %v3427
        %vm3488 = vcmask 785408
        %v3489 = vsel %vm3488, %v3484, %v3437
        %v3490 = vsel %vm3488, %v3485, %v3439
        %v3491 = vsel %vm3488, %v3486, %v3441
        %v3492 = vsel %vm3488, %v3487, %v3443
        %vm3493 = vcmask 916480
        %v3494 = vsel %vm3493, %v3489, %v3453
        %v3495 = vsel %vm3493, %v3490, %v3455
        %v3496 = vsel %vm3493, %v3491, %v3457
        %v3497 = vsel %vm3493, %v3492, %v3459
        %v3498 = vpack.c.bf16 %v3495, %v3494
        %v3499 = vpack.c.bf16 %v3497, %v3496
        %v3516 = vunpack.c.l.b16 %v1006
        %v3517 = vunpack.c.l.b16 %v1007
        %v3518 = vunpack.c.l.b16 %v1008
        %v3519 = vunpack.c.l.b16 %v1009
        %v3520 = vunpack.c.l.b16 %v1010
        %v3521 = vunpack.c.l.b16 %v1011
        %v3522 = vunpack.c.l.b16 %v1012
        %v3523 = vunpack.c.l.b16 %v1013
        %v3524 = vunpack.c.l.b16 %v1014
        %v3525 = vunpack.c.l.b16 %v1015
        %v3526 = vunpack.c.l.b16 %v1016
        %v3527 = vunpack.c.l.b16 %v1017
        %v3528 = vunpack.c.l.b16 %v1018
        %v3529 = vunpack.c.l.b16 %v1019
        %v3530 = vunpack.c.l.b16 %v1020
        %v3531 = vunpack.c.l.b16 %v1021
        %v3532 = vpack.c.b16 %v3517, %v3516
        %v3533 = vpack.c.b16 %v3519, %v3518
        %v3534 = vpack.c.b16 %v3521, %v3520
        %v3535 = vpack.c.b16 %v3523, %v3522
        %v3536 = vpack.c.b16 %v3525, %v3524
        %v3537 = vpack.c.b16 %v3527, %v3526
        %v3538 = vpack.c.b16 %v3529, %v3528
        %v3539 = vpack.c.b16 %v3531, %v3530
        %3548 = vmatpush.bf16.msra.mxu0 %v3539
        %3549 = vmatpush.bf16.msra.mxu0 %v3538
        %3550 = vmatpush.bf16.msra.mxu0 %v3537
        %3551 = vmatpush.bf16.msra.mxu0 %v3536
        %3552 = vmatpush.bf16.msra.mxu0 %v3535
        %3553 = vmatpush.bf16.msra.mxu0 %v3534
        %3554 = vmatpush.bf16.msra.mxu0 %v3533
        %3555 = vmatpush.bf16.msra.mxu0 %v3532
        %3556 = vmatmul.bf16.gmra.mxu0 %v3498
        %v3557 = vpop.f32.mrf.mxu0
        %v3558 = vadd.f32 0.0, %v3557
        %v3559 = vpop.f32.mrf.mxu0
        %v3560 = vadd.f32 0.0, %v3559
        %3561 = vmatmul.bf16.gmra.mxu0 %v3499
        %v3562 = vpop.f32.mrf.mxu0
        %v3563 = vadd.f32 0.0, %v3562
        %v3564 = vpop.f32.mrf.mxu0
        %v3565 = vadd.f32 0.0, %v3564
        %3566 = vdwg.mxu0
        %v3567 = vadd.f32 %v969, %v3558
        %v3568 = vadd.f32 %v970, %v3560
        %v3569 = vadd.f32 %v971, %v3563
        %v3570 = vadd.f32 %v972, %v3565
        %v3572 = vperm.slane %v1022, 0
        %v3574 = vadd.f32 %v3567, %v3572
        %v3575 = vadd.f32 %v3568, %v3572
        %v3576 = vadd.f32 %v3569, %v3572
        %v3577 = vadd.f32 %v3570, %v3572
        %3578 = vadd.xlane.f32.xlu0 %v3574
        %v3579 = vpop.xlane.xlu0 %3578
        %3580 = vadd.xlane.f32.xlu0 %v3575
        %v3581 = vpop.xlane.xlu0 %3580
        %3582 = vadd.xlane.f32.xlu0 %v3576
        %v3583 = vpop.xlane.xlu0 %3582
        %3584 = vadd.xlane.f32.xlu0 %v3577
        %v3585 = vpop.xlane.xlu0 %3584
        %v3586 = vrcp.pop 128.0
        %v3587 = vmul.f32 128.0, %v3586
        %v3588 = vsub.f32 1.0, %v3587
        %v3589 = vmul.f32 %v3586, %v3588
        %v3590 = vadd.f32 %v3586, %v3589
        %vm3591 = vweird.f32 %v3586
        %v3592 = vsel %vm3591, %v3586, %v3590
        %v3593 = vmul.f32 %v3579, %v3592
        %v3594 = vmul.f32 %v3581, %v3592
        %v3595 = vmul.f32 %v3583, %v3592
        %v3596 = vmul.f32 %v3585, %v3592
        %v3597 = vsub.f32 %v3574, %v3593
        %v3598 = vsub.f32 %v3575, %v3594
        %v3599 = vsub.f32 %v3576, %v3595
        %v3600 = vsub.f32 %v3577, %v3596
        %v3601 = vmul.f32 %v3597, %v3597
        %v3602 = vmul.f32 %v3598, %v3598
        %v3603 = vmul.f32 %v3599, %v3599
        %v3604 = vmul.f32 %v3600, %v3600
        %3605 = vadd.xlane.f32.xlu0 %v3601
        %v3606 = vpop.xlane.xlu0 %3605
        %3607 = vadd.xlane.f32.xlu0 %v3602
        %v3608 = vpop.xlane.xlu0 %3607
        %3609 = vadd.xlane.f32.xlu0 %v3603
        %v3610 = vpop.xlane.xlu0 %3609
        %3611 = vadd.xlane.f32.xlu0 %v3604
        %v3612 = vpop.xlane.xlu0 %3611
        %v3613 = vmul.f32 %v3606, %v3592
        %v3614 = vmul.f32 %v3608, %v3592
        %v3615 = vmul.f32 %v3610, %v3592
        %v3616 = vmul.f32 %v3612, %v3592
        %v3617 = vadd.f32 %v3613, 1e-05
        %v3618 = vadd.f32 %v3614, 1e-05
        %v3619 = vadd.f32 %v3615, 1e-05
        %v3620 = vadd.f32 %v3616, 1e-05
        %v3621 = vrsqrt.pop %v3617
        %v3622 = vmul.f32 %v3621, %v3617
        %v3623 = vmul.f32 %v3622, %v3621
        %v3624 = vmul.f32 0.5, %v3623
        %v3625 = vsub.f32 1.5, %v3624
        %v3626 = vmul.f32 %v3621, %v3625
        %vm3627 = vweird.f32 %v3617
        %vm3628 = vweird.f32 %v3621
        %vm3629 = vmor %vm3627, %vm3628
        %v3630 = vsel %vm3629, %v3621, %v3626
        %v3631 = vrsqrt.pop %v3618
        %v3632 = vmul.f32 %v3631, %v3618
        %v3633 = vmul.f32 %v3632, %v3631
        %v3634 = vmul.f32 0.5, %v3633
        %v3635 = vsub.f32 1.5, %v3634
        %v3636 = vmul.f32 %v3631, %v3635
        %vm3637 = vweird.f32 %v3618
        %vm3638 = vweird.f32 %v3631
        %vm3639 = vmor %vm3637, %vm3638
        %v3640 = vsel %vm3639, %v3631, %v3636
        %v3641 = vrsqrt.pop %v3619
        %v3642 = vmul.f32 %v3641, %v3619
        %v3643 = vmul.f32 %v3642, %v3641
        %v3644 = vmul.f32 0.5, %v3643
        %v3645 = vsub.f32 1.5, %v3644
        %v3646 = vmul.f32 %v3641, %v3645
        %vm3647 = vweird.f32 %v3619
        %vm3648 = vweird.f32 %v3641
        %vm3649 = vmor %vm3647, %vm3648
        %v3650 = vsel %vm3649, %v3641, %v3646
        %v3651 = vrsqrt.pop %v3620
        %v3652 = vmul.f32 %v3651, %v3620
        %v3653 = vmul.f32 %v3652, %v3651
        %v3654 = vmul.f32 0.5, %v3653
        %v3655 = vsub.f32 1.5, %v3654
        %v3656 = vmul.f32 %v3651, %v3655
        %vm3657 = vweird.f32 %v3620
        %vm3658 = vweird.f32 %v3651
        %vm3659 = vmor %vm3657, %vm3658
        %v3660 = vsel %vm3659, %v3651, %v3656
        %v3661 = vmul.f32 %v3597, %v3630
        %v3662 = vmul.f32 %v3598, %v3640
        %v3663 = vmul.f32 %v3599, %v3650
        %v3664 = vmul.f32 %v3600, %v3660
        %v3666 = vperm.slane %v1023, 0
        %v3668 = vmul.f32 %v3661, %v3666
        %v3669 = vmul.f32 %v3662, %v3666
        %v3670 = vmul.f32 %v3663, %v3666
        %v3671 = vmul.f32 %v3664, %v3666
        %v3673 = vperm.slane %v1024, 0
        %v3675 = vadd.f32 %v3668, %v3673
        %v3676 = vadd.f32 %v3669, %v3673
        %v3677 = vadd.f32 %v3670, %v3673
        %v3678 = vadd.f32 %v3671, %v3673
        %v3679 = vpack.c.bf16 %v3676, %v3675
        %v3680 = vpack.c.bf16 %v3678, %v3677
        %v3682 = vperm.slane %v1089, 0
        %v3683 = vperm.slane %v1089, 1
        %v3684 = vperm.slane %v1089, 2
        %v3685 = vperm.slane %v1089, 3
        %v3686 = vperm.slane %v1089, 4
        %v3687 = vperm.slane %v1089, 5
        %v3688 = vperm.slane %v1089, 6
        %v3689 = vperm.slane %v1089, 7
        %v3762 = vunpack.c.l.b16 %v1025
        %v3763 = vunpack.c.h.b16 %v1025
        %v3764 = vunpack.c.l.b16 %v1026
        %v3765 = vunpack.c.h.b16 %v1026
        %v3766 = vunpack.c.l.b16 %v1027
        %v3767 = vunpack.c.h.b16 %v1027
        %v3768 = vunpack.c.l.b16 %v1028
        %v3769 = vunpack.c.h.b16 %v1028
        %v3770 = vunpack.c.l.b16 %v1029
        %v3771 = vunpack.c.h.b16 %v1029
        %v3772 = vunpack.c.l.b16 %v1030
        %v3773 = vunpack.c.h.b16 %v1030
        %v3774 = vunpack.c.l.b16 %v1031
        %v3775 = vunpack.c.h.b16 %v1031
        %v3776 = vunpack.c.l.b16 %v1032
        %v3777 = vunpack.c.h.b16 %v1032
        %v3778 = vunpack.c.l.b16 %v1033
        %v3779 = vunpack.c.h.b16 %v1033
        %v3780 = vunpack.c.l.b16 %v1034
        %v3781 = vunpack.c.h.b16 %v1034
        %v3782 = vunpack.c.l.b16 %v1035
        %v3783 = vunpack.c.h.b16 %v1035
        %v3784 = vunpack.c.l.b16 %v1036
        %v3785 = vunpack.c.h.b16 %v1036
        %v3786 = vunpack.c.l.b16 %v1037
        %v3787 = vunpack.c.h.b16 %v1037
        %v3788 = vunpack.c.l.b16 %v1038
        %v3789 = vunpack.c.h.b16 %v1038
        %v3790 = vunpack.c.l.b16 %v1039
        %v3791 = vunpack.c.h.b16 %v1039
        %v3792 = vunpack.c.l.b16 %v1040
        %v3793 = vunpack.c.h.b16 %v1040
        %v3794 = vunpack.c.l.b16 %v1041
        %v3795 = vunpack.c.h.b16 %v1041
        %v3796 = vunpack.c.l.b16 %v1042
        %v3797 = vunpack.c.h.b16 %v1042
        %v3798 = vunpack.c.l.b16 %v1043
        %v3799 = vunpack.c.h.b16 %v1043
        %v3800 = vunpack.c.l.b16 %v1044
        %v3801 = vunpack.c.h.b16 %v1044
        %v3802 = vunpack.c.l.b16 %v1045
        %v3803 = vunpack.c.h.b16 %v1045
        %v3804 = vunpack.c.l.b16 %v1046
        %v3805 = vunpack.c.h.b16 %v1046
        %v3806 = vunpack.c.l.b16 %v1047
        %v3807 = vunpack.c.h.b16 %v1047
        %v3808 = vunpack.c.l.b16 %v1048
        %v3809 = vunpack.c.h.b16 %v1048
        %v3810 = vunpack.c.l.b16 %v1049
        %v3811 = vunpack.c.h.b16 %v1049
        %v3812 = vunpack.c.l.b16 %v1050
        %v3813 = vunpack.c.h.b16 %v1050
        %v3814 = vunpack.c.l.b16 %v1051
        %v3815 = vunpack.c.h.b16 %v1051
        %v3816 = vunpack.c.l.b16 %v1052
        %v3817 = vunpack.c.h.b16 %v1052
        %v3818 = vunpack.c.l.b16 %v1053
        %v3819 = vunpack.c.h.b16 %v1053
        %v3820 = vunpack.c.l.b16 %v1054
        %v3821 = vunpack.c.h.b16 %v1054
        %v3822 = vunpack.c.l.b16 %v1055
        %v3823 = vunpack.c.h.b16 %v1055
        %v3824 = vunpack.c.l.b16 %v1056
        %v3825 = vunpack.c.h.b16 %v1056
        %v3826 = vunpack.c.l.b16 %v1057
        %v3827 = vunpack.c.h.b16 %v1057
        %v3828 = vunpack.c.l.b16 %v1058
        %v3829 = vunpack.c.h.b16 %v1058
        %v3830 = vunpack.c.l.b16 %v1059
        %v3831 = vunpack.c.h.b16 %v1059
        %v3832 = vunpack.c.l.b16 %v1060
        %v3833 = vunpack.c.h.b16 %v1060
        %v3834 = vunpack.c.l.b16 %v1061
        %v3835 = vunpack.c.h.b16 %v1061
        %v3836 = vunpack.c.l.b16 %v1062
        %v3837 = vunpack.c.h.b16 %v1062
        %v3838 = vunpack.c.l.b16 %v1063
        %v3839 = vunpack.c.h.b16 %v1063
        %v3840 = vunpack.c.l.b16 %v1064
        %v3841 = vunpack.c.h.b16 %v1064
        %v3842 = vunpack.c.l.b16 %v1065
        %v3843 = vunpack.c.h.b16 %v1065
        %v3844 = vunpack.c.l.b16 %v1066
        %v3845 = vunpack.c.h.b16 %v1066
        %v3846 = vunpack.c.l.b16 %v1067
        %v3847 = vunpack.c.h.b16 %v1067
        %v3848 = vunpack.c.l.b16 %v1068
        %v3849 = vunpack.c.h.b16 %v1068
        %v3850 = vunpack.c.l.b16 %v1069
        %v3851 = vunpack.c.h.b16 %v1069
        %v3852 = vunpack.c.l.b16 %v1070
        %v3853 = vunpack.c.h.b16 %v1070
        %v3854 = vunpack.c.l.b16 %v1071
        %v3855 = vunpack.c.h.b16 %v1071
        %v3856 = vunpack.c.l.b16 %v1072
        %v3857 = vunpack.c.h.b16 %v1072
        %v3858 = vunpack.c.l.b16 %v1073
        %v3859 = vunpack.c.h.b16 %v1073
        %v3860 = vunpack.c.l.b16 %v1074
        %v3861 = vunpack.c.h.b16 %v1074
        %v3862 = vunpack.c.l.b16 %v1075
        %v3863 = vunpack.c.h.b16 %v1075
        %v3864 = vunpack.c.l.b16 %v1076
        %v3865 = vunpack.c.h.b16 %v1076
        %v3866 = vunpack.c.l.b16 %v1077
        %v3867 = vunpack.c.h.b16 %v1077
        %v3868 = vunpack.c.l.b16 %v1078
        %v3869 = vunpack.c.h.b16 %v1078
        %v3870 = vunpack.c.l.b16 %v1079
        %v3871 = vunpack.c.h.b16 %v1079
        %v3872 = vunpack.c.l.b16 %v1080
        %v3873 = vunpack.c.h.b16 %v1080
        %v3874 = vunpack.c.l.b16 %v1081
        %v3875 = vunpack.c.h.b16 %v1081
        %v3876 = vunpack.c.l.b16 %v1082
        %v3877 = vunpack.c.h.b16 %v1082
        %v3878 = vunpack.c.l.b16 %v1083
        %v3879 = vunpack.c.h.b16 %v1083
        %v3880 = vunpack.c.l.b16 %v1084
        %v3881 = vunpack.c.h.b16 %v1084
        %v3882 = vunpack.c.l.b16 %v1085
        %v3883 = vunpack.c.h.b16 %v1085
        %v3884 = vunpack.c.l.b16 %v1086
        %v3885 = vunpack.c.h.b16 %v1086
        %v3886 = vunpack.c.l.b16 %v1087
        %v3887 = vunpack.c.h.b16 %v1087
        %v3888 = vunpack.c.l.b16 %v1088
        %v3889 = vunpack.c.h.b16 %v1088
        %v3890 = vpack.c.b16 %v3770, %v3762
        %v3891 = vpack.c.b16 %v3771, %v3763
        %v3892 = vpack.c.b16 %v3772, %v3764
        %v3893 = vpack.c.b16 %v3773, %v3765
        %v3894 = vpack.c.b16 %v3774, %v3766
        %v3895 = vpack.c.b16 %v3775, %v3767
        %v3896 = vpack.c.b16 %v3776, %v3768
        %v3897 = vpack.c.b16 %v3777, %v3769
        %v3898 = vpack.c.b16 %v3786, %v3778
        %v3899 = vpack.c.b16 %v3787, %v3779
        %v3900 = vpack.c.b16 %v3788, %v3780
        %v3901 = vpack.c.b16 %v3789, %v3781
        %v3902 = vpack.c.b16 %v3790, %v3782
        %v3903 = vpack.c.b16 %v3791, %v3783
        %v3904 = vpack.c.b16 %v3792, %v3784
        %v3905 = vpack.c.b16 %v3793, %v3785
        %v3906 = vpack.c.b16 %v3802, %v3794
        %v3907 = vpack.c.b16 %v3803, %v3795
        %v3908 = vpack.c.b16 %v3804, %v3796
        %v3909 = vpack.c.b16 %v3805, %v3797
        %v3910 = vpack.c.b16 %v3806, %v3798
        %v3911 = vpack.c.b16 %v3807, %v3799
        %v3912 = vpack.c.b16 %v3808, %v3800
        %v3913 = vpack.c.b16 %v3809, %v3801
        %v3914 = vpack.c.b16 %v3818, %v3810
        %v3915 = vpack.c.b16 %v3819, %v3811
        %v3916 = vpack.c.b16 %v3820, %v3812
        %v3917 = vpack.c.b16 %v3821, %v3813
        %v3918 = vpack.c.b16 %v3822, %v3814
        %v3919 = vpack.c.b16 %v3823, %v3815
        %v3920 = vpack.c.b16 %v3824, %v3816
        %v3921 = vpack.c.b16 %v3825, %v3817
        %v3922 = vpack.c.b16 %v3834, %v3826
        %v3923 = vpack.c.b16 %v3835, %v3827
        %v3924 = vpack.c.b16 %v3836, %v3828
        %v3925 = vpack.c.b16 %v3837, %v3829
        %v3926 = vpack.c.b16 %v3838, %v3830
        %v3927 = vpack.c.b16 %v3839, %v3831
        %v3928 = vpack.c.b16 %v3840, %v3832
        %v3929 = vpack.c.b16 %v3841, %v3833
        %v3930 = vpack.c.b16 %v3850, %v3842
        %v3931 = vpack.c.b16 %v3851, %v3843
        %v3932 = vpack.c.b16 %v3852, %v3844
        %v3933 = vpack.c.b16 %v3853, %v3845
        %v3934 = vpack.c.b16 %v3854, %v3846
        %v3935 = vpack.c.b16 %v3855, %v3847
        %v3936 = vpack.c.b16 %v3856, %v3848
        %v3937 = vpack.c.b16 %v3857, %v3849
        %v3938 = vpack.c.b16 %v3866, %v3858
        %v3939 = vpack.c.b16 %v3867, %v3859
        %v3940 = vpack.c.b16 %v3868, %v3860
        %v3941 = vpack.c.b16 %v3869, %v3861
        %v3942 = vpack.c.b16 %v3870, %v3862
        %v3943 = vpack.c.b16 %v3871, %v3863
        %v3944 = vpack.c.b16 %v3872, %v3864
        %v3945 = vpack.c.b16 %v3873, %v3865
        %v3946 = vpack.c.b16 %v3882, %v3874
        %v3947 = vpack.c.b16 %v3883, %v3875
        %v3948 = vpack.c.b16 %v3884, %v3876
        %v3949 = vpack.c.b16 %v3885, %v3877
        %v3950 = vpack.c.b16 %v3886, %v3878
        %v3951 = vpack.c.b16 %v3887, %v3879
        %v3952 = vpack.c.b16 %v3888, %v3880
        %v3953 = vpack.c.b16 %v3889, %v3881
        %4018 = vmatpush.bf16.msra.mxu0 %v3946
        %4019 = vmatpush.bf16.msra.mxu0 %v3938
        %4020 = vmatpush.bf16.msra.mxu0 %v3930
        %4021 = vmatpush.bf16.msra.mxu0 %v3922
        %4022 = vmatpush.bf16.msra.mxu0 %v3914
        %4023 = vmatpush.bf16.msra.mxu0 %v3906
        %4024 = vmatpush.bf16.msra.mxu0 %v3898
        %4025 = vmatpush.bf16.msra.mxu0 %v3890
        %4026 = vmatmul.bf16.gmra.mxu0 %v3679
        %v4027 = vpop.f32.mrf.mxu0
        %v4028 = vadd.f32 %v3682, %v4027
        %v4029 = vpop.f32.mrf.mxu0
        %v4030 = vadd.f32 %v3682, %v4029
        %4031 = vmatmul.bf16.gmra.mxu0 %v3680
        %v4032 = vpop.f32.mrf.mxu0
        %v4033 = vadd.f32 %v3682, %v4032
        %v4034 = vpop.f32.mrf.mxu0
        %v4035 = vadd.f32 %v3682, %v4034
        %4036 = vdwg.mxu0
        %4037 = vmatpush.bf16.msra.mxu0 %v3947
        %4038 = vmatpush.bf16.msra.mxu0 %v3939
        %4039 = vmatpush.bf16.msra.mxu0 %v3931
        %4040 = vmatpush.bf16.msra.mxu0 %v3923
        %4041 = vmatpush.bf16.msra.mxu0 %v3915
        %4042 = vmatpush.bf16.msra.mxu0 %v3907
        %4043 = vmatpush.bf16.msra.mxu0 %v3899
        %4044 = vmatpush.bf16.msra.mxu0 %v3891
        %4045 = vmatmul.bf16.gmra.mxu0 %v3679
        %v4046 = vpop.f32.mrf.mxu0
        %v4047 = vadd.f32 %v3683, %v4046
        %v4048 = vpop.f32.mrf.mxu0
        %v4049 = vadd.f32 %v3683, %v4048
        %4050 = vmatmul.bf16.gmra.mxu0 %v3680
        %v4051 = vpop.f32.mrf.mxu0
        %v4052 = vadd.f32 %v3683, %v4051
        %v4053 = vpop.f32.mrf.mxu0
        %v4054 = vadd.f32 %v3683, %v4053
        %4055 = vdwg.mxu0
        %4056 = vmatpush.bf16.msra.mxu0 %v3948
        %4057 = vmatpush.bf16.msra.mxu0 %v3940
        %4058 = vmatpush.bf16.msra.mxu0 %v3932
        %4059 = vmatpush.bf16.msra.mxu0 %v3924
        %4060 = vmatpush.bf16.msra.mxu0 %v3916
        %4061 = vmatpush.bf16.msra.mxu0 %v3908
        %4062 = vmatpush.bf16.msra.mxu0 %v3900
        %4063 = vmatpush.bf16.msra.mxu0 %v3892
        %4064 = vmatmul.bf16.gmra.mxu0 %v3679
        %v4065 = vpop.f32.mrf.mxu0
        %v4066 = vadd.f32 %v3684, %v4065
        %v4067 = vpop.f32.mrf.mxu0
        %v4068 = vadd.f32 %v3684, %v4067
        %4069 = vmatmul.bf16.gmra.mxu0 %v3680
        %v4070 = vpop.f32.mrf.mxu0
        %v4071 = vadd.f32 %v3684, %v4070
        %v4072 = vpop.f32.mrf.mxu0
        %v4073 = vadd.f32 %v3684, %v4072
        %4074 = vdwg.mxu0
        %4075 = vmatpush.bf16.msra.mxu0 %v3949
        %4076 = vmatpush.bf16.msra.mxu0 %v3941
        %4077 = vmatpush.bf16.msra.mxu0 %v3933
        %4078 = vmatpush.bf16.msra.mxu0 %v3925
        %4079 = vmatpush.bf16.msra.mxu0 %v3917
        %4080 = vmatpush.bf16.msra.mxu0 %v3909
        %4081 = vmatpush.bf16.msra.mxu0 %v3901
        %4082 = vmatpush.bf16.msra.mxu0 %v3893
        %4083 = vmatmul.bf16.gmra.mxu0 %v3679
        %v4084 = vpop.f32.mrf.mxu0
        %v4085 = vadd.f32 %v3685, %v4084
        %v4086 = vpop.f32.mrf.mxu0
        %v4087 = vadd.f32 %v3685, %v4086
        %4088 = vmatmul.bf16.gmra.mxu0 %v3680
        %v4089 = vpop.f32.mrf.mxu0
        %v4090 = vadd.f32 %v3685, %v4089
        %v4091 = vpop.f32.mrf.mxu0
        %v4092 = vadd.f32 %v3685, %v4091
        %4093 = vdwg.mxu0
        %4094 = vmatpush.bf16.msra.mxu0 %v3950
        %4095 = vmatpush.bf16.msra.mxu0 %v3942
        %4096 = vmatpush.bf16.msra.mxu0 %v3934
        %4097 = vmatpush.bf16.msra.mxu0 %v3926
        %4098 = vmatpush.bf16.msra.mxu0 %v3918
        %4099 = vmatpush.bf16.msra.mxu0 %v3910
        %4100 = vmatpush.bf16.msra.mxu0 %v3902
        %4101 = vmatpush.bf16.msra.mxu0 %v3894
        %4102 = vmatmul.bf16.gmra.mxu0 %v3679
        %v4103 = vpop.f32.mrf.mxu0
        %v4104 = vadd.f32 %v3686, %v4103
        %v4105 = vpop.f32.mrf.mxu0
        %v4106 = vadd.f32 %v3686, %v4105
        %4107 = vmatmul.bf16.gmra.mxu0 %v3680
        %v4108 = vpop.f32.mrf.mxu0
        %v4109 = vadd.f32 %v3686, %v4108
        %v4110 = vpop.f32.mrf.mxu0
        %v4111 = vadd.f32 %v3686, %v4110
        %4112 = vdwg.mxu0
        %4113 = vmatpush.bf16.msra.mxu0 %v3951
        %4114 = vmatpush.bf16.msra.mxu0 %v3943
        %4115 = vmatpush.bf16.msra.mxu0 %v3935
        %4116 = vmatpush.bf16.msra.mxu0 %v3927
        %4117 = vmatpush.bf16.msra.mxu0 %v3919
        %4118 = vmatpush.bf16.msra.mxu0 %v3911
        %4119 = vmatpush.bf16.msra.mxu0 %v3903
        %4120 = vmatpush.bf16.msra.mxu0 %v3895
        %4121 = vmatmul.bf16.gmra.mxu0 %v3679
        %v4122 = vpop.f32.mrf.mxu0
        %v4123 = vadd.f32 %v3687, %v4122
        %v4124 = vpop.f32.mrf.mxu0
        %v4125 = vadd.f32 %v3687, %v4124
        %4126 = vmatmul.bf16.gmra.mxu0 %v3680
        %v4127 = vpop.f32.mrf.mxu0
        %v4128 = vadd.f32 %v3687, %v4127
        %v4129 = vpop.f32.mrf.mxu0
        %v4130 = vadd.f32 %v3687, %v4129
        %4131 = vdwg.mxu0
        %4132 = vmatpush.bf16.msra.mxu0 %v3952
        %4133 = vmatpush.bf16.msra.mxu0 %v3944
        %4134 = vmatpush.bf16.msra.mxu0 %v3936
        %4135 = vmatpush.bf16.msra.mxu0 %v3928
        %4136 = vmatpush.bf16.msra.mxu0 %v3920
        %4137 = vmatpush.bf16.msra.mxu0 %v3912
        %4138 = vmatpush.bf16.msra.mxu0 %v3904
        %4139 = vmatpush.bf16.msra.mxu0 %v3896
        %4140 = vmatmul.bf16.gmra.mxu0 %v3679
        %v4141 = vpop.f32.mrf.mxu0
        %v4142 = vadd.f32 %v3688, %v4141
        %v4143 = vpop.f32.mrf.mxu0
        %v4144 = vadd.f32 %v3688, %v4143
        %4145 = vmatmul.bf16.gmra.mxu0 %v3680
        %v4146 = vpop.f32.mrf.mxu0
        %v4147 = vadd.f32 %v3688, %v4146
        %v4148 = vpop.f32.mrf.mxu0
        %v4149 = vadd.f32 %v3688, %v4148
        %4150 = vdwg.mxu0
        %4151 = vmatpush.bf16.msra.mxu0 %v3953
        %4152 = vmatpush.bf16.msra.mxu0 %v3945
        %4153 = vmatpush.bf16.msra.mxu0 %v3937
        %4154 = vmatpush.bf16.msra.mxu0 %v3929
        %4155 = vmatpush.bf16.msra.mxu0 %v3921
        %4156 = vmatpush.bf16.msra.mxu0 %v3913
        %4157 = vmatpush.bf16.msra.mxu0 %v3905
        %4158 = vmatpush.bf16.msra.mxu0 %v3897
        %4159 = vmatmul.bf16.gmra.mxu0 %v3679
        %v4160 = vpop.f32.mrf.mxu0
        %v4161 = vadd.f32 %v3689, %v4160
        %v4162 = vpop.f32.mrf.mxu0
        %v4163 = vadd.f32 %v3689, %v4162
        %4164 = vmatmul.bf16.gmra.mxu0 %v3680
        %v4165 = vpop.f32.mrf.mxu0
        %v4166 = vadd.f32 %v3689, %v4165
        %v4167 = vpop.f32.mrf.mxu0
        %v4168 = vadd.f32 %v3689, %v4167
        %4169 = vdwg.mxu0
        %v4170 = vmax.f32 %v4028, 0.0
        %v4171 = vmax.f32 %v4047, 0.0
        %v4172 = vmax.f32 %v4066, 0.0
        %v4173 = vmax.f32 %v4085, 0.0
        %v4174 = vmax.f32 %v4104, 0.0
        %v4175 = vmax.f32 %v4123, 0.0
        %v4176 = vmax.f32 %v4142, 0.0
        %v4177 = vmax.f32 %v4161, 0.0
        %v4178 = vmax.f32 %v4030, 0.0
        %v4179 = vmax.f32 %v4049, 0.0
        %v4180 = vmax.f32 %v4068, 0.0
        %v4181 = vmax.f32 %v4087, 0.0
        %v4182 = vmax.f32 %v4106, 0.0
        %v4183 = vmax.f32 %v4125, 0.0
        %v4184 = vmax.f32 %v4144, 0.0
        %v4185 = vmax.f32 %v4163, 0.0
        %v4186 = vmax.f32 %v4033, 0.0
        %v4187 = vmax.f32 %v4052, 0.0
        %v4188 = vmax.f32 %v4071, 0.0
        %v4189 = vmax.f32 %v4090, 0.0
        %v4190 = vmax.f32 %v4109, 0.0
        %v4191 = vmax.f32 %v4128, 0.0
        %v4192 = vmax.f32 %v4147, 0.0
        %v4193 = vmax.f32 %v4166, 0.0
        %v4194 = vmax.f32 %v4035, 0.0
        %v4195 = vmax.f32 %v4054, 0.0
        %v4196 = vmax.f32 %v4073, 0.0
        %v4197 = vmax.f32 %v4092, 0.0
        %v4198 = vmax.f32 %v4111, 0.0
        %v4199 = vmax.f32 %v4130, 0.0
        %v4200 = vmax.f32 %v4149, 0.0
        %v4201 = vmax.f32 %v4168, 0.0
        %v4202 = vpack.c.bf16 %v4178, %v4170
        %v4203 = vpack.c.bf16 %v4179, %v4171
        %v4204 = vpack.c.bf16 %v4180, %v4172
        %v4205 = vpack.c.bf16 %v4181, %v4173
        %v4206 = vpack.c.bf16 %v4182, %v4174
        %v4207 = vpack.c.bf16 %v4183, %v4175
        %v4208 = vpack.c.bf16 %v4184, %v4176
        %v4209 = vpack.c.bf16 %v4185, %v4177
        %v4210 = vpack.c.bf16 %v4194, %v4186
        %v4211 = vpack.c.bf16 %v4195, %v4187
        %v4212 = vpack.c.bf16 %v4196, %v4188
        %v4213 = vpack.c.bf16 %v4197, %v4189
        %v4214 = vpack.c.bf16 %v4198, %v4190
        %v4215 = vpack.c.bf16 %v4199, %v4191
        %v4216 = vpack.c.bf16 %v4200, %v4192
        %v4217 = vpack.c.bf16 %v4201, %v4193
        %v4219 = vperm.slane %v1218, 0
        %v4349 = vunpack.c.l.b16 %v1090
        %v4350 = vunpack.c.l.b16 %v1091
        %v4351 = vunpack.c.l.b16 %v1092
        %v4352 = vunpack.c.l.b16 %v1093
        %v4353 = vunpack.c.l.b16 %v1094
        %v4354 = vunpack.c.l.b16 %v1095
        %v4355 = vunpack.c.l.b16 %v1096
        %v4356 = vunpack.c.l.b16 %v1097
        %v4357 = vunpack.c.l.b16 %v1098
        %v4358 = vunpack.c.l.b16 %v1099
        %v4359 = vunpack.c.l.b16 %v1100
        %v4360 = vunpack.c.l.b16 %v1101
        %v4361 = vunpack.c.l.b16 %v1102
        %v4362 = vunpack.c.l.b16 %v1103
        %v4363 = vunpack.c.l.b16 %v1104
        %v4364 = vunpack.c.l.b16 %v1105
        %v4365 = vunpack.c.l.b16 %v1106
        %v4366 = vunpack.c.l.b16 %v1107
        %v4367 = vunpack.c.l.b16 %v1108
        %v4368 = vunpack.c.l.b16 %v1109
        %v4369 = vunpack.c.l.b16 %v1110
        %v4370 = vunpack.c.l.b16 %v1111
        %v4371 = vunpack.c.l.b16 %v1112
        %v4372 = vunpack.c.l.b16 %v1113
        %v4373 = vunpack.c.l.b16 %v1114
        %v4374 = vunpack.c.l.b16 %v1115
        %v4375 = vunpack.c.l.b16 %v1116
        %v4376 = vunpack.c.l.b16 %v1117
        %v4377 = vunpack.c.l.b16 %v1118
        %v4378 = vunpack.c.l.b16 %v1119
        %v4379 = vunpack.c.l.b16 %v1120
        %v4380 = vunpack.c.l.b16 %v1121
        %v4381 = vunpack.c.l.b16 %v1122
        %v4382 = vunpack.c.l.b16 %v1123
        %v4383 = vunpack.c.l.b16 %v1124
        %v4384 = vunpack.c.l.b16 %v1125
        %v4385 = vunpack.c.l.b16 %v1126
        %v4386 = vunpack.c.l.b16 %v1127
        %v4387 = vunpack.c.l.b16 %v1128
        %v4388 = vunpack.c.l.b16 %v1129
        %v4389 = vunpack.c.l.b16 %v1130
        %v4390 = vunpack.c.l.b16 %v1131
        %v4391 = vunpack.c.l.b16 %v1132
        %v4392 = vunpack.c.l.b16 %v1133
        %v4393 = vunpack.c.l.b16 %v1134
        %v4394 = vunpack.c.l.b16 %v1135
        %v4395 = vunpack.c.l.b16 %v1136
        %v4396 = vunpack.c.l.b16 %v1137
        %v4397 = vunpack.c.l.b16 %v1138
        %v4398 = vunpack.c.l.b16 %v1139
        %v4399 = vunpack.c.l.b16 %v1140
        %v4400 = vunpack.c.l.b16 %v1141
        %v4401 = vunpack.c.l.b16 %v1142
        %v4402 = vunpack.c.l.b16 %v1143
        %v4403 = vunpack.c.l.b16 %v1144
        %v4404 = vunpack.c.l.b16 %v1145
        %v4405 = vunpack.c.l.b16 %v1146
        %v4406 = vunpack.c.l.b16 %v1147
        %v4407 = vunpack.c.l.b16 %v1148
        %v4408 = vunpack.c.l.b16 %v1149
        %v4409 = vunpack.c.l.b16 %v1150
        %v4410 = vunpack.c.l.b16 %v1151
        %v4411 = vunpack.c.l.b16 %v1152
        %v4412 = vunpack.c.l.b16 %v1153
        %v4413 = vunpack.c.l.b16 %v1154
        %v4414 = vunpack.c.l.b16 %v1155
        %v4415 = vunpack.c.l.b16 %v1156
        %v4416 = vunpack.c.l.b16 %v1157
        %v4417 = vunpack.c.l.b16 %v1158
        %v4418 = vunpack.c.l.b16 %v1159
        %v4419 = vunpack.c.l.b16 %v1160
        %v4420 = vunpack.c.l.b16 %v1161
        %v4421 = vunpack.c.l.b16 %v1162
        %v4422 = vunpack.c.l.b16 %v1163
        %v4423 = vunpack.c.l.b16 %v1164
        %v4424 = vunpack.c.l.b16 %v1165
        %v4425 = vunpack.c.l.b16 %v1166
        %v4426 = vunpack.c.l.b16 %v1167
        %v4427 = vunpack.c.l.b16 %v1168
        %v4428 = vunpack.c.l.b16 %v1169
        %v4429 = vunpack.c.l.b16 %v1170
        %v4430 = vunpack.c.l.b16 %v1171
        %v4431 = vunpack.c.l.b16 %v1172
        %v4432 = vunpack.c.l.b16 %v1173
        %v4433 = vunpack.c.l.b16 %v1174
        %v4434 = vunpack.c.l.b16 %v1175
        %v4435 = vunpack.c.l.b16 %v1176
        %v4436 = vunpack.c.l.b16 %v1177
        %v4437 = vunpack.c.l.b16 %v1178
        %v4438 = vunpack.c.l.b16 %v1179
        %v4439 = vunpack.c.l.b16 %v1180
        %v4440 = vunpack.c.l.b16 %v1181
        %v4441 = vunpack.c.l.b16 %v1182
        %v4442 = vunpack.c.l.b16 %v1183
        %v4443 = vunpack.c.l.b16 %v1184
        %v4444 = vunpack.c.l.b16 %v1185
        %v4445 = vunpack.c.l.b16 %v1186
        %v4446 = vunpack.c.l.b16 %v1187
        %v4447 = vunpack.c.l.b16 %v1188
        %v4448 = vunpack.c.l.b16 %v1189
        %v4449 = vunpack.c.l.b16 %v1190
        %v4450 = vunpack.c.l.b16 %v1191
        %v4451 = vunpack.c.l.b16 %v1192
        %v4452 = vunpack.c.l.b16 %v1193
        %v4453 = vunpack.c.l.b16 %v1194
        %v4454 = vunpack.c.l.b16 %v1195
        %v4455 = vunpack.c.l.b16 %v1196
        %v4456 = vunpack.c.l.b16 %v1197
        %v4457 = vunpack.c.l.b16 %v1198
        %v4458 = vunpack.c.l.b16 %v1199
        %v4459 = vunpack.c.l.b16 %v1200
        %v4460 = vunpack.c.l.b16 %v1201
        %v4461 = vunpack.c.l.b16 %v1202
        %v4462 = vunpack.c.l.b16 %v1203
        %v4463 = vunpack.c.l.b16 %v1204
        %v4464 = vunpack.c.l.b16 %v1205
        %v4465 = vunpack.c.l.b16 %v1206
        %v4466 = vunpack.c.l.b16 %v1207
        %v4467 = vunpack.c.l.b16 %v1208
        %v4468 = vunpack.c.l.b16 %v1209
        %v4469 = vunpack.c.l.b16 %v1210
        %v4470 = vunpack.c.l.b16 %v1211
        %v4471 = vunpack.c.l.b16 %v1212
        %v4472 = vunpack.c.l.b16 %v1213
        %v4473 = vunpack.c.l.b16 %v1214
        %v4474 = vunpack.c.l.b16 %v1215
        %v4475 = vunpack.c.l.b16 %v1216
        %v4476 = vunpack.c.l.b16 %v1217
        %v4477 = vpack.c.b16 %v4350, %v4349
        %v4478 = vpack.c.b16 %v4352, %v4351
        %v4479 = vpack.c.b16 %v4354, %v4353
        %v4480 = vpack.c.b16 %v4356, %v4355
        %v4481 = vpack.c.b16 %v4358, %v4357
        %v4482 = vpack.c.b16 %v4360, %v4359
        %v4483 = vpack.c.b16 %v4362, %v4361
        %v4484 = vpack.c.b16 %v4364, %v4363
        %v4485 = vpack.c.b16 %v4366, %v4365
        %v4486 = vpack.c.b16 %v4368, %v4367
        %v4487 = vpack.c.b16 %v4370, %v4369
        %v4488 = vpack.c.b16 %v4372, %v4371
        %v4489 = vpack.c.b16 %v4374, %v4373
        %v4490 = vpack.c.b16 %v4376, %v4375
        %v4491 = vpack.c.b16 %v4378, %v4377
        %v4492 = vpack.c.b16 %v4380, %v4379
        %v4493 = vpack.c.b16 %v4382, %v4381
        %v4494 = vpack.c.b16 %v4384, %v4383
        %v4495 = vpack.c.b16 %v4386, %v4385
        %v4496 = vpack.c.b16 %v4388, %v4387
        %v4497 = vpack.c.b16 %v4390, %v4389
        %v4498 = vpack.c.b16 %v4392, %v4391
        %v4499 = vpack.c.b16 %v4394, %v4393
        %v4500 = vpack.c.b16 %v4396, %v4395
        %v4501 = vpack.c.b16 %v4398, %v4397
        %v4502 = vpack.c.b16 %v4400, %v4399
        %v4503 = vpack.c.b16 %v4402, %v4401
        %v4504 = vpack.c.b16 %v4404, %v4403
        %v4505 = vpack.c.b16 %v4406, %v4405
        %v4506 = vpack.c.b16 %v4408, %v4407
        %v4507 = vpack.c.b16 %v4410, %v4409
        %v4508 = vpack.c.b16 %v4412, %v4411
        %v4509 = vpack.c.b16 %v4414, %v4413
        %v4510 = vpack.c.b16 %v4416, %v4415
        %v4511 = vpack.c.b16 %v4418, %v4417
        %v4512 = vpack.c.b16 %v4420, %v4419
        %v4513 = vpack.c.b16 %v4422, %v4421
        %v4514 = vpack.c.b16 %v4424, %v4423
        %v4515 = vpack.c.b16 %v4426, %v4425
        %v4516 = vpack.c.b16 %v4428, %v4427
        %v4517 = vpack.c.b16 %v4430, %v4429
        %v4518 = vpack.c.b16 %v4432, %v4431
        %v4519 = vpack.c.b16 %v4434, %v4433
        %v4520 = vpack.c.b16 %v4436, %v4435
        %v4521 = vpack.c.b16 %v4438, %v4437
        %v4522 = vpack.c.b16 %v4440, %v4439
        %v4523 = vpack.c.b16 %v4442, %v4441
        %v4524 = vpack.c.b16 %v4444, %v4443
        %v4525 = vpack.c.b16 %v4446, %v4445
        %v4526 = vpack.c.b16 %v4448, %v4447
        %v4527 = vpack.c.b16 %v4450, %v4449
        %v4528 = vpack.c.b16 %v4452, %v4451
        %v4529 = vpack.c.b16 %v4454, %v4453
        %v4530 = vpack.c.b16 %v4456, %v4455
        %v4531 = vpack.c.b16 %v4458, %v4457
        %v4532 = vpack.c.b16 %v4460, %v4459
        %v4533 = vpack.c.b16 %v4462, %v4461
        %v4534 = vpack.c.b16 %v4464, %v4463
        %v4535 = vpack.c.b16 %v4466, %v4465
        %v4536 = vpack.c.b16 %v4468, %v4467
        %v4537 = vpack.c.b16 %v4470, %v4469
        %v4538 = vpack.c.b16 %v4472, %v4471
        %v4539 = vpack.c.b16 %v4474, %v4473
        %v4540 = vpack.c.b16 %v4476, %v4475
        %4605 = vmatpush.bf16.msra.mxu0 %v4484
        %4606 = vmatpush.bf16.msra.mxu0 %v4483
        %4607 = vmatpush.bf16.msra.mxu0 %v4482
        %4608 = vmatpush.bf16.msra.mxu0 %v4481
        %4609 = vmatpush.bf16.msra.mxu0 %v4480
        %4610 = vmatpush.bf16.msra.mxu0 %v4479
        %4611 = vmatpush.bf16.msra.mxu0 %v4478
        %4612 = vmatpush.bf16.msra.mxu0 %v4477
        %4613 = vmatmul.bf16.gmra.mxu0 %v4202
        %v4614 = vpop.f32.mrf.mxu0
        %v4615 = vadd.f32 %v4219, %v4614
        %v4616 = vpop.f32.mrf.mxu0
        %v4617 = vadd.f32 %v4219, %v4616
        %4618 = vmatmul.bf16.gmra.mxu0 %v4210
        %v4619 = vpop.f32.mrf.mxu0
        %v4620 = vadd.f32 %v4219, %v4619
        %v4621 = vpop.f32.mrf.mxu0
        %v4622 = vadd.f32 %v4219, %v4621
        %4623 = vdwg.mxu0
        %4624 = vmatpush.bf16.msra.mxu0 %v4492
        %4625 = vmatpush.bf16.msra.mxu0 %v4491
        %4626 = vmatpush.bf16.msra.mxu0 %v4490
        %4627 = vmatpush.bf16.msra.mxu0 %v4489
        %4628 = vmatpush.bf16.msra.mxu0 %v4488
        %4629 = vmatpush.bf16.msra.mxu0 %v4487
        %4630 = vmatpush.bf16.msra.mxu0 %v4486
        %4631 = vmatpush.bf16.msra.mxu0 %v4485
        %4632 = vmatmul.bf16.gmra.mxu0 %v4203
        %v4633 = vpop.f32.mrf.mxu0
        %v4634 = vadd.f32 %v4615, %v4633
        %v4635 = vpop.f32.mrf.mxu0
        %v4636 = vadd.f32 %v4617, %v4635
        %4637 = vmatmul.bf16.gmra.mxu0 %v4211
        %v4638 = vpop.f32.mrf.mxu0
        %v4639 = vadd.f32 %v4620, %v4638
        %v4640 = vpop.f32.mrf.mxu0
        %v4641 = vadd.f32 %v4622, %v4640
        %4642 = vdwg.mxu0
        %4643 = vmatpush.bf16.msra.mxu0 %v4500
        %4644 = vmatpush.bf16.msra.mxu0 %v4499
        %4645 = vmatpush.bf16.msra.mxu0 %v4498
        %4646 = vmatpush.bf16.msra.mxu0 %v4497
        %4647 = vmatpush.bf16.msra.mxu0 %v4496
        %4648 = vmatpush.bf16.msra.mxu0 %v4495
        %4649 = vmatpush.bf16.msra.mxu0 %v4494
        %4650 = vmatpush.bf16.msra.mxu0 %v4493
        %4651 = vmatmul.bf16.gmra.mxu0 %v4204
        %v4652 = vpop.f32.mrf.mxu0
        %v4653 = vadd.f32 %v4634, %v4652
        %v4654 = vpop.f32.mrf.mxu0
        %v4655 = vadd.f32 %v4636, %v4654
        %4656 = vmatmul.bf16.gmra.mxu0 %v4212
        %v4657 = vpop.f32.mrf.mxu0
        %v4658 = vadd.f32 %v4639, %v4657
        %v4659 = vpop.f32.mrf.mxu0
        %v4660 = vadd.f32 %v4641, %v4659
        %4661 = vdwg.mxu0
        %4662 = vmatpush.bf16.msra.mxu0 %v4508
        %4663 = vmatpush.bf16.msra.mxu0 %v4507
        %4664 = vmatpush.bf16.msra.mxu0 %v4506
        %4665 = vmatpush.bf16.msra.mxu0 %v4505
        %4666 = vmatpush.bf16.msra.mxu0 %v4504
        %4667 = vmatpush.bf16.msra.mxu0 %v4503
        %4668 = vmatpush.bf16.msra.mxu0 %v4502
        %4669 = vmatpush.bf16.msra.mxu0 %v4501
        %4670 = vmatmul.bf16.gmra.mxu0 %v4205
        %v4671 = vpop.f32.mrf.mxu0
        %v4672 = vadd.f32 %v4653, %v4671
        %v4673 = vpop.f32.mrf.mxu0
        %v4674 = vadd.f32 %v4655, %v4673
        %4675 = vmatmul.bf16.gmra.mxu0 %v4213
        %v4676 = vpop.f32.mrf.mxu0
        %v4677 = vadd.f32 %v4658, %v4676
        %v4678 = vpop.f32.mrf.mxu0
        %v4679 = vadd.f32 %v4660, %v4678
        %4680 = vdwg.mxu0
        %4681 = vmatpush.bf16.msra.mxu0 %v4516
        %4682 = vmatpush.bf16.msra.mxu0 %v4515
        %4683 = vmatpush.bf16.msra.mxu0 %v4514
        %4684 = vmatpush.bf16.msra.mxu0 %v4513
        %4685 = vmatpush.bf16.msra.mxu0 %v4512
        %4686 = vmatpush.bf16.msra.mxu0 %v4511
        %4687 = vmatpush.bf16.msra.mxu0 %v4510
        %4688 = vmatpush.bf16.msra.mxu0 %v4509
        %4689 = vmatmul.bf16.gmra.mxu0 %v4206
        %v4690 = vpop.f32.mrf.mxu0
        %v4691 = vadd.f32 %v4672, %v4690
        %v4692 = vpop.f32.mrf.mxu0
        %v4693 = vadd.f32 %v4674, %v4692
        %4694 = vmatmul.bf16.gmra.mxu0 %v4214
        %v4695 = vpop.f32.mrf.mxu0
        %v4696 = vadd.f32 %v4677, %v4695
        %v4697 = vpop.f32.mrf.mxu0
        %v4698 = vadd.f32 %v4679, %v4697
        %4699 = vdwg.mxu0
        %4700 = vmatpush.bf16.msra.mxu0 %v4524
        %4701 = vmatpush.bf16.msra.mxu0 %v4523
        %4702 = vmatpush.bf16.msra.mxu0 %v4522
        %4703 = vmatpush.bf16.msra.mxu0 %v4521
        %4704 = vmatpush.bf16.msra.mxu0 %v4520
        %4705 = vmatpush.bf16.msra.mxu0 %v4519
        %4706 = vmatpush.bf16.msra.mxu0 %v4518
        %4707 = vmatpush.bf16.msra.mxu0 %v4517
        %4708 = vmatmul.bf16.gmra.mxu0 %v4207
        %v4709 = vpop.f32.mrf.mxu0
        %v4710 = vadd.f32 %v4691, %v4709
        %v4711 = vpop.f32.mrf.mxu0
        %v4712 = vadd.f32 %v4693, %v4711
        %4713 = vmatmul.bf16.gmra.mxu0 %v4215
        %v4714 = vpop.f32.mrf.mxu0
        %v4715 = vadd.f32 %v4696, %v4714
        %v4716 = vpop.f32.mrf.mxu0
        %v4717 = vadd.f32 %v4698, %v4716
        %4718 = vdwg.mxu0
        %4719 = vmatpush.bf16.msra.mxu0 %v4532
        %4720 = vmatpush.bf16.msra.mxu0 %v4531
        %4721 = vmatpush.bf16.msra.mxu0 %v4530
        %4722 = vmatpush.bf16.msra.mxu0 %v4529
        %4723 = vmatpush.bf16.msra.mxu0 %v4528
        %4724 = vmatpush.bf16.msra.mxu0 %v4527
        %4725 = vmatpush.bf16.msra.mxu0 %v4526
        %4726 = vmatpush.bf16.msra.mxu0 %v4525
        %4727 = vmatmul.bf16.gmra.mxu0 %v4208
        %v4728 = vpop.f32.mrf.mxu0
        %v4729 = vadd.f32 %v4710, %v4728
        %v4730 = vpop.f32.mrf.mxu0
        %v4731 = vadd.f32 %v4712, %v4730
        %4732 = vmatmul.bf16.gmra.mxu0 %v4216
        %v4733 = vpop.f32.mrf.mxu0
        %v4734 = vadd.f32 %v4715, %v4733
        %v4735 = vpop.f32.mrf.mxu0
        %v4736 = vadd.f32 %v4717, %v4735
        %4737 = vdwg.mxu0
        %4738 = vmatpush.bf16.msra.mxu0 %v4540
        %4739 = vmatpush.bf16.msra.mxu0 %v4539
        %4740 = vmatpush.bf16.msra.mxu0 %v4538
        %4741 = vmatpush.bf16.msra.mxu0 %v4537
        %4742 = vmatpush.bf16.msra.mxu0 %v4536
        %4743 = vmatpush.bf16.msra.mxu0 %v4535
        %4744 = vmatpush.bf16.msra.mxu0 %v4534
        %4745 = vmatpush.bf16.msra.mxu0 %v4533
        %4746 = vmatmul.bf16.gmra.mxu0 %v4209
        %v4747 = vpop.f32.mrf.mxu0
        %v4748 = vadd.f32 %v4729, %v4747
        %v4749 = vpop.f32.mrf.mxu0
        %v4750 = vadd.f32 %v4731, %v4749
        %4751 = vmatmul.bf16.gmra.mxu0 %v4217
        %v4752 = vpop.f32.mrf.mxu0
        %v4753 = vadd.f32 %v4734, %v4752
        %v4754 = vpop.f32.mrf.mxu0
        %v4755 = vadd.f32 %v4736, %v4754
        %4756 = vdwg.mxu0
        %v4757 = vadd.f32 %v3675, %v4748
        %v4758 = vadd.f32 %v3676, %v4750
        %v4759 = vadd.f32 %v3677, %v4753
        %v4760 = vadd.f32 %v3678, %v4755
        %4761 = vadd.xlane.f32.xlu0 %v4757
        %v4762 = vpop.xlane.xlu0 %4761
        %4763 = vadd.xlane.f32.xlu0 %v4758
        %v4764 = vpop.xlane.xlu0 %4763
        %4765 = vadd.xlane.f32.xlu0 %v4759
        %v4766 = vpop.xlane.xlu0 %4765
        %4767 = vadd.xlane.f32.xlu0 %v4760
        %v4768 = vpop.xlane.xlu0 %4767
        %v4769 = vmul.f32 %v4762, %v3592
        %v4770 = vmul.f32 %v4764, %v3592
        %v4771 = vmul.f32 %v4766, %v3592
        %v4772 = vmul.f32 %v4768, %v3592
        %v4773 = vsub.f32 %v4757, %v4769
        %v4774 = vsub.f32 %v4758, %v4770
        %v4775 = vsub.f32 %v4759, %v4771
        %v4776 = vsub.f32 %v4760, %v4772
        %v4777 = vmul.f32 %v4773, %v4773
        %v4778 = vmul.f32 %v4774, %v4774
        %v4779 = vmul.f32 %v4775, %v4775
        %v4780 = vmul.f32 %v4776, %v4776
        %4781 = vadd.xlane.f32.xlu0 %v4777
        %v4782 = vpop.xlane.xlu0 %4781
        %4783 = vadd.xlane.f32.xlu0 %v4778
        %v4784 = vpop.xlane.xlu0 %4783
        %4785 = vadd.xlane.f32.xlu0 %v4779
        %v4786 = vpop.xlane.xlu0 %4785
        %4787 = vadd.xlane.f32.xlu0 %v4780
        %v4788 = vpop.xlane.xlu0 %4787
        %v4789 = vmul.f32 %v4782, %v3592
        %v4790 = vmul.f32 %v4784, %v3592
        %v4791 = vmul.f32 %v4786, %v3592
        %v4792 = vmul.f32 %v4788, %v3592
        %v4793 = vadd.f32 %v4789, 1e-05
        %v4794 = vadd.f32 %v4790, 1e-05
        %v4795 = vadd.f32 %v4791, 1e-05
        %v4796 = vadd.f32 %v4792, 1e-05
        %v4797 = vrsqrt.pop %v4793
        %v4798 = vmul.f32 %v4797, %v4793
        %v4799 = vmul.f32 %v4798, %v4797
        %v4800 = vmul.f32 0.5, %v4799
        %v4801 = vsub.f32 1.5, %v4800
        %v4802 = vmul.f32 %v4797, %v4801
        %vm4803 = vweird.f32 %v4793
        %vm4804 = vweird.f32 %v4797
        %vm4805 = vmor %vm4803, %vm4804
        %v4806 = vsel %vm4805, %v4797, %v4802
        %v4807 = vrsqrt.pop %v4794
        %v4808 = vmul.f32 %v4807, %v4794
        %v4809 = vmul.f32 %v4808, %v4807
        %v4810 = vmul.f32 0.5, %v4809
        %v4811 = vsub.f32 1.5, %v4810
        %v4812 = vmul.f32 %v4807, %v4811
        %vm4813 = vweird.f32 %v4794
        %vm4814 = vweird.f32 %v4807
        %vm4815 = vmor %vm4813, %vm4814
        %v4816 = vsel %vm4815, %v4807, %v4812
        %v4817 = vrsqrt.pop %v4795
        %v4818 = vmul.f32 %v4817, %v4795
        %v4819 = vmul.f32 %v4818, %v4817
        %v4820 = vmul.f32 0.5, %v4819
        %v4821 = vsub.f32 1.5, %v4820
        %v4822 = vmul.f32 %v4817, %v4821
        %vm4823 = vweird.f32 %v4795
        %vm4824 = vweird.f32 %v4817
        %vm4825 = vmor %vm4823, %vm4824
        %v4826 = vsel %vm4825, %v4817, %v4822
        %v4827 = vrsqrt.pop %v4796
        %v4828 = vmul.f32 %v4827, %v4796
        %v4829 = vmul.f32 %v4828, %v4827
        %v4830 = vmul.f32 0.5, %v4829
        %v4831 = vsub.f32 1.5, %v4830
        %v4832 = vmul.f32 %v4827, %v4831
        %vm4833 = vweird.f32 %v4796
        %vm4834 = vweird.f32 %v4827
        %vm4835 = vmor %vm4833, %vm4834
        %v4836 = vsel %vm4835, %v4827, %v4832
        %v4837 = vmul.f32 %v4773, %v4806
        %v4838 = vmul.f32 %v4774, %v4816
        %v4839 = vmul.f32 %v4775, %v4826
        %v4840 = vmul.f32 %v4776, %v4836
        %v4842 = vperm.slane %v1219, 0
        %v4844 = vmul.f32 %v4837, %v4842
        %v4845 = vmul.f32 %v4838, %v4842
        %v4846 = vmul.f32 %v4839, %v4842
        %v4847 = vmul.f32 %v4840, %v4842
        %v4849 = vperm.slane %v1220, 0
        %v4851 = vadd.f32 %v4844, %v4849
        %v4852 = vadd.f32 %v4845, %v4849
        %v4853 = vadd.f32 %v4846, %v4849
        %v4854 = vadd.f32 %v4847, %v4849
        %4855 = vst [vmem:[#allocation2] sm:$0xff] %v4851
        %4856 = vst [vmem:[#allocation2 + $0x8] sm:$0xff] %v4852
        %4857 = vst [vmem:[#allocation2 + $0x10] sm:$0xff] %v4853
        %4858 = vst [vmem:[#allocation2 + $0x18] sm:$0xff] %v4854
        %p4859 = scmp.eq.s32.totalorder %s44, 3
        // Predicated region
        $region133: #{tpu_custom_call.1} parent=79 // pred_check
          %p4860 = pneg %p4859
        $region134: #{tpu_custom_call.1} parent=79 // pred_check_branch
          %4862 = sbr.rel (%p4860) target = $region136
        $region135: #{tpu_custom_call.1} parent=79 // pred_region
          %4863 = vst [vmem:[#allocation23] sm:$0xff] %v4851
          %4864 = vst [vmem:[#allocation23 + $0x10] sm:$0xff] %v4852
          %4865 = vst [vmem:[#allocation23 + $0x8] sm:$0xff] %v4853
          %4866 = vst [vmem:[#allocation23 + $0x18] sm:$0xff] %v4854
        $region136: #{tpu_custom_call.1} parent=79 // pred_fallthru
          _
        // Predicated region
        $region137: #{tpu_custom_call.1} parent=79 // pred_check
          %p4867 = pneg %p432
        $region138: #{tpu_custom_call.1} parent=79 // pred_check_branch
          %4869 = sbr.rel (%p4867) target = $region140
        $region139: #{tpu_custom_call.1} parent=79 // pred_region
          %4871 = vsyncadd [#allocation5], 0
          %s4872 = sshll.u32 [#allocation23], 4
          %s4873 = int_to_ptr.vmem [resolvable:$true] %s4872
          %s4874 = sshll.u32 %s15, 4
          %s4875 = int_to_ptr.hbm [resolvable:$true] %s4874
          %4880 = dma.vmem_to_hbm [thread:$0]  %s4873, 512, %s4875, [#allocation5], 256, 256, 16
        $region140: #{tpu_custom_call.1} parent=79 // pred_fallthru
          _
        // Predicated region
        $region141: #{tpu_custom_call.1} parent=79 // pred_check
          %p4881 = pneg %p432
        $region142: #{tpu_custom_call.1} parent=79 // pred_check_branch
          %4883 = sbr.rel (%p4881) target = $region144
        $region143: #{tpu_custom_call.1} parent=79 // pred_region
          %4885 = dma.done [#allocation5], 512
        $region144: #{tpu_custom_call.1} parent=79 // pred_fallthru
          _
      $region80: #{tpu_custom_call.1} parent=5 // pred_fallthru
        _
      %p4886 = scmp.le.s32.totalorder 2, %s39
      // Predicated region
      $region145: #{tpu_custom_call.1} parent=5 // pred_check
        %p4887 = pneg %p4886
      $region146: #{tpu_custom_call.1} parent=5 // pred_check_branch
        %4889 = sbr.rel (%p4887) target = $region148
      $region147: #{tpu_custom_call.1} parent=5 // pred_region
        %s4890 = ssub.s32 %s39, 2
      $region148: #{tpu_custom_call.1} parent=5 // pred_fallthru
        _
    $region6: #{tpu_custom_call.1} parent=1 // loop_footer
      %s43 = sadd.s32 1, %s39
    $region7: #{tpu_custom_call.1} parent=1 // loop_footer_branch
      %38 = sbr.rel target = $region3
    $region8: #{tpu_custom_call.1} parent=1 // loop_exit
      _
    %4891 = vsyncpa [#allocation4], 1
    %s4892 = scalar_lea.sflag [#allocation4], 1
    %4893 = vsyncpa %s4892, 1
    %4894 = vsyncpa [#allocation7], 1
    %4895 = vsyncpa [#allocation10], 1
    %s4896 = scalar_lea.sflag [#allocation10], 1
    %4897 = vsyncpa %s4896, 1
    %4898 = vsyncpa [#allocation13], 1
    %s4899 = scalar_lea.sflag [#allocation13], 1
    %4900 = vsyncpa %s4899, 1
    %4901 = vsyncpa [#allocation16], 1
    %s4902 = scalar_lea.sflag [#allocation16], 1
    %4903 = vsyncpa %s4902, 1
    %4904 = vsyncpa [#allocation19], 1
    %s4905 = scalar_lea.sflag [#allocation19], 1
    %4906 = vsyncpa %s4905, 1
    %4907 = vsyncpa [#allocation22], 1
    %s4908 = scalar_lea.sflag [#allocation22], 1
    %4909 = vsyncpa %s4908, 1
    %4910 = vsyncpa [#allocation5], 1
    %s4911 = scalar_lea.sflag [#allocation5], 1
    %4912 = vsyncpa %s4911, 1

</llo_original>
